<compile_context>
chip_gen: v5e
topology: v5e:2x2
jax: 0.10.0
libtpu: 0.0.40
codegen_flags: <defaults>
</compile_context>

<pallas_src>
import jax
import jax.numpy as jnp
from jax.experimental import pallas as pl
from jax.experimental.pallas import tpu as pltpu

BN_EPS = 1e-5
LANE = 128
NUM_SWEEPS = 4  # 3 matmul/stat sweeps (one per layer) + 1 final BN-apply/store sweep


def _round_up(v, m):
    return ((v + m - 1) // m) * m


def _make_kernel(n_real, tile_n, d_in, feat, eps):
    """n_real, tile_n, d_in, feat are static Python ints."""
    inv_n = 1.0 / float(n_real)
    has_tail = (n_real % tile_n) != 0  # static: generate stat masking only if needed

    def kernel(x_ref, w1_ref, w23_ref, gb_ref, o_ref, act_ref, ss_ref, acc_ref):
        s = pl.program_id(0)            # sweep index 0..3 (slow / outer axis)
        t = pl.program_id(1)            # row-tile index (fast / inner axis)
        nt = pl.num_programs(1)
        row0 = pl.multiple_of(t * tile_n, tile_n)

        # Zero the per-sweep sum / sum-of-squares accumulator at sweep start.
        @pl.when(jnp.logical_and(t == 0, s < NUM_SWEEPS - 1))
        def _zero_acc():
            acc_ref[...] = jnp.zeros_like(acc_ref)

        def stat_mask(h):
            # Padded tail rows must not pollute the batch statistics (they become
            # non-zero after the first BN shift).  Only generated for ragged N.
            if not has_tail:
                return h
            rows = jax.lax.broadcasted_iota(jnp.int32, (tile_n, 1), 0)
            valid = (t * tile_n + rows) < n_real
            return jnp.where(valid, h, 0.0)

        def accumulate_and_store(h):
            # Stash pre-BN activation (f32) for the next sweep, accumulate stats.
            act_ref[pl.ds(row0, tile_n), :] = h
            hm = stat_mask(h)
            acc_ref[...] += jnp.concatenate(
                [jnp.sum(hm, axis=0, keepdims=True),
                 jnp.sum(hm * hm, axis=0, keepdims=True)], axis=0)

        def finalize(layer):
            # On the last row tile of the sweep, fold BN into (scale, shift):
            #   scale = gamma * rsqrt(var + eps);  shift = beta - mu * scale
            @pl.when(t == nt - 1)
            def _():
                mu = acc_ref[0:1, :] * inv_n
                var = jnp.maximum(acc_ref[1:2, :] * inv_n - mu * mu, 0.0)
                gamma = gb_ref[2 * layer:2 * layer + 1, :]
                beta = gb_ref[2 * layer + 1:2 * layer + 2, :]
                scale = gamma * jax.lax.rsqrt(var + eps)   # EUP rsqrt
                ss_ref[0:1, :] = scale
                ss_ref[1:2, :] = beta - mu * scale

        def bn_relu_prev():
            # Apply the BN finalized at the end of the previous sweep + ReLU,
            # cast to bf16 for the MXU.
            h_prev = act_ref[pl.ds(row0, tile_n), :]
            a = jnp.maximum(h_prev * ss_ref[0:1, :] + ss_ref[1:2, :], 0.0)
            return a.astype(jnp.bfloat16)

        @pl.when(s == 0)
        def _sweep0():      # layer 1: x (tile_n, d_in) @ w1 (d_in, feat), real K
            h = jnp.dot(x_ref[...], w1_ref[...], preferred_element_type=jnp.float32)
            accumulate_and_store(h)
            finalize(0)

        @pl.when(s == 1)
        def _sweep1():      # layer 2
            h = jnp.dot(bn_relu_prev(), w23_ref[0:feat, :],
                        preferred_element_type=jnp.float32)
            accumulate_and_store(h)
            finalize(1)

        @pl.when(s == 2)
        def _sweep2():      # layer 3
            h = jnp.dot(bn_relu_prev(), w23_ref[feat:2 * feat, :],
                        preferred_element_type=jnp.float32)
            accumulate_and_store(h)
            finalize(2)

        @pl.when(s == NUM_SWEEPS - 1)
        def _apply_store():  # final BN apply + lane-dense output store (only write)
            h3 = act_ref[pl.ds(row0, tile_n), :]
            o_ref[...] = h3 * ss_ref[0:1, :] + ss_ref[1:2, :]

    return kernel


def projection_mlp(x, params, *, tile_n=512):
    """x: (N, in_dims) f32.  params = (w1,g1,b1,w2,g2,b2,w3,g3,b3), weights (in,out)."""
    w1, g1, b1, w2, g2, b2, w3, g3, b3 = params
    n, d_in = x.shape
    d_h1, d_h2, d_out = w1.shape[1], w2.shape[1], w3.shape[1]

    feat = _round_up(max(d_h1, d_h2, d_out), LANE)     # lane-dense hidden/output width
    tile_n = max(8, _round_up(min(tile_n, n), 8))
    n_tiles = pl.cdiv(n, tile_n)
    n_pad = n_tiles * tile_n

    act_bytes = n_pad * feat * 4
    if act_bytes > 40 * 1024 * 1024:
        # TODO(synk): HBM-streamed activation fallback for very large row counts.
        raise NotImplementedError("activation slab exceeds the VMEM-resident budget")

    # Row padding with zeros; layer-1 padded rows stay exactly 0, later layers are
    # masked out of the BN statistics inside the kernel.
    xp = jnp.zeros((n_pad, d_in), jnp.float32).at[:n, :].set(x).astype(jnp.bfloat16)

    def pad_w(w, rows):
        return jnp.zeros((rows, feat), jnp.float32).at[:w.shape[0], :w.shape[1]].set(w)

    w1_p = pad_w(w1, d_in).astype(jnp.bfloat16)                       # (d_in, feat)
    w23 = jnp.concatenate([pad_w(w2, feat), pad_w(w3, feat)],
                          axis=0).astype(jnp.bfloat16)                # (2*feat, feat)

    def pad_row(v):
        return jnp.zeros((1, feat), jnp.float32).at[:, :v.shape[1]].set(v)

    gb = jnp.concatenate(
        [pad_row(g1), pad_row(b1), pad_row(g2), pad_row(b2), pad_row(g3), pad_row(b3),
         jnp.zeros((2, feat), jnp.float32)], axis=0)                  # (8, feat)

    kernel = _make_kernel(n, tile_n, d_in, feat, BN_EPS)

    # Advisory cost estimate: 3 matmuls per row (layer-at-a-time sweeps).
    flops = 2 * n_pad * feat * (d_in + 2 * feat)
    bytes_accessed = (xp.size * 2 + w1_p.size * 2 + w23.size * 2 + gb.size * 4
                      + n_pad * feat * 4)
    cost = pl.CostEstimate(flops=flops, transcendentals=3 * feat,
                           bytes_accessed=bytes_accessed)

    vmem_est = (act_bytes
                + 2 * (tile_n * d_in * 2 + tile_n * feat * 4)         # x / out buffers
                + 2 * (w1_p.size * 2 + w23.size * 2 + gb.size * 4)    # weight slabs
                + 16 * feat * 4)                                      # ss / acc scratch
    vmem_limit = int(min(max(vmem_est + (8 << 20), 32 << 20), 64 << 20))

    grid_spec = pltpu.PrefetchScalarGridSpec(
        num_scalar_prefetch=0,
        grid=(NUM_SWEEPS, n_tiles),
        in_specs=[
            # x is only consumed in sweep 0; pin the block index afterwards so it
            # is not refetched on sweeps 1-3.
            pl.BlockSpec((tile_n, d_in), lambda s, t: (jnp.where(s == 0, t, 0), 0)),
            pl.BlockSpec((d_in, feat), lambda s, t: (0, 0)),          # w1 (real K)
            pl.BlockSpec((2 * feat, feat), lambda s, t: (0, 0)),      # packed w2,w3
            pl.BlockSpec((8, feat), lambda s, t: (0, 0)),             # gamma/beta slab
        ],
        # Output block index only advances during the final sweep -> exactly one
        # (lane-dense, f32) writeback per row tile, no stale writebacks.
        out_specs=pl.BlockSpec(
            (tile_n, feat), lambda s, t: (jnp.where(s == NUM_SWEEPS - 1, t, 0), 0)),
        scratch_shapes=[
            pltpu.VMEM((n_pad, feat), jnp.float32),   # activation slab (pre-BN, f32)
            pltpu.VMEM((2, feat), jnp.float32),       # fused BN (scale, shift)
            pltpu.VMEM((2, feat), jnp.float32),       # per-sweep sum / sum-of-squares
        ],
    )

    out_padded = pl.pallas_call(
        kernel,
        out_shape=jax.ShapeDtypeStruct((n_pad, feat), jnp.float32),
        grid_spec=grid_spec,
        compiler_params=pltpu.CompilerParams(
            # Both axes sequential: the sweep axis carries the BN-stat dependency,
            # the row axis accumulates into a single VMEM scratch.
            dimension_semantics=("arbitrary", "arbitrary"),
            vmem_limit_bytes=vmem_limit),
        cost_estimate=cost,
    )(xp, w1_p, w23, gb)

    return out_padded[:n, :d_out]


def make_params(key, in_dims, hidden_dims, out_dims):
    """Deterministic parameter init (norm='bn' => Linear layers have bias=False)."""
    k1, k2, k3 = jax.random.split(key, 3)
    w1 = jax.random.normal(k1, (in_dims, hidden_dims[0]), jnp.float32) * 0.05
    w2 = jax.random.normal(k2, (hidden_dims[0], hidden_dims[1]), jnp.float32) * 0.05
    w3 = jax.random.normal(k3, (hidden_dims[1], out_dims), jnp.float32) * 0.05
    g1 = jnp.ones((1, hidden_dims[0]), jnp.float32)
    b1 = jnp.zeros((1, hidden_dims[0]), jnp.float32)
    g2 = jnp.ones((1, hidden_dims[1]), jnp.float32)
    b2 = jnp.zeros((1, hidden_dims[1]), jnp.float32)
    g3 = jnp.ones((1, out_dims), jnp.float32)
    b3 = jnp.zeros((1, out_dims), jnp.float32)
    return (w1, g1, b1, w2, g2, b2, w3, g3, b3)


def reference_mlp(x, params):
    """Pure-JAX reference (same bf16 matmul operands, f32 BN/ReLU)."""
    w1, g1, b1, w2, g2, b2, w3, g3, b3 = params

    def dot_bf16(a, w):
        return jnp.dot(a.astype(jnp.bfloat16), w.astype(jnp.bfloat16),
                       preferred_element_type=jnp.float32)

    def bn(h, g, b):
        mu = h.mean(0, keepdims=True)
        var = ((h - mu) ** 2).mean(0, keepdims=True)
        return (h - mu) * jax.lax.rsqrt(var + BN_EPS) * g + b

    h = jnp.maximum(bn(dot_bf16(x, w1), g1, b1), 0.0)
    h = jnp.maximum(bn(dot_bf16(h, w2), g2, b2), 0.0)
    return bn(dot_bf16(h, w3), g3, b3)


if __name__ == "__main__":
    # Module-consistent small shapes: in_channels=32, channels(hidden)=64, out=16,
    # num_points (batch*points rows) = 1000 — two 512-row tiles with a ragged tail
    # to exercise the multi-tile sweep path and the BN statistic masking.
    in_dims, hidden_dims, out_dims = 32, [64, 64], 16
    num_points = 1000

    key = jax.random.PRNGKey(0)
    kx, kp = jax.random.split(key)
    x = jax.random.normal(kx, (num_points, in_dims), jnp.float32)
    params = make_params(kp, in_dims, hidden_dims, out_dims)

    out = jax.block_until_ready(projection_mlp(x, params, tile_n=512))
    ref = reference_mlp(x, params)

    assert out.shape == (num_points, out_dims)
    max_err = float(jnp.max(jnp.abs(out - ref)))
    assert jnp.allclose(out, ref, atol=1e-2, rtol=1e-2), max_err

    print("KERNEL_OK")
</pallas_src>

<mosaic_0001>
module attributes {stable_mosaic.version = 11 : i64} {
  func.func @kernel(%arg0: i32, %arg1: i32, %arg2: memref<512x32xbf16, #tpu.memory_space<vmem>>, %arg3: memref<32x128xbf16, #tpu.memory_space<vmem>>, %arg4: memref<256x128xbf16, #tpu.memory_space<vmem>>, %arg5: memref<8x128xf32, #tpu.memory_space<vmem>>, %arg6: memref<512x128xf32, #tpu.memory_space<vmem>>, %arg7: memref<1024x128xf32, #tpu.memory_space<vmem>>, %arg8: memref<2x128xf32, #tpu.memory_space<vmem>>, %arg9: memref<2x128xf32, #tpu.memory_space<vmem>>) attributes {dimension_semantics = [#tpu.dimension_semantics<arbitrary>, #tpu.dimension_semantics<arbitrary>], iteration_bounds = array<i64: 4, 2>, scalar_prefetch = 0 : i64, scratch_operands = 3 : i64, tpu.core_type = #tpu.core_type<tc>, window_params = [{transform_indices = @transform_0, window_bounds = array<i64: 512, 32>}, {pipeline_mode = #tpu.pipeline_mode<synchronous>, transform_indices = @transform_1, window_bounds = array<i64: 32, 128>}, {pipeline_mode = #tpu.pipeline_mode<synchronous>, transform_indices = @transform_2, window_bounds = array<i64: 256, 128>}, {pipeline_mode = #tpu.pipeline_mode<synchronous>, transform_indices = @transform_3, window_bounds = array<i64: 8, 128>}, {transform_indices = @transform_4, window_bounds = array<i64: 512, 128>}]} {
    %c512_i32 = arith.constant 512 : i32
    %0 = arith.muli %arg1, %c512_i32 : i32
    %1 = tpu.assume_multiple %0, 512 : i32
    %c0_i32 = arith.constant 0 : i32
    %2 = arith.cmpi eq, %arg1, %c0_i32 : i32
    %c3_i32 = arith.constant 3 : i32
    %3 = arith.cmpi slt, %arg0, %c3_i32 : i32
    %4 = arith.andi %2, %3 : i1
    %5 = arith.extui %4 : i1 to i32
    %c0_i32_0 = arith.constant 0 : i32
    %6 = arith.cmpi ne, %5, %c0_i32_0 : i32
    scf.if %6 {
      %cst = arith.constant 0.000000e+00 : f32
      %19 = vector.broadcast %cst : f32 to vector<2x128xf32>
      %c0 = arith.constant 0 : index
      %c0_7 = arith.constant 0 : index
      %20 = vector.load %arg9[%c0, %c0_7] : memref<2x128xf32, #tpu.memory_space<vmem>>, vector<2x128xf32>
      tpu.vector_store %arg9[%c0, %c0_7], %19 {strides = array<i32>} : memref<2x128xf32, #tpu.memory_space<vmem>>, vector<2x128xf32>,
    } else {
    }
    %c0_i32_1 = arith.constant 0 : i32
    %7 = arith.cmpi eq, %arg0, %c0_i32_1 : i32
    %8 = arith.extui %7 : i1 to i32
    %c0_i32_2 = arith.constant 0 : i32
    %9 = arith.cmpi ne, %8, %c0_i32_2 : i32
    scf.if %9 {
      %c0 = arith.constant 0 : index
      %c0_7 = arith.constant 0 : index
      %19 = vector.load %arg2[%c0, %c0_7] : memref<512x32xbf16, #tpu.memory_space<vmem>>, vector<512x32xbf16>
      %c0_8 = arith.constant 0 : index
      %c0_9 = arith.constant 0 : index
      %20 = vector.load %arg3[%c0_8, %c0_9] : memref<32x128xbf16, #tpu.memory_space<vmem>>, vector<32x128xbf16>
      %cst = arith.constant dense<0.000000e+00> : vector<512x128xf32>
      %21 = tpu.matmul %19, %20, %cst {dimension_numbers = #tpu.dot_dimension_numbers<[1], [0], [0], [1], [0, 0, 1, 1], [], []>} : vector<512x32xbf16>, vector<32x128xbf16>, vector<512x128xf32> -> vector<512x128xf32>
      %22 = arith.index_cast %1 : i32 to index
      %c0_10 = arith.constant 0 : index
      %23 = vector.load %arg7[%22, %c0_10] : memref<1024x128xf32, #tpu.memory_space<vmem>>, vector<512x128xf32>
      tpu.vector_store %arg7[%22, %c0_10], %21 {strides = array<i32>} : memref<1024x128xf32, #tpu.memory_space<vmem>>, vector<512x128xf32>,
      %24 = tpu.iota {dimensions = array<i32: 0>} : vector<512x1xi32>
      %c512_i32_11 = arith.constant 512 : i32
      %25 = arith.muli %arg1, %c512_i32_11 : i32
      %26 = vector.broadcast %25 : i32 to vector<512x1xi32>
      %27 = arith.addi %26, %24 : vector<512x1xi32>
      %c1000_i32 = arith.constant 1000 : i32
      %28 = vector.broadcast %c1000_i32 : i32 to vector<512x1xi32>
      %29 = arith.cmpi slt, %27, %28 : vector<512x1xi32>
      %cst_12 = arith.constant 0.000000e+00 : f32
      %30 = vector.shape_cast %29 : vector<512x1xi1> to vector<512x1xi1>
      %31 = vector.broadcast %30 : vector<512x1xi1> to vector<512x128xi1>
      %32 = vector.broadcast %cst_12 : f32 to vector<512x128xf32>
      %33 = arith.select %31, %21, %32 : vector<512x128xi1>, vector<512x128xf32>
      %c0_13 = arith.constant 0 : index
      %c0_14 = arith.constant 0 : index
      %34 = vector.load %arg9[%c0_13, %c0_14] : memref<2x128xf32, #tpu.memory_space<vmem>>, vector<2x128xf32>
      %cst_15 = arith.constant dense<0.000000e+00> : vector<128xf32>
      %35 = vector.multi_reduction <add>, %33, %cst_15 [0] : vector<512x128xf32> to vector<128xf32>
      %36 = vector.shape_cast %35 : vector<128xf32> to vector<1x128xf32>
      %37 = arith.mulf %33, %33 : vector<512x128xf32>
      %cst_16 = arith.constant dense<0.000000e+00> : vector<128xf32>
      %38 = vector.multi_reduction <add>, %37, %cst_16 [0] : vector<512x128xf32> to vector<128xf32>
      %39 = vector.shape_cast %38 : vector<128xf32> to vector<1x128xf32>
      %40 = tpu.concatenate %36, %39 in 0 : vector<1x128xf32>, vector<1x128xf32> -> vector<2x128xf32>
      %41 = arith.addf %34, %40 : vector<2x128xf32>
      %c0_17 = arith.constant 0 : index
      %c0_18 = arith.constant 0 : index
      %42 = vector.load %arg9[%c0_17, %c0_18] : memref<2x128xf32, #tpu.memory_space<vmem>>, vector<2x128xf32>
      tpu.vector_store %arg9[%c0_17, %c0_18], %41 {strides = array<i32>} : memref<2x128xf32, #tpu.memory_space<vmem>>, vector<2x128xf32>,
      %c1_i32_19 = arith.constant 1 : i32
      %43 = arith.cmpi eq, %arg1, %c1_i32_19 : i32
      %44 = arith.extui %43 : i1 to i32
      %c0_i32_20 = arith.constant 0 : i32
      %45 = arith.cmpi ne, %44, %c0_i32_20 : i32
      scf.if %45 {
        %c0_21 = arith.constant 0 : index
        %c0_22 = arith.constant 0 : index
        %46 = vector.load %arg9[%c0_21, %c0_22] : memref<2x128xf32, #tpu.memory_space<vmem>>, vector<1x128xf32>
        %cst_23 = arith.constant 1.000000e-03 : f32
        %47 = vector.broadcast %cst_23 : f32 to vector<1x128xf32>
        %48 = arith.mulf %46, %47 : vector<1x128xf32>
        %c1 = arith.constant 1 : index
        %c0_24 = arith.constant 0 : index
        %49 = vector.load %arg9[%c1, %c0_24] : memref<2x128xf32, #tpu.memory_space<vmem>>, vector<1x128xf32>
        %cst_25 = arith.constant 1.000000e-03 : f32
        %50 = vector.broadcast %cst_25 : f32 to vector<1x128xf32>
        %51 = arith.mulf %49, %50 : vector<1x128xf32>
        %52 = arith.mulf %48, %48 : vector<1x128xf32>
        %53 = arith.subf %51, %52 : vector<1x128xf32>
        %cst_26 = arith.constant 0.000000e+00 : f32
        %54 = vector.broadcast %cst_26 : f32 to vector<1x128xf32>
        %55 = arith.maximumf %53, %54 : vector<1x128xf32>
        %c0_27 = arith.constant 0 : index
        %c0_28 = arith.constant 0 : index
        %56 = vector.load %arg5[%c0_27, %c0_28] : memref<8x128xf32, #tpu.memory_space<vmem>>, vector<1x128xf32>
        %c1_29 = arith.constant 1 : index
        %c0_30 = arith.constant 0 : index
        %57 = vector.load %arg5[%c1_29, %c0_30] : memref<8x128xf32, #tpu.memory_space<vmem>>, vector<1x128xf32>
        %cst_31 = arith.constant 9.99999974E-6 : f32
        %58 = vector.broadcast %cst_31 : f32 to vector<1x128xf32>
        %59 = arith.addf %55, %58 : vector<1x128xf32>
        %60 = math.rsqrt %59 : vector<1x128xf32>
        %61 = arith.mulf %56, %60 : vector<1x128xf32>
        %c0_32 = arith.constant 0 : index
        %c0_33 = arith.constant 0 : index
        %62 = vector.load %arg8[%c0_32, %c0_33] : memref<2x128xf32, #tpu.memory_space<vmem>>, vector<1x128xf32>
        tpu.vector_store %arg8[%c0_32, %c0_33], %61 {strides = array<i32>} : memref<2x128xf32, #tpu.memory_space<vmem>>, vector<1x128xf32>,
        %63 = arith.mulf %48, %61 : vector<1x128xf32>
        %64 = arith.subf %57, %63 : vector<1x128xf32>
        %c1_34 = arith.constant 1 : index
        %c0_35 = arith.constant 0 : index
        %65 = vector.load %arg8[%c1_34, %c0_35] : memref<2x128xf32, #tpu.memory_space<vmem>>, vector<1x128xf32>
        tpu.vector_store %arg8[%c1_34, %c0_35], %64 {strides = array<i32>} : memref<2x128xf32, #tpu.memory_space<vmem>>, vector<1x128xf32>,
      } else {
      }
    } else {
    }
    %c1_i32 = arith.constant 1 : i32
    %10 = arith.cmpi eq, %arg0, %c1_i32 : i32
    %11 = arith.extui %10 : i1 to i32
    %c0_i32_3 = arith.constant 0 : i32
    %12 = arith.cmpi ne, %11, %c0_i32_3 : i32
    scf.if %12 {
      %19 = arith.index_cast %1 : i32 to index
      %c0 = arith.constant 0 : index
      %20 = vector.load %arg7[%19, %c0] : memref<1024x128xf32, #tpu.memory_space<vmem>>, vector<512x128xf32>
      %c0_7 = arith.constant 0 : index
      %c0_8 = arith.constant 0 : index
      %21 = vector.load %arg8[%c0_7, %c0_8] : memref<2x128xf32, #tpu.memory_space<vmem>>, vector<1x128xf32>
      %22 = vector.broadcast %21 : vector<1x128xf32> to vector<512x128xf32>
      %23 = arith.mulf %20, %22 : vector<512x128xf32>
      %c1 = arith.constant 1 : index
      %c0_9 = arith.constant 0 : index
      %24 = vector.load %arg8[%c1, %c0_9] : memref<2x128xf32, #tpu.memory_space<vmem>>, vector<1x128xf32>
      %25 = vector.broadcast %24 : vector<1x128xf32> to vector<512x128xf32>
      %26 = arith.addf %23, %25 : vector<512x128xf32>
      %cst = arith.constant 0.000000e+00 : f32
      %27 = vector.broadcast %cst : f32 to vector<512x128xf32>
      %28 = arith.maximumf %26, %27 : vector<512x128xf32>
      %29 = arith.truncf %28 : vector<512x128xf32> to vector<512x128xbf16>
      %c0_10 = arith.constant 0 : index
      %c0_11 = arith.constant 0 : index
      %30 = vector.load %arg4[%c0_10, %c0_11] : memref<256x128xbf16, #tpu.memory_space<vmem>>, vector<128x128xbf16>
      %cst_12 = arith.constant dense<0.000000e+00> : vector<512x128xf32>
      %31 = tpu.matmul %29, %30, %cst_12 {dimension_numbers = #tpu.dot_dimension_numbers<[1], [0], [0], [1], [0, 0, 1, 1], [], []>} : vector<512x128xbf16>, vector<128x128xbf16>, vector<512x128xf32> -> vector<512x128xf32>
      %32 = arith.index_cast %1 : i32 to index
      %c0_13 = arith.constant 0 : index
      %33 = vector.load %arg7[%32, %c0_13] : memref<1024x128xf32, #tpu.memory_space<vmem>>, vector<512x128xf32>
      tpu.vector_store %arg7[%32, %c0_13], %31 {strides = array<i32>} : memref<1024x128xf32, #tpu.memory_space<vmem>>, vector<512x128xf32>,
      %34 = tpu.iota {dimensions = array<i32: 0>} : vector<512x1xi32>
      %c512_i32_14 = arith.constant 512 : i32
      %35 = arith.muli %arg1, %c512_i32_14 : i32
      %36 = vector.broadcast %35 : i32 to vector<512x1xi32>
      %37 = arith.addi %36, %34 : vector<512x1xi32>
      %c1000_i32 = arith.constant 1000 : i32
      %38 = vector.broadcast %c1000_i32 : i32 to vector<512x1xi32>
      %39 = arith.cmpi slt, %37, %38 : vector<512x1xi32>
      %cst_15 = arith.constant 0.000000e+00 : f32
      %40 = vector.shape_cast %39 : vector<512x1xi1> to vector<512x1xi1>
      %41 = vector.broadcast %40 : vector<512x1xi1> to vector<512x128xi1>
      %42 = vector.broadcast %cst_15 : f32 to vector<512x128xf32>
      %43 = arith.select %41, %31, %42 : vector<512x128xi1>, vector<512x128xf32>
      %c0_16 = arith.constant 0 : index
      %c0_17 = arith.constant 0 : index
      %44 = vector.load %arg9[%c0_16, %c0_17] : memref<2x128xf32, #tpu.memory_space<vmem>>, vector<2x128xf32>
      %cst_18 = arith.constant dense<0.000000e+00> : vector<128xf32>
      %45 = vector.multi_reduction <add>, %43, %cst_18 [0] : vector<512x128xf32> to vector<128xf32>
      %46 = vector.shape_cast %45 : vector<128xf32> to vector<1x128xf32>
      %47 = arith.mulf %43, %43 : vector<512x128xf32>
      %cst_19 = arith.constant dense<0.000000e+00> : vector<128xf32>
      %48 = vector.multi_reduction <add>, %47, %cst_19 [0] : vector<512x128xf32> to vector<128xf32>
      %49 = vector.shape_cast %48 : vector<128xf32> to vector<1x128xf32>
      %50 = tpu.concatenate %46, %49 in 0 : vector<1x128xf32>, vector<1x128xf32> -> vector<2x128xf32>
      %51 = arith.addf %44, %50 : vector<2x128xf32>
      %c0_20 = arith.constant 0 : index
      %c0_21 = arith.constant 0 : index
      %52 = vector.load %arg9[%c0_20, %c0_21] : memref<2x128xf32, #tpu.memory_space<vmem>>, vector<2x128xf32>
      tpu.vector_store %arg9[%c0_20, %c0_21], %51 {strides = array<i32>} : memref<2x128xf32, #tpu.memory_space<vmem>>, vector<2x128xf32>,
      %c1_i32_22 = arith.constant 1 : i32
      %53 = arith.cmpi eq, %arg1, %c1_i32_22 : i32
      %54 = arith.extui %53 : i1 to i32
      %c0_i32_23 = arith.constant 0 : i32
      %55 = arith.cmpi ne, %54, %c0_i32_23 : i32
      scf.if %55 {
        %c0_24 = arith.constant 0 : index
        %c0_25 = arith.constant 0 : index
        %56 = vector.load %arg9[%c0_24, %c0_25] : memref<2x128xf32, #tpu.memory_space<vmem>>, vector<1x128xf32>
        %cst_26 = arith.constant 1.000000e-03 : f32
        %57 = vector.broadcast %cst_26 : f32 to vector<1x128xf32>
        %58 = arith.mulf %56, %57 : vector<1x128xf32>
        %c1_27 = arith.constant 1 : index
        %c0_28 = arith.constant 0 : index
        %59 = vector.load %arg9[%c1_27, %c0_28] : memref<2x128xf32, #tpu.memory_space<vmem>>, vector<1x128xf32>
        %cst_29 = arith.constant 1.000000e-03 : f32
        %60 = vector.broadcast %cst_29 : f32 to vector<1x128xf32>
        %61 = arith.mulf %59, %60 : vector<1x128xf32>
        %62 = arith.mulf %58, %58 : vector<1x128xf32>
        %63 = arith.subf %61, %62 : vector<1x128xf32>
        %cst_30 = arith.constant 0.000000e+00 : f32
        %64 = vector.broadcast %cst_30 : f32 to vector<1x128xf32>
        %65 = arith.maximumf %63, %64 : vector<1x128xf32>
        %c2 = arith.constant 2 : index
        %c0_31 = arith.constant 0 : index
        %66 = vector.load %arg5[%c2, %c0_31] : memref<8x128xf32, #tpu.memory_space<vmem>>, vector<1x128xf32>
        %c3 = arith.constant 3 : index
        %c0_32 = arith.constant 0 : index
        %67 = vector.load %arg5[%c3, %c0_32] : memref<8x128xf32, #tpu.memory_space<vmem>>, vector<1x128xf32>
        %cst_33 = arith.constant 9.99999974E-6 : f32
        %68 = vector.broadcast %cst_33 : f32 to vector<1x128xf32>
        %69 = arith.addf %65, %68 : vector<1x128xf32>
        %70 = math.rsqrt %69 : vector<1x128xf32>
        %71 = arith.mulf %66, %70 : vector<1x128xf32>
        %c0_34 = arith.constant 0 : index
        %c0_35 = arith.constant 0 : index
        %72 = vector.load %arg8[%c0_34, %c0_35] : memref<2x128xf32, #tpu.memory_space<vmem>>, vector<1x128xf32>
        tpu.vector_store %arg8[%c0_34, %c0_35], %71 {strides = array<i32>} : memref<2x128xf32, #tpu.memory_space<vmem>>, vector<1x128xf32>,
        %73 = arith.mulf %58, %71 : vector<1x128xf32>
        %74 = arith.subf %67, %73 : vector<1x128xf32>
        %c1_36 = arith.constant 1 : index
        %c0_37 = arith.constant 0 : index
        %75 = vector.load %arg8[%c1_36, %c0_37] : memref<2x128xf32, #tpu.memory_space<vmem>>, vector<1x128xf32>
        tpu.vector_store %arg8[%c1_36, %c0_37], %74 {strides = array<i32>} : memref<2x128xf32, #tpu.memory_space<vmem>>, vector<1x128xf32>,
      } else {
      }
    } else {
    }
    %c2_i32 = arith.constant 2 : i32
    %13 = arith.cmpi eq, %arg0, %c2_i32 : i32
    %14 = arith.extui %13 : i1 to i32
    %c0_i32_4 = arith.constant 0 : i32
    %15 = arith.cmpi ne, %14, %c0_i32_4 : i32
    scf.if %15 {
      %19 = arith.index_cast %1 : i32 to index
      %c0 = arith.constant 0 : index
      %20 = vector.load %arg7[%19, %c0] : memref<1024x128xf32, #tpu.memory_space<vmem>>, vector<512x128xf32>
      %c0_7 = arith.constant 0 : index
      %c0_8 = arith.constant 0 : index
      %21 = vector.load %arg8[%c0_7, %c0_8] : memref<2x128xf32, #tpu.memory_space<vmem>>, vector<1x128xf32>
      %22 = vector.broadcast %21 : vector<1x128xf32> to vector<512x128xf32>
      %23 = arith.mulf %20, %22 : vector<512x128xf32>
      %c1 = arith.constant 1 : index
      %c0_9 = arith.constant 0 : index
      %24 = vector.load %arg8[%c1, %c0_9] : memref<2x128xf32, #tpu.memory_space<vmem>>, vector<1x128xf32>
      %25 = vector.broadcast %24 : vector<1x128xf32> to vector<512x128xf32>
      %26 = arith.addf %23, %25 : vector<512x128xf32>
      %cst = arith.constant 0.000000e+00 : f32
      %27 = vector.broadcast %cst : f32 to vector<512x128xf32>
      %28 = arith.maximumf %26, %27 : vector<512x128xf32>
      %29 = arith.truncf %28 : vector<512x128xf32> to vector<512x128xbf16>
      %c128 = arith.constant 128 : index
      %c0_10 = arith.constant 0 : index
      %30 = vector.load %arg4[%c128, %c0_10] : memref<256x128xbf16, #tpu.memory_space<vmem>>, vector<128x128xbf16>
      %cst_11 = arith.constant dense<0.000000e+00> : vector<512x128xf32>
      %31 = tpu.matmul %29, %30, %cst_11 {dimension_numbers = #tpu.dot_dimension_numbers<[1], [0], [0], [1], [0, 0, 1, 1], [], []>} : vector<512x128xbf16>, vector<128x128xbf16>, vector<512x128xf32> -> vector<512x128xf32>
      %32 = arith.index_cast %1 : i32 to index
      %c0_12 = arith.constant 0 : index
      %33 = vector.load %arg7[%32, %c0_12] : memref<1024x128xf32, #tpu.memory_space<vmem>>, vector<512x128xf32>
      tpu.vector_store %arg7[%32, %c0_12], %31 {strides = array<i32>} : memref<1024x128xf32, #tpu.memory_space<vmem>>, vector<512x128xf32>,
      %34 = tpu.iota {dimensions = array<i32: 0>} : vector<512x1xi32>
      %c512_i32_13 = arith.constant 512 : i32
      %35 = arith.muli %arg1, %c512_i32_13 : i32
      %36 = vector.broadcast %35 : i32 to vector<512x1xi32>
      %37 = arith.addi %36, %34 : vector<512x1xi32>
      %c1000_i32 = arith.constant 1000 : i32
      %38 = vector.broadcast %c1000_i32 : i32 to vector<512x1xi32>
      %39 = arith.cmpi slt, %37, %38 : vector<512x1xi32>
      %cst_14 = arith.constant 0.000000e+00 : f32
      %40 = vector.shape_cast %39 : vector<512x1xi1> to vector<512x1xi1>
      %41 = vector.broadcast %40 : vector<512x1xi1> to vector<512x128xi1>
      %42 = vector.broadcast %cst_14 : f32 to vector<512x128xf32>
      %43 = arith.select %41, %31, %42 : vector<512x128xi1>, vector<512x128xf32>
      %c0_15 = arith.constant 0 : index
      %c0_16 = arith.constant 0 : index
      %44 = vector.load %arg9[%c0_15, %c0_16] : memref<2x128xf32, #tpu.memory_space<vmem>>, vector<2x128xf32>
      %cst_17 = arith.constant dense<0.000000e+00> : vector<128xf32>
      %45 = vector.multi_reduction <add>, %43, %cst_17 [0] : vector<512x128xf32> to vector<128xf32>
      %46 = vector.shape_cast %45 : vector<128xf32> to vector<1x128xf32>
      %47 = arith.mulf %43, %43 : vector<512x128xf32>
      %cst_18 = arith.constant dense<0.000000e+00> : vector<128xf32>
      %48 = vector.multi_reduction <add>, %47, %cst_18 [0] : vector<512x128xf32> to vector<128xf32>
      %49 = vector.shape_cast %48 : vector<128xf32> to vector<1x128xf32>
      %50 = tpu.concatenate %46, %49 in 0 : vector<1x128xf32>, vector<1x128xf32> -> vector<2x128xf32>
      %51 = arith.addf %44, %50 : vector<2x128xf32>
      %c0_19 = arith.constant 0 : index
      %c0_20 = arith.constant 0 : index
      %52 = vector.load %arg9[%c0_19, %c0_20] : memref<2x128xf32, #tpu.memory_space<vmem>>, vector<2x128xf32>
      tpu.vector_store %arg9[%c0_19, %c0_20], %51 {strides = array<i32>} : memref<2x128xf32, #tpu.memory_space<vmem>>, vector<2x128xf32>,
      %c1_i32_21 = arith.constant 1 : i32
      %53 = arith.cmpi eq, %arg1, %c1_i32_21 : i32
      %54 = arith.extui %53 : i1 to i32
      %c0_i32_22 = arith.constant 0 : i32
      %55 = arith.cmpi ne, %54, %c0_i32_22 : i32
      scf.if %55 {
        %c0_23 = arith.constant 0 : index
        %c0_24 = arith.constant 0 : index
        %56 = vector.load %arg9[%c0_23, %c0_24] : memref<2x128xf32, #tpu.memory_space<vmem>>, vector<1x128xf32>
        %cst_25 = arith.constant 1.000000e-03 : f32
        %57 = vector.broadcast %cst_25 : f32 to vector<1x128xf32>
        %58 = arith.mulf %56, %57 : vector<1x128xf32>
        %c1_26 = arith.constant 1 : index
        %c0_27 = arith.constant 0 : index
        %59 = vector.load %arg9[%c1_26, %c0_27] : memref<2x128xf32, #tpu.memory_space<vmem>>, vector<1x128xf32>
        %cst_28 = arith.constant 1.000000e-03 : f32
        %60 = vector.broadcast %cst_28 : f32 to vector<1x128xf32>
        %61 = arith.mulf %59, %60 : vector<1x128xf32>
        %62 = arith.mulf %58, %58 : vector<1x128xf32>
        %63 = arith.subf %61, %62 : vector<1x128xf32>
        %cst_29 = arith.constant 0.000000e+00 : f32
        %64 = vector.broadcast %cst_29 : f32 to vector<1x128xf32>
        %65 = arith.maximumf %63, %64 : vector<1x128xf32>
        %c4 = arith.constant 4 : index
        %c0_30 = arith.constant 0 : index
        %66 = vector.load %arg5[%c4, %c0_30] : memref<8x128xf32, #tpu.memory_space<vmem>>, vector<1x128xf32>
        %c5 = arith.constant 5 : index
        %c0_31 = arith.constant 0 : index
        %67 = vector.load %arg5[%c5, %c0_31] : memref<8x128xf32, #tpu.memory_space<vmem>>, vector<1x128xf32>
        %cst_32 = arith.constant 9.99999974E-6 : f32
        %68 = vector.broadcast %cst_32 : f32 to vector<1x128xf32>
        %69 = arith.addf %65, %68 : vector<1x128xf32>
        %70 = math.rsqrt %69 : vector<1x128xf32>
        %71 = arith.mulf %66, %70 : vector<1x128xf32>
        %c0_33 = arith.constant 0 : index
        %c0_34 = arith.constant 0 : index
        %72 = vector.load %arg8[%c0_33, %c0_34] : memref<2x128xf32, #tpu.memory_space<vmem>>, vector<1x128xf32>
        tpu.vector_store %arg8[%c0_33, %c0_34], %71 {strides = array<i32>} : memref<2x128xf32, #tpu.memory_space<vmem>>, vector<1x128xf32>,
        %73 = arith.mulf %58, %71 : vector<1x128xf32>
        %74 = arith.subf %67, %73 : vector<1x128xf32>
        %c1_35 = arith.constant 1 : index
        %c0_36 = arith.constant 0 : index
        %75 = vector.load %arg8[%c1_35, %c0_36] : memref<2x128xf32, #tpu.memory_space<vmem>>, vector<1x128xf32>
        tpu.vector_store %arg8[%c1_35, %c0_36], %74 {strides = array<i32>} : memref<2x128xf32, #tpu.memory_space<vmem>>, vector<1x128xf32>,
      } else {
      }
    } else {
    }
    %c3_i32_5 = arith.constant 3 : i32
    %16 = arith.cmpi eq, %arg0, %c3_i32_5 : i32
    %17 = arith.extui %16 : i1 to i32
    %c0_i32_6 = arith.constant 0 : i32
    %18 = arith.cmpi ne, %17, %c0_i32_6 : i32
    scf.if %18 {
      %19 = arith.index_cast %1 : i32 to index
      %c0 = arith.constant 0 : index
      %20 = vector.load %arg7[%19, %c0] : memref<1024x128xf32, #tpu.memory_space<vmem>>, vector<512x128xf32>
      %c0_7 = arith.constant 0 : index
      %c0_8 = arith.constant 0 : index
      %21 = vector.load %arg8[%c0_7, %c0_8] : memref<2x128xf32, #tpu.memory_space<vmem>>, vector<1x128xf32>
      %22 = vector.broadcast %21 : vector<1x128xf32> to vector<512x128xf32>
      %23 = arith.mulf %20, %22 : vector<512x128xf32>
      %c1 = arith.constant 1 : index
      %c0_9 = arith.constant 0 : index
      %24 = vector.load %arg8[%c1, %c0_9] : memref<2x128xf32, #tpu.memory_space<vmem>>, vector<1x128xf32>
      %25 = vector.broadcast %24 : vector<1x128xf32> to vector<512x128xf32>
      %26 = arith.addf %23, %25 : vector<512x128xf32>
      %c0_10 = arith.constant 0 : index
      %c0_11 = arith.constant 0 : index
      %27 = vector.load %arg6[%c0_10, %c0_11] : memref<512x128xf32, #tpu.memory_space<vmem>>, vector<512x128xf32>
      tpu.vector_store %arg6[%c0_10, %c0_11], %26 {strides = array<i32>} : memref<512x128xf32, #tpu.memory_space<vmem>>, vector<512x128xf32>,
    } else {
    }
    return
  }
  func.func @transform_0(%arg0: i32, %arg1: i32) -> (i32, i32) {
    %c0_i32 = arith.constant 0 : i32
    %0 = arith.cmpi eq, %arg0, %c0_i32 : i32
    %c0_i32_0 = arith.constant 0 : i32
    %1 = arith.select %0, %arg1, %c0_i32_0 : i32
    %c0_i32_1 = arith.constant 0 : i32
    %c0_i32_2 = arith.constant 0 : i32
    return %1, %c0_i32_1 : i32, i32
  }
  func.func @transform_1(%arg0: i32, %arg1: i32) -> (i32, i32) {
    %c0_i32 = arith.constant 0 : i32
    %c0_i32_0 = arith.constant 0 : i32
    %c0_i32_1 = arith.constant 0 : i32
    return %c0_i32, %c0_i32_0 : i32, i32
  }
  func.func @transform_2(%arg0: i32, %arg1: i32) -> (i32, i32) {
    %c0_i32 = arith.constant 0 : i32
    %c0_i32_0 = arith.constant 0 : i32
    %c0_i32_1 = arith.constant 0 : i32
    return %c0_i32, %c0_i32_0 : i32, i32
  }
  func.func @transform_3(%arg0: i32, %arg1: i32) -> (i32, i32) {
    %c0_i32 = arith.constant 0 : i32
    %c0_i32_0 = arith.constant 0 : i32
    %c0_i32_1 = arith.constant 0 : i32
    return %c0_i32, %c0_i32_0 : i32, i32
  }
  func.func @transform_4(%arg0: i32, %arg1: i32) -> (i32, i32) {
    %c3_i32 = arith.constant 3 : i32
    %0 = arith.cmpi eq, %arg0, %c3_i32 : i32
    %c0_i32 = arith.constant 0 : i32
    %1 = arith.select %0, %arg1, %c0_i32 : i32
    %c0_i32_0 = arith.constant 0 : i32
    %c0_i32_1 = arith.constant 0 : i32
    return %1, %c0_i32_0 : i32, i32
  }
}

</mosaic_0001>

<llo_original>
// kernel: tpu_custom_call.1
$region0: #{tpu_custom_call.1}
  #allocation0 [shape = 'u32[]', space=smem, size = 0x4, offset = 0x4, fixed_abs, tag = 'smem constant byte address 0x4 - core index']
  #allocation1 [shape = 'u32[72,128]{1,0:T(1,128)}', space=vmem, size = 0x9000, scoped, tag = 'internal scratch']
  #allocation2 [shape = 'f32[1024,128]{1,0:T(8,128)}', space=vmem, size = 0x80000, scoped, tag = 'scratch operand']
  #allocation3 [shape = 'f32[2,128]{1,0:T(2,128)}', space=vmem, size = 0x400, scoped, tag = 'scratch operand']
  #allocation4 [shape = 'f32[2,128]{1,0:T(2,128)}', space=vmem, size = 0x400, scoped, tag = 'scratch operand']
  %s0 = inlined_call_operand.vmem [shape: bf16[1024,32], index: 0, kind: input, shape index: {}]
  %s1 = inlined_call_operand.vmem [shape: bf16[32,128], index: 1, kind: input, shape index: {}]
  %s2 = inlined_call_operand.vmem [shape: bf16[256,128], index: 2, kind: input, shape index: {}]
  %s3 = inlined_call_operand.vmem [shape: f32[8,128], index: 3, kind: input, shape index: {}]
  %s4 = inlined_call_operand.hbm [shape: f32[1024,128], index: 4, kind: output, shape index: {}]
  %s5 = sld [smem:[#allocation0]]
  $region81: #{tpu_custom_call.1} parent=0
    _
  %s7 = ssub.s32 1, %s5
  %s8 = scalar_select 0, %s7, %s5
  $region1: #{tpu_custom_call.1} parent=0
    #allocation5 [shape = 'u8[524288]{0}', space=vmem, size = 0x80000, scoped, tag = 'output window, operand 0']
    #allocation6 [shape = 's32[2]{0}', space=sflag, size = 0x8, scoped, tag = 'scoped memory for tpu_custom_call.1']
    %9 = vsyncpa [#allocation6], 0
    %s10 = scalar_lea.sflag [#allocation6], 1
    %11 = vsyncpa %s10, 0
    loop: start=0, step=1, limit=10
    $region2: #{tpu_custom_call.1} parent=1 // loop_pre_header
      _
    $region3: #{tpu_custom_call.1} parent=1 // loop_header
      %s13 = sphi 0, %s17
      %p14 = scmp.ge.s32.totalorder %s13, 10
      %s20 = sphi 0, %s32
      %s21 = sphi 0, %s28
      %s22 = sphi 0, %s20
      %s23 = sphi 0, %s21
      %s24 = sphi 0, %s22
      %s25 = sphi 0, %s23
      %s39 = sphi 0, %s41
      %s42 = sphi 0, %s39
      %s43 = sphi 0, %s42
      %s59 = sphi 0, %s43
      %s63 = sphi 0, %s63
      %s65 = sphi 0, %s63
      %s66 = sphi 0, %s65
      %s80 = sphi 0, %s66
      %s84 = sphi 0, %s84
      %s86 = sphi 0, %s84
      %s87 = sphi 0, %s86
      %s101 = sphi 0, %s87
      %s105 = sphi 0, %s105
      %s107 = sphi 0, %s105
      %s108 = sphi 0, %s107
      %s122 = sphi 0, %s108
      %s132 = sphi 0, %s134
      %s135 = sphi 0, %s132
      %s136 = sphi 0, %s135
      %s152 = sphi 0, %s136
    $region4: #{tpu_custom_call.1} parent=1 // loop_header_branch
      %16 = sbr.rel (%p14) target = $region8
    $region5: #{tpu_custom_call.1} parent=1 // loop_body
      %s18 = ssub.s32 %s13, 1
      %s19 = ssub.s32 %s13, 2
      %s26 = sadd.s32 1, %s21
      %p27 = scmp.ge.s32.totalorder %s26, 2
      %s28 = scalar_select %p27, 0, %s26
      %s29 = sadd.s32 1, %s20
      %s30 = scalar_select %p27, %s29, %s20
      %p31 = scmp.ge.s32.totalorder %s30, 4
      %s32 = scalar_select %p31, 0, %s30
      %p33 = scmp.eq.s32.totalorder %s20, 0
      %s34 = scalar_select %p33, %s21, 0
      %p35 = scmp.eq.s32.totalorder %s32, 0
      %s36 = scalar_select %p35, %s28, 0
      %s37 = ssub.s32 %s34, %s36
      %p38 = scmp.eq.s32.totalorder %s37, 0
      %s40 = sadd.s32 %s39, 1
      %s41 = scalar_select %p38, %s39, %s40
      %p44 = pneg %p38
      %p45 = scmp.eq.s32.totalorder %s13, 7
      %p46 = por %p44, %p45
      %p47 = scmp.ne.s32.totalorder %s39, %s42
      %p48 = scmp.eq.s32.totalorder %s13, 0
      %p49 = por %p47, %p48
      %p50 = scmp.ne.s32.totalorder %s39, %s42
      %p51 = scmp.eq.s32.totalorder %s18, 7
      %p52 = por %p50, %p51
      %p53 = scmp.ne.s32.totalorder %s42, %s43
      %p54 = scmp.eq.s32.totalorder %s18, 0
      %p55 = por %p53, %p54
      %p56 = scmp.ne.s32.totalorder %s42, %s43
      %p57 = scmp.eq.s32.totalorder %s19, 7
      %p58 = por %p56, %p57
      %p60 = scmp.ne.s32.totalorder %s43, %s59
      %p61 = scmp.eq.s32.totalorder %s19, 0
      %p62 = por %p60, %p61
      %s64 = sadd.s32 %s63, 1
      %p67 = scmp.eq.s32.totalorder %s13, 7
      %p68 = scmp.ne.s32.totalorder %s63, %s65
      %p69 = scmp.eq.s32.totalorder %s13, 0
      %p70 = por %p68, %p69
      %p71 = scmp.ne.s32.totalorder %s63, %s65
      %p72 = scmp.eq.s32.totalorder %s18, 7
      %p73 = por %p71, %p72
      %p74 = scmp.ne.s32.totalorder %s65, %s66
      %p75 = scmp.eq.s32.totalorder %s18, 0
      %p76 = por %p74, %p75
      %p77 = scmp.ne.s32.totalorder %s65, %s66
      %p78 = scmp.eq.s32.totalorder %s19, 7
      %p79 = por %p77, %p78
      %p81 = scmp.ne.s32.totalorder %s66, %s80
      %p82 = scmp.eq.s32.totalorder %s19, 0
      %p83 = por %p81, %p82
      %s85 = sadd.s32 %s84, 1
      %p88 = scmp.eq.s32.totalorder %s13, 7
      %p89 = scmp.ne.s32.totalorder %s84, %s86
      %p90 = scmp.eq.s32.totalorder %s13, 0
      %p91 = por %p89, %p90
      %p92 = scmp.ne.s32.totalorder %s84, %s86
      %p93 = scmp.eq.s32.totalorder %s18, 7
      %p94 = por %p92, %p93
      %p95 = scmp.ne.s32.totalorder %s86, %s87
      %p96 = scmp.eq.s32.totalorder %s18, 0
      %p97 = por %p95, %p96
      %p98 = scmp.ne.s32.totalorder %s86, %s87
      %p99 = scmp.eq.s32.totalorder %s19, 7
      %p100 = por %p98, %p99
      %p102 = scmp.ne.s32.totalorder %s87, %s101
      %p103 = scmp.eq.s32.totalorder %s19, 0
      %p104 = por %p102, %p103
      %s106 = sadd.s32 %s105, 1
      %p109 = scmp.eq.s32.totalorder %s13, 7
      %p110 = scmp.ne.s32.totalorder %s105, %s107
      %p111 = scmp.eq.s32.totalorder %s13, 0
      %p112 = por %p110, %p111
      %p113 = scmp.ne.s32.totalorder %s105, %s107
      %p114 = scmp.eq.s32.totalorder %s18, 7
      %p115 = por %p113, %p114
      %p116 = scmp.ne.s32.totalorder %s107, %s108
      %p117 = scmp.eq.s32.totalorder %s18, 0
      %p118 = por %p116, %p117
      %p119 = scmp.ne.s32.totalorder %s107, %s108
      %p120 = scmp.eq.s32.totalorder %s19, 7
      %p121 = por %p119, %p120
      %p123 = scmp.ne.s32.totalorder %s108, %s122
      %p124 = scmp.eq.s32.totalorder %s19, 0
      %p125 = por %p123, %p124
      %p126 = scmp.eq.s32.totalorder %s20, 3
      %s127 = scalar_select %p126, %s21, 0
      %p128 = scmp.eq.s32.totalorder %s32, 3
      %s129 = scalar_select %p128, %s28, 0
      %s130 = ssub.s32 %s127, %s129
      %p131 = scmp.eq.s32.totalorder %s130, 0
      %s133 = sadd.s32 %s132, 1
      %s134 = scalar_select %p131, %s132, %s133
      %p137 = pneg %p131
      %p138 = scmp.eq.s32.totalorder %s13, 7
      %p139 = por %p137, %p138
      %p140 = scmp.ne.s32.totalorder %s132, %s135
      %p141 = scmp.eq.s32.totalorder %s13, 0
      %p142 = por %p140, %p141
      %p143 = scmp.ne.s32.totalorder %s132, %s135
      %p144 = scmp.eq.s32.totalorder %s18, 7
      %p145 = por %p143, %p144
      %p146 = scmp.ne.s32.totalorder %s135, %s136
      %p147 = scmp.eq.s32.totalorder %s18, 0
      %p148 = por %p146, %p147
      %p149 = scmp.ne.s32.totalorder %s135, %s136
      %p150 = scmp.eq.s32.totalorder %s19, 7
      %p151 = por %p149, %p150
      %p153 = scmp.ne.s32.totalorder %s136, %s152
      %p154 = scmp.eq.s32.totalorder %s19, 0
      %p155 = por %p153, %p154
      %p156 = scmp.le.s32.totalorder 1, %s13
      %p157 = scmp.lt.s32.totalorder %s13, 9
      %p158 = pnand %p156, %p157
      %p159 = pneg %p158
      // Predicated region
      $region9: #{tpu_custom_call.1} parent=5 // pred_check
        _
      $region10: #{tpu_custom_call.1} parent=5 // pred_check_branch
        %161 = sbr.rel (%p158) target = $region12
      $region11: #{tpu_custom_call.1} parent=5 // pred_region
        %s162 = ssub.s32 %s13, 1
        // Predicated region
        $region13: #{tpu_custom_call.1} parent=11 // pred_check
          %p163 = pneg %p76
        $region14: #{tpu_custom_call.1} parent=11 // pred_check_branch
          %165 = sbr.rel (%p163) target = $region16
        $region15: #{tpu_custom_call.1} parent=11 // pred_region
          _
        $region16: #{tpu_custom_call.1} parent=11 // pred_fallthru
          _
        // Predicated region
        $region17: #{tpu_custom_call.1} parent=11 // pred_check
          %p166 = pneg %p97
        $region18: #{tpu_custom_call.1} parent=11 // pred_check_branch
          %168 = sbr.rel (%p166) target = $region20
        $region19: #{tpu_custom_call.1} parent=11 // pred_region
          _
        $region20: #{tpu_custom_call.1} parent=11 // pred_fallthru
          _
        // Predicated region
        $region21: #{tpu_custom_call.1} parent=11 // pred_check
          %p169 = pneg %p118
        $region22: #{tpu_custom_call.1} parent=11 // pred_check_branch
          %171 = sbr.rel (%p169) target = $region24
        $region23: #{tpu_custom_call.1} parent=11 // pred_region
          _
        $region24: #{tpu_custom_call.1} parent=11 // pred_fallthru
          _
      $region12: #{tpu_custom_call.1} parent=5 // pred_fallthru
        _
      %p172 = scmp.lt.s32.totalorder %s13, 8
      // Predicated region
      $region25: #{tpu_custom_call.1} parent=5 // pred_check
        %p173 = pneg %p172
      $region26: #{tpu_custom_call.1} parent=5 // pred_check_branch
        %175 = sbr.rel (%p173) target = $region28
      $region27: #{tpu_custom_call.1} parent=5 // pred_region
        // Predicated region
        $region29: #{tpu_custom_call.1} parent=27 // pred_check
          %p176 = pneg %p49
        $region30: #{tpu_custom_call.1} parent=27 // pred_check_branch
          %178 = sbr.rel (%p176) target = $region32
        $region31: #{tpu_custom_call.1} parent=27 // pred_region
          %p179 = scmp.eq.s32.totalorder %s20, 0
          %s180 = scalar_select %p179, %s21, 0
          %s181 = smul.u32 64, %s180
          %p182 = scmp.lt.s32.totalorder %s181, 127
          %s183 = scalar_select %p182, %s181, 127
          %s184 = smul.addr %s183, 4
          %s185 = scalar_lea.vmem %s0, %s184
          %p186 = scmp.eq.s32.totalorder %s20, 0
          %s187 = scalar_select %p186, %s21, 0
          %s188 = smul.u32 64, %s187
        $region32: #{tpu_custom_call.1} parent=27 // pred_fallthru
          _
      $region28: #{tpu_custom_call.1} parent=5 // pred_fallthru
        _
      %p189 = scmp.le.s32.totalorder 1, %s13
      %p190 = scmp.lt.s32.totalorder %s13, 9
      %p191 = pnand %p189, %p190
      %p192 = pneg %p191
      // Predicated region
      $region33: #{tpu_custom_call.1} parent=5 // pred_check
        _
      $region34: #{tpu_custom_call.1} parent=5 // pred_check_branch
        %194 = sbr.rel (%p191) target = $region36
      $region35: #{tpu_custom_call.1} parent=5 // pred_region
        %s195 = ssub.s32 %s13, 1
        %p196 = scmp.eq.s32.totalorder %s22, 0
        %s197 = scalar_select %p196, %s23, 0
        %s198 = smul.u32 64, %s197
        %p199 = scmp.lt.s32.totalorder %s198, 127
        %s200 = scalar_select %p199, %s198, 127
        %s201 = smul.addr %s200, 4
        %s202 = scalar_lea.vmem %s0, %s201
        %p203 = pneg %p55
        %p204 = pneg %p52
        %p205 = pneg %p76
        %p206 = pneg %p73
        %p207 = pneg %p97
        %p208 = pneg %p94
        %p209 = pneg %p118
        %p210 = pneg %p115
        %p211 = pneg %p148
        %p212 = pneg %p145
        %s213 = sand.u32 %s135, 1
        %s214 = scalar_lea.sflag [#allocation6], %s213
        %s215 = sand.u32 %s135, 1
        %s216 = smul.addr %s215, 512
        %s217 = scalar_lea.vmem [#allocation5], %s216
        %p218 = scmp.eq.s32.totalorder %s22, 0
        %s219 = scalar_select %p218, %s23, 0
        %s220 = smul.u32 64, %s219
        %p221 = scmp.lt.s32.totalorder %s220, 127
        %s222 = scalar_select %p221, %s220, 127
        %s223 = smul.addr %s222, 4
        %s224 = scalar_lea.vmem %s0, %s223
        %p225 = scmp.eq.s32.totalorder %s22, 0
        %s226 = scalar_select %p225, %s23, 0
        %s227 = smul.u32 64, %s226
        %p228 = scmp.eq.s32.totalorder %s22, 3
        %s229 = scalar_select %p228, %s23, 0
        %s230 = smul.u32 64, %s229
        %s232 = smul.u32 %s23, 512
        %p233 = scmp.eq.s32.totalorder %s23, 0
        %p234 = scmp.lt.s32.totalorder %s22, 3
        %p235 = pnand %p233, %p234
        %p236 = pneg %p235
        // Predicated region
        $region37: #{tpu_custom_call.1} parent=35 // pred_check
          _
        $region38: #{tpu_custom_call.1} parent=35 // pred_check_branch
          %238 = sbr.rel (%p235) target = $region40
        $region39: #{tpu_custom_call.1} parent=35 // pred_region
          %239 = vst [vmem:[#allocation4] sm:$0x3] 0.0
        $region40: #{tpu_custom_call.1} parent=35 // pred_fallthru
          _
        %p240 = scmp.eq.s32.totalorder %s22, 0
        // Predicated region
        $region41: #{tpu_custom_call.1} parent=35 // pred_check
          %p241 = pneg %p240
        $region42: #{tpu_custom_call.1} parent=35 // pred_check_branch
          %243 = sbr.rel (%p241) target = $region44
        $region43: #{tpu_custom_call.1} parent=35 // pred_region
          %v244 = vld [vmem:[%s224] sm:$0xf]
          %v245 = vld [vmem:[%s224 + $0x4] sm:$0xf]
          %v246 = vld [vmem:[%s224 + $0x8] sm:$0xf]
          %v247 = vld [vmem:[%s224 + $0xc] sm:$0xf]
          %v248 = vld [vmem:[%s224 + $0x10] sm:$0xf]
          %v249 = vld [vmem:[%s224 + $0x14] sm:$0xf]
          %v250 = vld [vmem:[%s224 + $0x18] sm:$0xf]
          %v251 = vld [vmem:[%s224 + $0x1c] sm:$0xf]
          %v252 = vld [vmem:[%s224 + $0x20] sm:$0xf]
          %v253 = vld [vmem:[%s224 + $0x24] sm:$0xf]
          %v254 = vld [vmem:[%s224 + $0x28] sm:$0xf]
          %v255 = vld [vmem:[%s224 + $0x2c] sm:$0xf]
          %v256 = vld [vmem:[%s224 + $0x30] sm:$0xf]
          %v257 = vld [vmem:[%s224 + $0x34] sm:$0xf]
          %v258 = vld [vmem:[%s224 + $0x38] sm:$0xf]
          %v259 = vld [vmem:[%s224 + $0x3c] sm:$0xf]
          %v260 = vld [vmem:[%s224 + $0x40] sm:$0xf]
          %v261 = vld [vmem:[%s224 + $0x44] sm:$0xf]
          %v262 = vld [vmem:[%s224 + $0x48] sm:$0xf]
          %v263 = vld [vmem:[%s224 + $0x4c] sm:$0xf]
          %v264 = vld [vmem:[%s224 + $0x50] sm:$0xf]
          %v265 = vld [vmem:[%s224 + $0x54] sm:$0xf]
          %v266 = vld [vmem:[%s224 + $0x58] sm:$0xf]
          %v267 = vld [vmem:[%s224 + $0x5c] sm:$0xf]
          %v268 = vld [vmem:[%s224 + $0x60] sm:$0xf]
          %v269 = vld [vmem:[%s224 + $0x64] sm:$0xf]
          %v270 = vld [vmem:[%s224 + $0x68] sm:$0xf]
          %v271 = vld [vmem:[%s224 + $0x6c] sm:$0xf]
          %v272 = vld [vmem:[%s224 + $0x70] sm:$0xf]
          %v273 = vld [vmem:[%s224 + $0x74] sm:$0xf]
          %v274 = vld [vmem:[%s224 + $0x78] sm:$0xf]
          %v275 = vld [vmem:[%s224 + $0x7c] sm:$0xf]
          %v276 = vld [vmem:[%s224 + $0x80] sm:$0xf]
          %v277 = vld [vmem:[%s224 + $0x84] sm:$0xf]
          %v278 = vld [vmem:[%s224 + $0x88] sm:$0xf]
          %v279 = vld [vmem:[%s224 + $0x8c] sm:$0xf]
          %v280 = vld [vmem:[%s224 + $0x90] sm:$0xf]
          %v281 = vld [vmem:[%s224 + $0x94] sm:$0xf]
          %v282 = vld [vmem:[%s224 + $0x98] sm:$0xf]
          %v283 = vld [vmem:[%s224 + $0x9c] sm:$0xf]
          %v284 = vld [vmem:[%s224 + $0xa0] sm:$0xf]
          %v285 = vld [vmem:[%s224 + $0xa4] sm:$0xf]
          %v286 = vld [vmem:[%s224 + $0xa8] sm:$0xf]
          %v287 = vld [vmem:[%s224 + $0xac] sm:$0xf]
          %v288 = vld [vmem:[%s224 + $0xb0] sm:$0xf]
          %v289 = vld [vmem:[%s224 + $0xb4] sm:$0xf]
          %v290 = vld [vmem:[%s224 + $0xb8] sm:$0xf]
          %v291 = vld [vmem:[%s224 + $0xbc] sm:$0xf]
          %v292 = vld [vmem:[%s224 + $0xc0] sm:$0xf]
          %v293 = vld [vmem:[%s224 + $0xc4] sm:$0xf]
          %v294 = vld [vmem:[%s224 + $0xc8] sm:$0xf]
          %v295 = vld [vmem:[%s224 + $0xcc] sm:$0xf]
          %v296 = vld [vmem:[%s224 + $0xd0] sm:$0xf]
          %v297 = vld [vmem:[%s224 + $0xd4] sm:$0xf]
          %v298 = vld [vmem:[%s224 + $0xd8] sm:$0xf]
          %v299 = vld [vmem:[%s224 + $0xdc] sm:$0xf]
          %v300 = vld [vmem:[%s224 + $0xe0] sm:$0xf]
          %v301 = vld [vmem:[%s224 + $0xe4] sm:$0xf]
          %v302 = vld [vmem:[%s224 + $0xe8] sm:$0xf]
          %v303 = vld [vmem:[%s224 + $0xec] sm:$0xf]
          %v304 = vld [vmem:[%s224 + $0xf0] sm:$0xf]
          %v305 = vld [vmem:[%s224 + $0xf4] sm:$0xf]
          %v306 = vld [vmem:[%s224 + $0xf8] sm:$0xf]
          %v307 = vld [vmem:[%s224 + $0xfc] sm:$0xf]
          %v308 = vld [vmem:[%s1] sm:$0xf]
          %v309 = vld [vmem:[%s1 + $0x4] sm:$0xf]
          %v310 = vld [vmem:[%s1 + $0x8] sm:$0xf]
          %v311 = vld [vmem:[%s1 + $0xc] sm:$0xf]
          %v376 = vunpack.c.l.b16 %v244
          %v377 = vunpack.c.l.b16 %v245
          %v378 = vunpack.c.l.b16 %v246
          %v379 = vunpack.c.l.b16 %v247
          %v380 = vunpack.c.l.b16 %v248
          %v381 = vunpack.c.l.b16 %v249
          %v382 = vunpack.c.l.b16 %v250
          %v383 = vunpack.c.l.b16 %v251
          %v384 = vunpack.c.l.b16 %v252
          %v385 = vunpack.c.l.b16 %v253
          %v386 = vunpack.c.l.b16 %v254
          %v387 = vunpack.c.l.b16 %v255
          %v388 = vunpack.c.l.b16 %v256
          %v389 = vunpack.c.l.b16 %v257
          %v390 = vunpack.c.l.b16 %v258
          %v391 = vunpack.c.l.b16 %v259
          %v392 = vunpack.c.l.b16 %v260
          %v393 = vunpack.c.l.b16 %v261
          %v394 = vunpack.c.l.b16 %v262
          %v395 = vunpack.c.l.b16 %v263
          %v396 = vunpack.c.l.b16 %v264
          %v397 = vunpack.c.l.b16 %v265
          %v398 = vunpack.c.l.b16 %v266
          %v399 = vunpack.c.l.b16 %v267
          %v400 = vunpack.c.l.b16 %v268
          %v401 = vunpack.c.l.b16 %v269
          %v402 = vunpack.c.l.b16 %v270
          %v403 = vunpack.c.l.b16 %v271
          %v404 = vunpack.c.l.b16 %v272
          %v405 = vunpack.c.l.b16 %v273
          %v406 = vunpack.c.l.b16 %v274
          %v407 = vunpack.c.l.b16 %v275
          %v408 = vunpack.c.l.b16 %v276
          %v409 = vunpack.c.l.b16 %v277
          %v410 = vunpack.c.l.b16 %v278
          %v411 = vunpack.c.l.b16 %v279
          %v412 = vunpack.c.l.b16 %v280
          %v413 = vunpack.c.l.b16 %v281
          %v414 = vunpack.c.l.b16 %v282
          %v415 = vunpack.c.l.b16 %v283
          %v416 = vunpack.c.l.b16 %v284
          %v417 = vunpack.c.l.b16 %v285
          %v418 = vunpack.c.l.b16 %v286
          %v419 = vunpack.c.l.b16 %v287
          %v420 = vunpack.c.l.b16 %v288
          %v421 = vunpack.c.l.b16 %v289
          %v422 = vunpack.c.l.b16 %v290
          %v423 = vunpack.c.l.b16 %v291
          %v424 = vunpack.c.l.b16 %v292
          %v425 = vunpack.c.l.b16 %v293
          %v426 = vunpack.c.l.b16 %v294
          %v427 = vunpack.c.l.b16 %v295
          %v428 = vunpack.c.l.b16 %v296
          %v429 = vunpack.c.l.b16 %v297
          %v430 = vunpack.c.l.b16 %v298
          %v431 = vunpack.c.l.b16 %v299
          %v432 = vunpack.c.l.b16 %v300
          %v433 = vunpack.c.l.b16 %v301
          %v434 = vunpack.c.l.b16 %v302
          %v435 = vunpack.c.l.b16 %v303
          %v436 = vunpack.c.l.b16 %v304
          %v437 = vunpack.c.l.b16 %v305
          %v438 = vunpack.c.l.b16 %v306
          %v439 = vunpack.c.l.b16 %v307
          %v440 = vpack.c.b16 %v377, %v376
          %v441 = vpack.c.b16 %v379, %v378
          %v442 = vpack.c.b16 %v381, %v380
          %v443 = vpack.c.b16 %v383, %v382
          %v444 = vpack.c.b16 %v385, %v384
          %v445 = vpack.c.b16 %v387, %v386
          %v446 = vpack.c.b16 %v389, %v388
          %v447 = vpack.c.b16 %v391, %v390
          %v448 = vpack.c.b16 %v393, %v392
          %v449 = vpack.c.b16 %v395, %v394
          %v450 = vpack.c.b16 %v397, %v396
          %v451 = vpack.c.b16 %v399, %v398
          %v452 = vpack.c.b16 %v401, %v400
          %v453 = vpack.c.b16 %v403, %v402
          %v454 = vpack.c.b16 %v405, %v404
          %v455 = vpack.c.b16 %v407, %v406
          %v456 = vpack.c.b16 %v409, %v408
          %v457 = vpack.c.b16 %v411, %v410
          %v458 = vpack.c.b16 %v413, %v412
          %v459 = vpack.c.b16 %v415, %v414
          %v460 = vpack.c.b16 %v417, %v416
          %v461 = vpack.c.b16 %v419, %v418
          %v462 = vpack.c.b16 %v421, %v420
          %v463 = vpack.c.b16 %v423, %v422
          %v464 = vpack.c.b16 %v425, %v424
          %v465 = vpack.c.b16 %v427, %v426
          %v466 = vpack.c.b16 %v429, %v428
          %v467 = vpack.c.b16 %v431, %v430
          %v468 = vpack.c.b16 %v433, %v432
          %v469 = vpack.c.b16 %v435, %v434
          %v470 = vpack.c.b16 %v437, %v436
          %v471 = vpack.c.b16 %v439, %v438
          %v476 = vunpack.c.l.b16 %v308
          %v477 = vunpack.c.l.b16 %v309
          %v478 = vunpack.c.l.b16 %v310
          %v479 = vunpack.c.l.b16 %v311
          %v480 = vpack.c.b16 %v477, %v476
          %v481 = vpack.c.b16 %v479, %v478
          %vm484 = vcmask 261120
          %v486 = vsel %vm484, %v440, 0
          %v489 = vsel %vm484, %v441, 0
          %v492 = vsel %vm484, %v442, 0
          %v495 = vsel %vm484, %v443, 0
          %v498 = vsel %vm484, %v444, 0
          %v501 = vsel %vm484, %v445, 0
          %v504 = vsel %vm484, %v446, 0
          %v507 = vsel %vm484, %v447, 0
          %v510 = vsel %vm484, %v448, 0
          %v513 = vsel %vm484, %v449, 0
          %v516 = vsel %vm484, %v450, 0
          %v519 = vsel %vm484, %v451, 0
          %v522 = vsel %vm484, %v452, 0
          %v525 = vsel %vm484, %v453, 0
          %v528 = vsel %vm484, %v454, 0
          %v531 = vsel %vm484, %v455, 0
          %v534 = vsel %vm484, %v456, 0
          %v537 = vsel %vm484, %v457, 0
          %v540 = vsel %vm484, %v458, 0
          %v543 = vsel %vm484, %v459, 0
          %v546 = vsel %vm484, %v460, 0
          %v549 = vsel %vm484, %v461, 0
          %v552 = vsel %vm484, %v462, 0
          %v555 = vsel %vm484, %v463, 0
          %v558 = vsel %vm484, %v464, 0
          %v561 = vsel %vm484, %v465, 0
          %v564 = vsel %vm484, %v466, 0
          %v567 = vsel %vm484, %v467, 0
          %v570 = vsel %vm484, %v468, 0
          %v573 = vsel %vm484, %v469, 0
          %v576 = vsel %vm484, %v470, 0
          %v579 = vsel %vm484, %v471, 0
          %581 = vmatpush.bf16.msra.mxu0 0
          %582 = vmatpush.bf16.msra.mxu0 0
          %583 = vmatpush.bf16.msra.mxu0 0
          %584 = vmatpush.bf16.msra.mxu0 0
          %585 = vmatpush.bf16.msra.mxu0 0
          %586 = vmatpush.bf16.msra.mxu0 0
          %587 = vmatpush.bf16.msra.mxu0 %v481
          %588 = vmatpush.bf16.msra.mxu0 %v480
          %589 = vmatmul.bf16.gmra.mxu0 %v486
          %v590 = vpop.f32.mrf.mxu0
          %v591 = vadd.f32 0.0, %v590
          %v592 = vpop.f32.mrf.mxu0
          %v593 = vadd.f32 0.0, %v592
          %594 = vmatmul.bf16.gmra.mxu0 %v489
          %v595 = vpop.f32.mrf.mxu0
          %v596 = vadd.f32 0.0, %v595
          %v597 = vpop.f32.mrf.mxu0
          %v598 = vadd.f32 0.0, %v597
          %599 = vmatmul.bf16.gmra.mxu0 %v492
          %v600 = vpop.f32.mrf.mxu0
          %v601 = vadd.f32 0.0, %v600
          %v602 = vpop.f32.mrf.mxu0
          %v603 = vadd.f32 0.0, %v602
          %604 = vmatmul.bf16.gmra.mxu0 %v495
          %v605 = vpop.f32.mrf.mxu0
          %v606 = vadd.f32 0.0, %v605
          %v607 = vpop.f32.mrf.mxu0
          %v608 = vadd.f32 0.0, %v607
          %609 = vmatmul.bf16.gmra.mxu0 %v498
          %v610 = vpop.f32.mrf.mxu0
          %v611 = vadd.f32 0.0, %v610
          %v612 = vpop.f32.mrf.mxu0
          %v613 = vadd.f32 0.0, %v612
          %614 = vmatmul.bf16.gmra.mxu0 %v501
          %v615 = vpop.f32.mrf.mxu0
          %v616 = vadd.f32 0.0, %v615
          %v617 = vpop.f32.mrf.mxu0
          %v618 = vadd.f32 0.0, %v617
          %619 = vmatmul.bf16.gmra.mxu0 %v504
          %v620 = vpop.f32.mrf.mxu0
          %v621 = vadd.f32 0.0, %v620
          %v622 = vpop.f32.mrf.mxu0
          %v623 = vadd.f32 0.0, %v622
          %624 = vmatmul.bf16.gmra.mxu0 %v507
          %v625 = vpop.f32.mrf.mxu0
          %v626 = vadd.f32 0.0, %v625
          %v627 = vpop.f32.mrf.mxu0
          %v628 = vadd.f32 0.0, %v627
          %629 = vmatmul.bf16.gmra.mxu0 %v510
          %v630 = vpop.f32.mrf.mxu0
          %v631 = vadd.f32 0.0, %v630
          %v632 = vpop.f32.mrf.mxu0
          %v633 = vadd.f32 0.0, %v632
          %634 = vmatmul.bf16.gmra.mxu0 %v513
          %v635 = vpop.f32.mrf.mxu0
          %v636 = vadd.f32 0.0, %v635
          %v637 = vpop.f32.mrf.mxu0
          %v638 = vadd.f32 0.0, %v637
          %639 = vmatmul.bf16.gmra.mxu0 %v516
          %v640 = vpop.f32.mrf.mxu0
          %v641 = vadd.f32 0.0, %v640
          %v642 = vpop.f32.mrf.mxu0
          %v643 = vadd.f32 0.0, %v642
          %644 = vmatmul.bf16.gmra.mxu0 %v519
          %v645 = vpop.f32.mrf.mxu0
          %v646 = vadd.f32 0.0, %v645
          %v647 = vpop.f32.mrf.mxu0
          %v648 = vadd.f32 0.0, %v647
          %649 = vmatmul.bf16.gmra.mxu0 %v522
          %v650 = vpop.f32.mrf.mxu0
          %v651 = vadd.f32 0.0, %v650
          %v652 = vpop.f32.mrf.mxu0
          %v653 = vadd.f32 0.0, %v652
          %654 = vmatmul.bf16.gmra.mxu0 %v525
          %v655 = vpop.f32.mrf.mxu0
          %v656 = vadd.f32 0.0, %v655
          %v657 = vpop.f32.mrf.mxu0
          %v658 = vadd.f32 0.0, %v657
          %659 = vmatmul.bf16.gmra.mxu0 %v528
          %v660 = vpop.f32.mrf.mxu0
          %v661 = vadd.f32 0.0, %v660
          %v662 = vpop.f32.mrf.mxu0
          %v663 = vadd.f32 0.0, %v662
          %664 = vmatmul.bf16.gmra.mxu0 %v531
          %v665 = vpop.f32.mrf.mxu0
          %v666 = vadd.f32 0.0, %v665
          %v667 = vpop.f32.mrf.mxu0
          %v668 = vadd.f32 0.0, %v667
          %669 = vmatmul.bf16.gmra.mxu0 %v534
          %v670 = vpop.f32.mrf.mxu0
          %v671 = vadd.f32 0.0, %v670
          %v672 = vpop.f32.mrf.mxu0
          %v673 = vadd.f32 0.0, %v672
          %674 = vmatmul.bf16.gmra.mxu0 %v537
          %v675 = vpop.f32.mrf.mxu0
          %v676 = vadd.f32 0.0, %v675
          %v677 = vpop.f32.mrf.mxu0
          %v678 = vadd.f32 0.0, %v677
          %679 = vmatmul.bf16.gmra.mxu0 %v540
          %v680 = vpop.f32.mrf.mxu0
          %v681 = vadd.f32 0.0, %v680
          %v682 = vpop.f32.mrf.mxu0
          %v683 = vadd.f32 0.0, %v682
          %684 = vmatmul.bf16.gmra.mxu0 %v543
          %v685 = vpop.f32.mrf.mxu0
          %v686 = vadd.f32 0.0, %v685
          %v687 = vpop.f32.mrf.mxu0
          %v688 = vadd.f32 0.0, %v687
          %689 = vmatmul.bf16.gmra.mxu0 %v546
          %v690 = vpop.f32.mrf.mxu0
          %v691 = vadd.f32 0.0, %v690
          %v692 = vpop.f32.mrf.mxu0
          %v693 = vadd.f32 0.0, %v692
          %694 = vmatmul.bf16.gmra.mxu0 %v549
          %v695 = vpop.f32.mrf.mxu0
          %v696 = vadd.f32 0.0, %v695
          %v697 = vpop.f32.mrf.mxu0
          %v698 = vadd.f32 0.0, %v697
          %699 = vmatmul.bf16.gmra.mxu0 %v552
          %v700 = vpop.f32.mrf.mxu0
          %v701 = vadd.f32 0.0, %v700
          %v702 = vpop.f32.mrf.mxu0
          %v703 = vadd.f32 0.0, %v702
          %704 = vmatmul.bf16.gmra.mxu0 %v555
          %v705 = vpop.f32.mrf.mxu0
          %v706 = vadd.f32 0.0, %v705
          %v707 = vpop.f32.mrf.mxu0
          %v708 = vadd.f32 0.0, %v707
          %709 = vmatmul.bf16.gmra.mxu0 %v558
          %v710 = vpop.f32.mrf.mxu0
          %v711 = vadd.f32 0.0, %v710
          %v712 = vpop.f32.mrf.mxu0
          %v713 = vadd.f32 0.0, %v712
          %714 = vmatmul.bf16.gmra.mxu0 %v561
          %v715 = vpop.f32.mrf.mxu0
          %v716 = vadd.f32 0.0, %v715
          %v717 = vpop.f32.mrf.mxu0
          %v718 = vadd.f32 0.0, %v717
          %719 = vmatmul.bf16.gmra.mxu0 %v564
          %v720 = vpop.f32.mrf.mxu0
          %v721 = vadd.f32 0.0, %v720
          %v722 = vpop.f32.mrf.mxu0
          %v723 = vadd.f32 0.0, %v722
          %724 = vmatmul.bf16.gmra.mxu0 %v567
          %v725 = vpop.f32.mrf.mxu0
          %v726 = vadd.f32 0.0, %v725
          %v727 = vpop.f32.mrf.mxu0
          %v728 = vadd.f32 0.0, %v727
          %729 = vmatmul.bf16.gmra.mxu0 %v570
          %v730 = vpop.f32.mrf.mxu0
          %v731 = vadd.f32 0.0, %v730
          %v732 = vpop.f32.mrf.mxu0
          %v733 = vadd.f32 0.0, %v732
          %734 = vmatmul.bf16.gmra.mxu0 %v573
          %v735 = vpop.f32.mrf.mxu0
          %v736 = vadd.f32 0.0, %v735
          %v737 = vpop.f32.mrf.mxu0
          %v738 = vadd.f32 0.0, %v737
          %739 = vmatmul.bf16.gmra.mxu0 %v576
          %v740 = vpop.f32.mrf.mxu0
          %v741 = vadd.f32 0.0, %v740
          %v742 = vpop.f32.mrf.mxu0
          %v743 = vadd.f32 0.0, %v742
          %744 = vmatmul.bf16.gmra.mxu0 %v579
          %v745 = vpop.f32.mrf.mxu0
          %v746 = vadd.f32 0.0, %v745
          %v747 = vpop.f32.mrf.mxu0
          %v748 = vadd.f32 0.0, %v747
          %749 = vdwg.mxu0
          %s750 = scalar_lea.vmem [#allocation2], %s232
          %751 = vst [vmem:[%s750] sm:$0xff] %v591
          %752 = vst [vmem:[%s750 + $0x8] sm:$0xff] %v593
          %753 = vst [vmem:[%s750 + $0x10] sm:$0xff] %v596
          %754 = vst [vmem:[%s750 + $0x18] sm:$0xff] %v598
          %755 = vst [vmem:[%s750 + $0x20] sm:$0xff] %v601
          %756 = vst [vmem:[%s750 + $0x28] sm:$0xff] %v603
          %757 = vst [vmem:[%s750 + $0x30] sm:$0xff] %v606
          %758 = vst [vmem:[%s750 + $0x38] sm:$0xff] %v608
          %759 = vst [vmem:[%s750 + $0x40] sm:$0xff] %v611
          %760 = vst [vmem:[%s750 + $0x48] sm:$0xff] %v613
          %761 = vst [vmem:[%s750 + $0x50] sm:$0xff] %v616
          %762 = vst [vmem:[%s750 + $0x58] sm:$0xff] %v618
          %763 = vst [vmem:[%s750 + $0x60] sm:$0xff] %v621
          %764 = vst [vmem:[%s750 + $0x68] sm:$0xff] %v623
          %765 = vst [vmem:[%s750 + $0x70] sm:$0xff] %v626
          %766 = vst [vmem:[%s750 + $0x78] sm:$0xff] %v628
          %767 = vst [vmem:[%s750 + $0x80] sm:$0xff] %v631
          %768 = vst [vmem:[%s750 + $0x88] sm:$0xff] %v633
          %769 = vst [vmem:[%s750 + $0x90] sm:$0xff] %v636
          %770 = vst [vmem:[%s750 + $0x98] sm:$0xff] %v638
          %771 = vst [vmem:[%s750 + $0xa0] sm:$0xff] %v641
          %772 = vst [vmem:[%s750 + $0xa8] sm:$0xff] %v643
          %773 = vst [vmem:[%s750 + $0xb0] sm:$0xff] %v646
          %774 = vst [vmem:[%s750 + $0xb8] sm:$0xff] %v648
          %775 = vst [vmem:[%s750 + $0xc0] sm:$0xff] %v651
          %776 = vst [vmem:[%s750 + $0xc8] sm:$0xff] %v653
          %777 = vst [vmem:[%s750 + $0xd0] sm:$0xff] %v656
          %778 = vst [vmem:[%s750 + $0xd8] sm:$0xff] %v658
          %779 = vst [vmem:[%s750 + $0xe0] sm:$0xff] %v661
          %780 = vst [vmem:[%s750 + $0xe8] sm:$0xff] %v663
          %781 = vst [vmem:[%s750 + $0xf0] sm:$0xff] %v666
          %782 = vst [vmem:[%s750 + $0xf8] sm:$0xff] %v668
          %783 = vst [vmem:[%s750 + $0x100] sm:$0xff] %v671
          %784 = vst [vmem:[%s750 + $0x108] sm:$0xff] %v673
          %785 = vst [vmem:[%s750 + $0x110] sm:$0xff] %v676
          %786 = vst [vmem:[%s750 + $0x118] sm:$0xff] %v678
          %787 = vst [vmem:[%s750 + $0x120] sm:$0xff] %v681
          %788 = vst [vmem:[%s750 + $0x128] sm:$0xff] %v683
          %789 = vst [vmem:[%s750 + $0x130] sm:$0xff] %v686
          %790 = vst [vmem:[%s750 + $0x138] sm:$0xff] %v688
          %791 = vst [vmem:[%s750 + $0x140] sm:$0xff] %v691
          %792 = vst [vmem:[%s750 + $0x148] sm:$0xff] %v693
          %793 = vst [vmem:[%s750 + $0x150] sm:$0xff] %v696
          %794 = vst [vmem:[%s750 + $0x158] sm:$0xff] %v698
          %795 = vst [vmem:[%s750 + $0x160] sm:$0xff] %v701
          %796 = vst [vmem:[%s750 + $0x168] sm:$0xff] %v703
          %797 = vst [vmem:[%s750 + $0x170] sm:$0xff] %v706
          %798 = vst [vmem:[%s750 + $0x178] sm:$0xff] %v708
          %799 = vst [vmem:[%s750 + $0x180] sm:$0xff] %v711
          %800 = vst [vmem:[%s750 + $0x188] sm:$0xff] %v713
          %801 = vst [vmem:[%s750 + $0x190] sm:$0xff] %v716
          %802 = vst [vmem:[%s750 + $0x198] sm:$0xff] %v718
          %803 = vst [vmem:[%s750 + $0x1a0] sm:$0xff] %v721
          %804 = vst [vmem:[%s750 + $0x1a8] sm:$0xff] %v723
          %805 = vst [vmem:[%s750 + $0x1b0] sm:$0xff] %v726
          %806 = vst [vmem:[%s750 + $0x1b8] sm:$0xff] %v728
          %807 = vst [vmem:[%s750 + $0x1c0] sm:$0xff] %v731
          %808 = vst [vmem:[%s750 + $0x1c8] sm:$0xff] %v733
          %809 = vst [vmem:[%s750 + $0x1d0] sm:$0xff] %v736
          %810 = vst [vmem:[%s750 + $0x1d8] sm:$0xff] %v738
          %811 = vst [vmem:[%s750 + $0x1e0] sm:$0xff] %v741
          %812 = vst [vmem:[%s750 + $0x1e8] sm:$0xff] %v743
          %813 = vst [vmem:[%s750 + $0x1f0] sm:$0xff] %v746
          %814 = vst [vmem:[%s750 + $0x1f8] sm:$0xff] %v748
          %v815 = vlaneseq
          %v816 = vshrl.u32 %v815, 7
          %v817 = vadd.s32 %v816, 8
          %v818 = vadd.s32 %v816, 16
          %v819 = vadd.s32 %v816, 24
          %v820 = vadd.s32 %v816, 32
          %v821 = vadd.s32 %v816, 40
          %v822 = vadd.s32 %v816, 48
          %v823 = vadd.s32 %v816, 56
          %v824 = vadd.s32 %v816, 64
          %v825 = vadd.s32 %v816, 72
          %v826 = vadd.s32 %v816, 80
          %v827 = vadd.s32 %v816, 88
          %v828 = vadd.s32 %v816, 96
          %v829 = vadd.s32 %v816, 104
          %v830 = vadd.s32 %v816, 112
          %v831 = vadd.s32 %v816, 120
          %v832 = vadd.s32 %v816, 128
          %v833 = vadd.s32 %v816, 136
          %v834 = vadd.s32 %v816, 144
          %v835 = vadd.s32 %v816, 152
          %v836 = vadd.s32 %v816, 160
          %v837 = vadd.s32 %v816, 168
          %v838 = vadd.s32 %v816, 176
          %v839 = vadd.s32 %v816, 184
          %v840 = vadd.s32 %v816, 192
          %v841 = vadd.s32 %v816, 200
          %v842 = vadd.s32 %v816, 208
          %v843 = vadd.s32 %v816, 216
          %v844 = vadd.s32 %v816, 224
          %v845 = vadd.s32 %v816, 232
          %v846 = vadd.s32 %v816, 240
          %v847 = vadd.s32 %v816, 248
          %v848 = vadd.s32 %v816, 256
          %v849 = vadd.s32 %v816, 264
          %v850 = vadd.s32 %v816, 272
          %v851 = vadd.s32 %v816, 280
          %v852 = vadd.s32 %v816, 288
          %v853 = vadd.s32 %v816, 296
          %v854 = vadd.s32 %v816, 304
          %v855 = vadd.s32 %v816, 312
          %v856 = vadd.s32 %v816, 320
          %v857 = vadd.s32 %v816, 328
          %v858 = vadd.s32 %v816, 336
          %v859 = vadd.s32 %v816, 344
          %v860 = vadd.s32 %v816, 352
          %v861 = vadd.s32 %v816, 360
          %v862 = vadd.s32 %v816, 368
          %v863 = vadd.s32 %v816, 376
          %v864 = vadd.s32 %v816, 384
          %v865 = vadd.s32 %v816, 392
          %v866 = vadd.s32 %v816, 400
          %v867 = vadd.s32 %v816, 408
          %v868 = vadd.s32 %v816, 416
          %v869 = vadd.s32 %v816, 424
          %v870 = vadd.s32 %v816, 432
          %v871 = vadd.s32 %v816, 440
          %v872 = vadd.s32 %v816, 448
          %v873 = vadd.s32 %v816, 456
          %v874 = vadd.s32 %v816, 464
          %v875 = vadd.s32 %v816, 472
          %v876 = vadd.s32 %v816, 480
          %v877 = vadd.s32 %v816, 488
          %v878 = vadd.s32 %v816, 496
          %v879 = vadd.s32 %v816, 504
          %v880 = vstv %s232
          %v881 = vadd.s32 %v880, %v816
          %v882 = vadd.s32 %v880, %v817
          %v883 = vadd.s32 %v880, %v818
          %v884 = vadd.s32 %v880, %v819
          %v885 = vadd.s32 %v880, %v820
          %v886 = vadd.s32 %v880, %v821
          %v887 = vadd.s32 %v880, %v822
          %v888 = vadd.s32 %v880, %v823
          %v889 = vadd.s32 %v880, %v824
          %v890 = vadd.s32 %v880, %v825
          %v891 = vadd.s32 %v880, %v826
          %v892 = vadd.s32 %v880, %v827
          %v893 = vadd.s32 %v880, %v828
          %v894 = vadd.s32 %v880, %v829
          %v895 = vadd.s32 %v880, %v830
          %v896 = vadd.s32 %v880, %v831
          %v897 = vadd.s32 %v880, %v832
          %v898 = vadd.s32 %v880, %v833
          %v899 = vadd.s32 %v880, %v834
          %v900 = vadd.s32 %v880, %v835
          %v901 = vadd.s32 %v880, %v836
          %v902 = vadd.s32 %v880, %v837
          %v903 = vadd.s32 %v880, %v838
          %v904 = vadd.s32 %v880, %v839
          %v905 = vadd.s32 %v880, %v840
          %v906 = vadd.s32 %v880, %v841
          %v907 = vadd.s32 %v880, %v842
          %v908 = vadd.s32 %v880, %v843
          %v909 = vadd.s32 %v880, %v844
          %v910 = vadd.s32 %v880, %v845
          %v911 = vadd.s32 %v880, %v846
          %v912 = vadd.s32 %v880, %v847
          %v913 = vadd.s32 %v880, %v848
          %v914 = vadd.s32 %v880, %v849
          %v915 = vadd.s32 %v880, %v850
          %v916 = vadd.s32 %v880, %v851
          %v917 = vadd.s32 %v880, %v852
          %v918 = vadd.s32 %v880, %v853
          %v919 = vadd.s32 %v880, %v854
          %v920 = vadd.s32 %v880, %v855
          %v921 = vadd.s32 %v880, %v856
          %v922 = vadd.s32 %v880, %v857
          %v923 = vadd.s32 %v880, %v858
          %v924 = vadd.s32 %v880, %v859
          %v925 = vadd.s32 %v880, %v860
          %v926 = vadd.s32 %v880, %v861
          %v927 = vadd.s32 %v880, %v862
          %v928 = vadd.s32 %v880, %v863
          %v929 = vadd.s32 %v880, %v864
          %v930 = vadd.s32 %v880, %v865
          %v931 = vadd.s32 %v880, %v866
          %v932 = vadd.s32 %v880, %v867
          %v933 = vadd.s32 %v880, %v868
          %v934 = vadd.s32 %v880, %v869
          %v935 = vadd.s32 %v880, %v870
          %v936 = vadd.s32 %v880, %v871
          %v937 = vadd.s32 %v880, %v872
          %v938 = vadd.s32 %v880, %v873
          %v939 = vadd.s32 %v880, %v874
          %v940 = vadd.s32 %v880, %v875
          %v941 = vadd.s32 %v880, %v876
          %v942 = vadd.s32 %v880, %v877
          %v943 = vadd.s32 %v880, %v878
          %v944 = vadd.s32 %v880, %v879
          %vm945 = vcmp.lt.s32.totalorder %v881, 1000
          %vm946 = vcmp.lt.s32.totalorder %v882, 1000
          %vm947 = vcmp.lt.s32.totalorder %v883, 1000
          %vm948 = vcmp.lt.s32.totalorder %v884, 1000
          %vm949 = vcmp.lt.s32.totalorder %v885, 1000
          %vm950 = vcmp.lt.s32.totalorder %v886, 1000
          %vm951 = vcmp.lt.s32.totalorder %v887, 1000
          %vm952 = vcmp.lt.s32.totalorder %v888, 1000
          %vm953 = vcmp.lt.s32.totalorder %v889, 1000
          %vm954 = vcmp.lt.s32.totalorder %v890, 1000
          %vm955 = vcmp.lt.s32.totalorder %v891, 1000
          %vm956 = vcmp.lt.s32.totalorder %v892, 1000
          %vm957 = vcmp.lt.s32.totalorder %v893, 1000
          %vm958 = vcmp.lt.s32.totalorder %v894, 1000
          %vm959 = vcmp.lt.s32.totalorder %v895, 1000
          %vm960 = vcmp.lt.s32.totalorder %v896, 1000
          %vm961 = vcmp.lt.s32.totalorder %v897, 1000
          %vm962 = vcmp.lt.s32.totalorder %v898, 1000
          %vm963 = vcmp.lt.s32.totalorder %v899, 1000
          %vm964 = vcmp.lt.s32.totalorder %v900, 1000
          %vm965 = vcmp.lt.s32.totalorder %v901, 1000
          %vm966 = vcmp.lt.s32.totalorder %v902, 1000
          %vm967 = vcmp.lt.s32.totalorder %v903, 1000
          %vm968 = vcmp.lt.s32.totalorder %v904, 1000
          %vm969 = vcmp.lt.s32.totalorder %v905, 1000
          %vm970 = vcmp.lt.s32.totalorder %v906, 1000
          %vm971 = vcmp.lt.s32.totalorder %v907, 1000
          %vm972 = vcmp.lt.s32.totalorder %v908, 1000
          %vm973 = vcmp.lt.s32.totalorder %v909, 1000
          %vm974 = vcmp.lt.s32.totalorder %v910, 1000
          %vm975 = vcmp.lt.s32.totalorder %v911, 1000
          %vm976 = vcmp.lt.s32.totalorder %v912, 1000
          %vm977 = vcmp.lt.s32.totalorder %v913, 1000
          %vm978 = vcmp.lt.s32.totalorder %v914, 1000
          %vm979 = vcmp.lt.s32.totalorder %v915, 1000
          %vm980 = vcmp.lt.s32.totalorder %v916, 1000
          %vm981 = vcmp.lt.s32.totalorder %v917, 1000
          %vm982 = vcmp.lt.s32.totalorder %v918, 1000
          %vm983 = vcmp.lt.s32.totalorder %v919, 1000
          %vm984 = vcmp.lt.s32.totalorder %v920, 1000
          %vm985 = vcmp.lt.s32.totalorder %v921, 1000
          %vm986 = vcmp.lt.s32.totalorder %v922, 1000
          %vm987 = vcmp.lt.s32.totalorder %v923, 1000
          %vm988 = vcmp.lt.s32.totalorder %v924, 1000
          %vm989 = vcmp.lt.s32.totalorder %v925, 1000
          %vm990 = vcmp.lt.s32.totalorder %v926, 1000
          %vm991 = vcmp.lt.s32.totalorder %v927, 1000
          %vm992 = vcmp.lt.s32.totalorder %v928, 1000
          %vm993 = vcmp.lt.s32.totalorder %v929, 1000
          %vm994 = vcmp.lt.s32.totalorder %v930, 1000
          %vm995 = vcmp.lt.s32.totalorder %v931, 1000
          %vm996 = vcmp.lt.s32.totalorder %v932, 1000
          %vm997 = vcmp.lt.s32.totalorder %v933, 1000
          %vm998 = vcmp.lt.s32.totalorder %v934, 1000
          %vm999 = vcmp.lt.s32.totalorder %v935, 1000
          %vm1000 = vcmp.lt.s32.totalorder %v936, 1000
          %vm1001 = vcmp.lt.s32.totalorder %v937, 1000
          %vm1002 = vcmp.lt.s32.totalorder %v938, 1000
          %vm1003 = vcmp.lt.s32.totalorder %v939, 1000
          %vm1004 = vcmp.lt.s32.totalorder %v940, 1000
          %vm1005 = vcmp.lt.s32.totalorder %v941, 1000
          %vm1006 = vcmp.lt.s32.totalorder %v942, 1000
          %vm1007 = vcmp.lt.s32.totalorder %v943, 1000
          %vm1008 = vcmp.lt.s32.totalorder %v944, 1000
          %v1009 = vsel %vm945, 1, 0
          %v1010 = vsel %vm946, 1, 0
          %v1011 = vsel %vm947, 1, 0
          %v1012 = vsel %vm948, 1, 0
          %v1013 = vsel %vm949, 1, 0
          %v1014 = vsel %vm950, 1, 0
          %v1015 = vsel %vm951, 1, 0
          %v1016 = vsel %vm952, 1, 0
          %v1017 = vsel %vm953, 1, 0
          %v1018 = vsel %vm954, 1, 0
          %v1019 = vsel %vm955, 1, 0
          %v1020 = vsel %vm956, 1, 0
          %v1021 = vsel %vm957, 1, 0
          %v1022 = vsel %vm958, 1, 0
          %v1023 = vsel %vm959, 1, 0
          %v1024 = vsel %vm960, 1, 0
          %v1025 = vsel %vm961, 1, 0
          %v1026 = vsel %vm962, 1, 0
          %v1027 = vsel %vm963, 1, 0
          %v1028 = vsel %vm964, 1, 0
          %v1029 = vsel %vm965, 1, 0
          %v1030 = vsel %vm966, 1, 0
          %v1031 = vsel %vm967, 1, 0
          %v1032 = vsel %vm968, 1, 0
          %v1033 = vsel %vm969, 1, 0
          %v1034 = vsel %vm970, 1, 0
          %v1035 = vsel %vm971, 1, 0
          %v1036 = vsel %vm972, 1, 0
          %v1037 = vsel %vm973, 1, 0
          %v1038 = vsel %vm974, 1, 0
          %v1039 = vsel %vm975, 1, 0
          %v1040 = vsel %vm976, 1, 0
          %v1041 = vsel %vm977, 1, 0
          %v1042 = vsel %vm978, 1, 0
          %v1043 = vsel %vm979, 1, 0
          %v1044 = vsel %vm980, 1, 0
          %v1045 = vsel %vm981, 1, 0
          %v1046 = vsel %vm982, 1, 0
          %v1047 = vsel %vm983, 1, 0
          %v1048 = vsel %vm984, 1, 0
          %v1049 = vsel %vm985, 1, 0
          %v1050 = vsel %vm986, 1, 0
          %v1051 = vsel %vm987, 1, 0
          %v1052 = vsel %vm988, 1, 0
          %v1053 = vsel %vm989, 1, 0
          %v1054 = vsel %vm990, 1, 0
          %v1055 = vsel %vm991, 1, 0
          %v1056 = vsel %vm992, 1, 0
          %v1057 = vsel %vm993, 1, 0
          %v1058 = vsel %vm994, 1, 0
          %v1059 = vsel %vm995, 1, 0
          %v1060 = vsel %vm996, 1, 0
          %v1061 = vsel %vm997, 1, 0
          %v1062 = vsel %vm998, 1, 0
          %v1063 = vsel %vm999, 1, 0
          %v1064 = vsel %vm1000, 1, 0
          %v1065 = vsel %vm1001, 1, 0
          %v1066 = vsel %vm1002, 1, 0
          %v1067 = vsel %vm1003, 1, 0
          %v1068 = vsel %vm1004, 1, 0
          %v1069 = vsel %vm1005, 1, 0
          %v1070 = vsel %vm1006, 1, 0
          %v1071 = vsel %vm1007, 1, 0
          %v1072 = vsel %vm1008, 1, 0
          %vm1073 = vcmp.eq.s32.totalorder %v1009, 1
          %vm1074 = vcmp.eq.s32.totalorder %v1010, 1
          %vm1075 = vcmp.eq.s32.totalorder %v1011, 1
          %vm1076 = vcmp.eq.s32.totalorder %v1012, 1
          %vm1077 = vcmp.eq.s32.totalorder %v1013, 1
          %vm1078 = vcmp.eq.s32.totalorder %v1014, 1
          %vm1079 = vcmp.eq.s32.totalorder %v1015, 1
          %vm1080 = vcmp.eq.s32.totalorder %v1016, 1
          %vm1081 = vcmp.eq.s32.totalorder %v1017, 1
          %vm1082 = vcmp.eq.s32.totalorder %v1018, 1
          %vm1083 = vcmp.eq.s32.totalorder %v1019, 1
          %vm1084 = vcmp.eq.s32.totalorder %v1020, 1
          %vm1085 = vcmp.eq.s32.totalorder %v1021, 1
          %vm1086 = vcmp.eq.s32.totalorder %v1022, 1
          %vm1087 = vcmp.eq.s32.totalorder %v1023, 1
          %vm1088 = vcmp.eq.s32.totalorder %v1024, 1
          %vm1089 = vcmp.eq.s32.totalorder %v1025, 1
          %vm1090 = vcmp.eq.s32.totalorder %v1026, 1
          %vm1091 = vcmp.eq.s32.totalorder %v1027, 1
          %vm1092 = vcmp.eq.s32.totalorder %v1028, 1
          %vm1093 = vcmp.eq.s32.totalorder %v1029, 1
          %vm1094 = vcmp.eq.s32.totalorder %v1030, 1
          %vm1095 = vcmp.eq.s32.totalorder %v1031, 1
          %vm1096 = vcmp.eq.s32.totalorder %v1032, 1
          %vm1097 = vcmp.eq.s32.totalorder %v1033, 1
          %vm1098 = vcmp.eq.s32.totalorder %v1034, 1
          %vm1099 = vcmp.eq.s32.totalorder %v1035, 1
          %vm1100 = vcmp.eq.s32.totalorder %v1036, 1
          %vm1101 = vcmp.eq.s32.totalorder %v1037, 1
          %vm1102 = vcmp.eq.s32.totalorder %v1038, 1
          %vm1103 = vcmp.eq.s32.totalorder %v1039, 1
          %vm1104 = vcmp.eq.s32.totalorder %v1040, 1
          %vm1105 = vcmp.eq.s32.totalorder %v1041, 1
          %vm1106 = vcmp.eq.s32.totalorder %v1042, 1
          %vm1107 = vcmp.eq.s32.totalorder %v1043, 1
          %vm1108 = vcmp.eq.s32.totalorder %v1044, 1
          %vm1109 = vcmp.eq.s32.totalorder %v1045, 1
          %vm1110 = vcmp.eq.s32.totalorder %v1046, 1
          %vm1111 = vcmp.eq.s32.totalorder %v1047, 1
          %vm1112 = vcmp.eq.s32.totalorder %v1048, 1
          %vm1113 = vcmp.eq.s32.totalorder %v1049, 1
          %vm1114 = vcmp.eq.s32.totalorder %v1050, 1
          %vm1115 = vcmp.eq.s32.totalorder %v1051, 1
          %vm1116 = vcmp.eq.s32.totalorder %v1052, 1
          %vm1117 = vcmp.eq.s32.totalorder %v1053, 1
          %vm1118 = vcmp.eq.s32.totalorder %v1054, 1
          %vm1119 = vcmp.eq.s32.totalorder %v1055, 1
          %vm1120 = vcmp.eq.s32.totalorder %v1056, 1
          %vm1121 = vcmp.eq.s32.totalorder %v1057, 1
          %vm1122 = vcmp.eq.s32.totalorder %v1058, 1
          %vm1123 = vcmp.eq.s32.totalorder %v1059, 1
          %vm1124 = vcmp.eq.s32.totalorder %v1060, 1
          %vm1125 = vcmp.eq.s32.totalorder %v1061, 1
          %vm1126 = vcmp.eq.s32.totalorder %v1062, 1
          %vm1127 = vcmp.eq.s32.totalorder %v1063, 1
          %vm1128 = vcmp.eq.s32.totalorder %v1064, 1
          %vm1129 = vcmp.eq.s32.totalorder %v1065, 1
          %vm1130 = vcmp.eq.s32.totalorder %v1066, 1
          %vm1131 = vcmp.eq.s32.totalorder %v1067, 1
          %vm1132 = vcmp.eq.s32.totalorder %v1068, 1
          %vm1133 = vcmp.eq.s32.totalorder %v1069, 1
          %vm1134 = vcmp.eq.s32.totalorder %v1070, 1
          %vm1135 = vcmp.eq.s32.totalorder %v1071, 1
          %vm1136 = vcmp.eq.s32.totalorder %v1072, 1
          %v1137 = vsel %vm1073, %v591, 0.0
          %v1138 = vsel %vm1074, %v593, 0.0
          %v1139 = vsel %vm1075, %v596, 0.0
          %v1140 = vsel %vm1076, %v598, 0.0
          %v1141 = vsel %vm1077, %v601, 0.0
          %v1142 = vsel %vm1078, %v603, 0.0
          %v1143 = vsel %vm1079, %v606, 0.0
          %v1144 = vsel %vm1080, %v608, 0.0
          %v1145 = vsel %vm1081, %v611, 0.0
          %v1146 = vsel %vm1082, %v613, 0.0
          %v1147 = vsel %vm1083, %v616, 0.0
          %v1148 = vsel %vm1084, %v618, 0.0
          %v1149 = vsel %vm1085, %v621, 0.0
          %v1150 = vsel %vm1086, %v623, 0.0
          %v1151 = vsel %vm1087, %v626, 0.0
          %v1152 = vsel %vm1088, %v628, 0.0
          %v1153 = vsel %vm1089, %v631, 0.0
          %v1154 = vsel %vm1090, %v633, 0.0
          %v1155 = vsel %vm1091, %v636, 0.0
          %v1156 = vsel %vm1092, %v638, 0.0
          %v1157 = vsel %vm1093, %v641, 0.0
          %v1158 = vsel %vm1094, %v643, 0.0
          %v1159 = vsel %vm1095, %v646, 0.0
          %v1160 = vsel %vm1096, %v648, 0.0
          %v1161 = vsel %vm1097, %v651, 0.0
          %v1162 = vsel %vm1098, %v653, 0.0
          %v1163 = vsel %vm1099, %v656, 0.0
          %v1164 = vsel %vm1100, %v658, 0.0
          %v1165 = vsel %vm1101, %v661, 0.0
          %v1166 = vsel %vm1102, %v663, 0.0
          %v1167 = vsel %vm1103, %v666, 0.0
          %v1168 = vsel %vm1104, %v668, 0.0
          %v1169 = vsel %vm1105, %v671, 0.0
          %v1170 = vsel %vm1106, %v673, 0.0
          %v1171 = vsel %vm1107, %v676, 0.0
          %v1172 = vsel %vm1108, %v678, 0.0
          %v1173 = vsel %vm1109, %v681, 0.0
          %v1174 = vsel %vm1110, %v683, 0.0
          %v1175 = vsel %vm1111, %v686, 0.0
          %v1176 = vsel %vm1112, %v688, 0.0
          %v1177 = vsel %vm1113, %v691, 0.0
          %v1178 = vsel %vm1114, %v693, 0.0
          %v1179 = vsel %vm1115, %v696, 0.0
          %v1180 = vsel %vm1116, %v698, 0.0
          %v1181 = vsel %vm1117, %v701, 0.0
          %v1182 = vsel %vm1118, %v703, 0.0
          %v1183 = vsel %vm1119, %v706, 0.0
          %v1184 = vsel %vm1120, %v708, 0.0
          %v1185 = vsel %vm1121, %v711, 0.0
          %v1186 = vsel %vm1122, %v713, 0.0
          %v1187 = vsel %vm1123, %v716, 0.0
          %v1188 = vsel %vm1124, %v718, 0.0
          %v1189 = vsel %vm1125, %v721, 0.0
          %v1190 = vsel %vm1126, %v723, 0.0
          %v1191 = vsel %vm1127, %v726, 0.0
          %v1192 = vsel %vm1128, %v728, 0.0
          %v1193 = vsel %vm1129, %v731, 0.0
          %v1194 = vsel %vm1130, %v733, 0.0
          %v1195 = vsel %vm1131, %v736, 0.0
          %v1196 = vsel %vm1132, %v738, 0.0
          %v1197 = vsel %vm1133, %v741, 0.0
          %v1198 = vsel %vm1134, %v743, 0.0
          %v1199 = vsel %vm1135, %v746, 0.0
          %v1200 = vsel %vm1136, %v748, 0.0
          %v1201 = vld [vmem:[#allocation4] sm:$0x3]
          %v1202 = vadd.f32 %v1137, %v1138
          %v1203 = vadd.f32 %v1202, %v1139
          %v1204 = vadd.f32 %v1203, %v1140
          %v1205 = vadd.f32 %v1204, %v1141
          %v1206 = vadd.f32 %v1205, %v1142
          %v1207 = vadd.f32 %v1206, %v1143
          %v1208 = vadd.f32 %v1207, %v1144
          %v1209 = vadd.f32 %v1208, %v1145
          %v1210 = vadd.f32 %v1209, %v1146
          %v1211 = vadd.f32 %v1210, %v1147
          %v1212 = vadd.f32 %v1211, %v1148
          %v1213 = vadd.f32 %v1212, %v1149
          %v1214 = vadd.f32 %v1213, %v1150
          %v1215 = vadd.f32 %v1214, %v1151
          %v1216 = vadd.f32 %v1215, %v1152
          %v1217 = vadd.f32 %v1216, %v1153
          %v1218 = vadd.f32 %v1217, %v1154
          %v1219 = vadd.f32 %v1218, %v1155
          %v1220 = vadd.f32 %v1219, %v1156
          %v1221 = vadd.f32 %v1220, %v1157
          %v1222 = vadd.f32 %v1221, %v1158
          %v1223 = vadd.f32 %v1222, %v1159
          %v1224 = vadd.f32 %v1223, %v1160
          %v1225 = vadd.f32 %v1224, %v1161
          %v1226 = vadd.f32 %v1225, %v1162
          %v1227 = vadd.f32 %v1226, %v1163
          %v1228 = vadd.f32 %v1227, %v1164
          %v1229 = vadd.f32 %v1228, %v1165
          %v1230 = vadd.f32 %v1229, %v1166
          %v1231 = vadd.f32 %v1230, %v1167
          %v1232 = vadd.f32 %v1231, %v1168
          %v1233 = vadd.f32 %v1232, %v1169
          %v1234 = vadd.f32 %v1233, %v1170
          %v1235 = vadd.f32 %v1234, %v1171
          %v1236 = vadd.f32 %v1235, %v1172
          %v1237 = vadd.f32 %v1236, %v1173
          %v1238 = vadd.f32 %v1237, %v1174
          %v1239 = vadd.f32 %v1238, %v1175
          %v1240 = vadd.f32 %v1239, %v1176
          %v1241 = vadd.f32 %v1240, %v1177
          %v1242 = vadd.f32 %v1241, %v1178
          %v1243 = vadd.f32 %v1242, %v1179
          %v1244 = vadd.f32 %v1243, %v1180
          %v1245 = vadd.f32 %v1244, %v1181
          %v1246 = vadd.f32 %v1245, %v1182
          %v1247 = vadd.f32 %v1246, %v1183
          %v1248 = vadd.f32 %v1247, %v1184
          %v1249 = vadd.f32 %v1248, %v1185
          %v1250 = vadd.f32 %v1249, %v1186
          %v1251 = vadd.f32 %v1250, %v1187
          %v1252 = vadd.f32 %v1251, %v1188
          %v1253 = vadd.f32 %v1252, %v1189
          %v1254 = vadd.f32 %v1253, %v1190
          %v1255 = vadd.f32 %v1254, %v1191
          %v1256 = vadd.f32 %v1255, %v1192
          %v1257 = vadd.f32 %v1256, %v1193
          %v1258 = vadd.f32 %v1257, %v1194
          %v1259 = vadd.f32 %v1258, %v1195
          %v1260 = vadd.f32 %v1259, %v1196
          %v1261 = vadd.f32 %v1260, %v1197
          %v1262 = vadd.f32 %v1261, %v1198
          %v1263 = vadd.f32 %v1262, %v1199
          %v1264 = vadd.f32 %v1263, %v1200
          %v1265 = vrot.slane %v1264, 4
          %v1266 = vadd.f32 %v1264, %v1265
          %v1267 = vrot.slane %v1266, 2
          %v1268 = vadd.f32 %v1266, %v1267
          %v1269 = vrot.slane %v1268, 1
          %v1270 = vadd.f32 %v1268, %v1269
          %v1271 = vmul.f32 %v1137, %v1137
          %v1272 = vmul.f32 %v1138, %v1138
          %v1273 = vmul.f32 %v1139, %v1139
          %v1274 = vmul.f32 %v1140, %v1140
          %v1275 = vmul.f32 %v1141, %v1141
          %v1276 = vmul.f32 %v1142, %v1142
          %v1277 = vmul.f32 %v1143, %v1143
          %v1278 = vmul.f32 %v1144, %v1144
          %v1279 = vmul.f32 %v1145, %v1145
          %v1280 = vmul.f32 %v1146, %v1146
          %v1281 = vmul.f32 %v1147, %v1147
          %v1282 = vmul.f32 %v1148, %v1148
          %v1283 = vmul.f32 %v1149, %v1149
          %v1284 = vmul.f32 %v1150, %v1150
          %v1285 = vmul.f32 %v1151, %v1151
          %v1286 = vmul.f32 %v1152, %v1152
          %v1287 = vmul.f32 %v1153, %v1153
          %v1288 = vmul.f32 %v1154, %v1154
          %v1289 = vmul.f32 %v1155, %v1155
          %v1290 = vmul.f32 %v1156, %v1156
          %v1291 = vmul.f32 %v1157, %v1157
          %v1292 = vmul.f32 %v1158, %v1158
          %v1293 = vmul.f32 %v1159, %v1159
          %v1294 = vmul.f32 %v1160, %v1160
          %v1295 = vmul.f32 %v1161, %v1161
          %v1296 = vmul.f32 %v1162, %v1162
          %v1297 = vmul.f32 %v1163, %v1163
          %v1298 = vmul.f32 %v1164, %v1164
          %v1299 = vmul.f32 %v1165, %v1165
          %v1300 = vmul.f32 %v1166, %v1166
          %v1301 = vmul.f32 %v1167, %v1167
          %v1302 = vmul.f32 %v1168, %v1168
          %v1303 = vmul.f32 %v1169, %v1169
          %v1304 = vmul.f32 %v1170, %v1170
          %v1305 = vmul.f32 %v1171, %v1171
          %v1306 = vmul.f32 %v1172, %v1172
          %v1307 = vmul.f32 %v1173, %v1173
          %v1308 = vmul.f32 %v1174, %v1174
          %v1309 = vmul.f32 %v1175, %v1175
          %v1310 = vmul.f32 %v1176, %v1176
          %v1311 = vmul.f32 %v1177, %v1177
          %v1312 = vmul.f32 %v1178, %v1178
          %v1313 = vmul.f32 %v1179, %v1179
          %v1314 = vmul.f32 %v1180, %v1180
          %v1315 = vmul.f32 %v1181, %v1181
          %v1316 = vmul.f32 %v1182, %v1182
          %v1317 = vmul.f32 %v1183, %v1183
          %v1318 = vmul.f32 %v1184, %v1184
          %v1319 = vmul.f32 %v1185, %v1185
          %v1320 = vmul.f32 %v1186, %v1186
          %v1321 = vmul.f32 %v1187, %v1187
          %v1322 = vmul.f32 %v1188, %v1188
          %v1323 = vmul.f32 %v1189, %v1189
          %v1324 = vmul.f32 %v1190, %v1190
          %v1325 = vmul.f32 %v1191, %v1191
          %v1326 = vmul.f32 %v1192, %v1192
          %v1327 = vmul.f32 %v1193, %v1193
          %v1328 = vmul.f32 %v1194, %v1194
          %v1329 = vmul.f32 %v1195, %v1195
          %v1330 = vmul.f32 %v1196, %v1196
          %v1331 = vmul.f32 %v1197, %v1197
          %v1332 = vmul.f32 %v1198, %v1198
          %v1333 = vmul.f32 %v1199, %v1199
          %v1334 = vmul.f32 %v1200, %v1200
          %v1335 = vadd.f32 %v1271, %v1272
          %v1336 = vadd.f32 %v1335, %v1273
          %v1337 = vadd.f32 %v1336, %v1274
          %v1338 = vadd.f32 %v1337, %v1275
          %v1339 = vadd.f32 %v1338, %v1276
          %v1340 = vadd.f32 %v1339, %v1277
          %v1341 = vadd.f32 %v1340, %v1278
          %v1342 = vadd.f32 %v1341, %v1279
          %v1343 = vadd.f32 %v1342, %v1280
          %v1344 = vadd.f32 %v1343, %v1281
          %v1345 = vadd.f32 %v1344, %v1282
          %v1346 = vadd.f32 %v1345, %v1283
          %v1347 = vadd.f32 %v1346, %v1284
          %v1348 = vadd.f32 %v1347, %v1285
          %v1349 = vadd.f32 %v1348, %v1286
          %v1350 = vadd.f32 %v1349, %v1287
          %v1351 = vadd.f32 %v1350, %v1288
          %v1352 = vadd.f32 %v1351, %v1289
          %v1353 = vadd.f32 %v1352, %v1290
          %v1354 = vadd.f32 %v1353, %v1291
          %v1355 = vadd.f32 %v1354, %v1292
          %v1356 = vadd.f32 %v1355, %v1293
          %v1357 = vadd.f32 %v1356, %v1294
          %v1358 = vadd.f32 %v1357, %v1295
          %v1359 = vadd.f32 %v1358, %v1296
          %v1360 = vadd.f32 %v1359, %v1297
          %v1361 = vadd.f32 %v1360, %v1298
          %v1362 = vadd.f32 %v1361, %v1299
          %v1363 = vadd.f32 %v1362, %v1300
          %v1364 = vadd.f32 %v1363, %v1301
          %v1365 = vadd.f32 %v1364, %v1302
          %v1366 = vadd.f32 %v1365, %v1303
          %v1367 = vadd.f32 %v1366, %v1304
          %v1368 = vadd.f32 %v1367, %v1305
          %v1369 = vadd.f32 %v1368, %v1306
          %v1370 = vadd.f32 %v1369, %v1307
          %v1371 = vadd.f32 %v1370, %v1308
          %v1372 = vadd.f32 %v1371, %v1309
          %v1373 = vadd.f32 %v1372, %v1310
          %v1374 = vadd.f32 %v1373, %v1311
          %v1375 = vadd.f32 %v1374, %v1312
          %v1376 = vadd.f32 %v1375, %v1313
          %v1377 = vadd.f32 %v1376, %v1314
          %v1378 = vadd.f32 %v1377, %v1315
          %v1379 = vadd.f32 %v1378, %v1316
          %v1380 = vadd.f32 %v1379, %v1317
          %v1381 = vadd.f32 %v1380, %v1318
          %v1382 = vadd.f32 %v1381, %v1319
          %v1383 = vadd.f32 %v1382, %v1320
          %v1384 = vadd.f32 %v1383, %v1321
          %v1385 = vadd.f32 %v1384, %v1322
          %v1386 = vadd.f32 %v1385, %v1323
          %v1387 = vadd.f32 %v1386, %v1324
          %v1388 = vadd.f32 %v1387, %v1325
          %v1389 = vadd.f32 %v1388, %v1326
          %v1390 = vadd.f32 %v1389, %v1327
          %v1391 = vadd.f32 %v1390, %v1328
          %v1392 = vadd.f32 %v1391, %v1329
          %v1393 = vadd.f32 %v1392, %v1330
          %v1394 = vadd.f32 %v1393, %v1331
          %v1395 = vadd.f32 %v1394, %v1332
          %v1396 = vadd.f32 %v1395, %v1333
          %v1397 = vadd.f32 %v1396, %v1334
          %v1398 = vrot.slane %v1397, 4
          %v1399 = vadd.f32 %v1397, %v1398
          %v1400 = vrot.slane %v1399, 2
          %v1401 = vadd.f32 %v1399, %v1400
          %v1402 = vrot.slane %v1401, 1
          %v1403 = vadd.f32 %v1401, %v1402
          %vm1404 = vcmask 1040384
          %v1405 = vsel %vm1404, %v1270, %v1403
          %v1406 = vadd.f32 %v1201, %v1405
          %1407 = vst [vmem:[#allocation4] sm:$0x3] %v1406
          %p1408 = scmp.eq.s32.totalorder %s23, 1
          // Predicated region
          $region45: #{tpu_custom_call.1} parent=43 // pred_check
            %p1409 = pneg %p1408
          $region46: #{tpu_custom_call.1} parent=43 // pred_check_branch
            %1411 = sbr.rel (%p1409) target = $region48
          $region47: #{tpu_custom_call.1} parent=43 // pred_region
            %v1412 = vld [vmem:[#allocation4] sm:$0x1]
            %v1413 = vmul.f32 %v1412, 0.001
            %v1414 = vld [vmem:[#allocation4 + $0x1] sm:$0x1]
            %v1415 = vmul.f32 %v1414, 0.001
            %v1416 = vmul.f32 %v1413, %v1413
            %v1417 = vsub.f32 %v1415, %v1416
            %v1418 = vmax.f32 %v1417, 0.0
            %v1419 = vld [vmem:[%s3] sm:$0x1]
            %v1420 = vld [vmem:[%s3 + $0x1] sm:$0x1]
            %v1421 = vadd.f32 %v1418, 1e-05
            %v1422 = vrsqrt.pop %v1421
            %v1423 = vmul.f32 %v1422, %v1421
            %v1424 = vmul.f32 %v1423, %v1422
            %v1425 = vmul.f32 0.5, %v1424
            %v1426 = vsub.f32 1.5, %v1425
            %v1427 = vmul.f32 %v1422, %v1426
            %vm1428 = vweird.f32 %v1421
            %vm1429 = vweird.f32 %v1422
            %vm1430 = vmor %vm1428, %vm1429
            %v1431 = vsel %vm1430, %v1422, %v1427
            %v1432 = vmul.f32 %v1419, %v1431
            %1433 = vst [vmem:[#allocation3] sm:$0x1] %v1432
            %v1434 = vmul.f32 %v1413, %v1432
            %v1435 = vsub.f32 %v1420, %v1434
            %1436 = vst [vmem:[#allocation3 + $0x1] sm:$0x1] %v1435
          $region48: #{tpu_custom_call.1} parent=43 // pred_fallthru
            _
        $region44: #{tpu_custom_call.1} parent=35 // pred_fallthru
          _
        %p1437 = scmp.eq.s32.totalorder %s22, 1
        // Predicated region
        $region49: #{tpu_custom_call.1} parent=35 // pred_check
          %p1438 = pneg %p1437
        $region50: #{tpu_custom_call.1} parent=35 // pred_check_branch
          %1440 = sbr.rel (%p1438) target = $region52
        $region51: #{tpu_custom_call.1} parent=35 // pred_region
          %s1441 = scalar_lea.vmem [#allocation2], %s232
          %v1442 = vld [vmem:[%s1441] sm:$0xff]
          %v1443 = vld [vmem:[%s1441 + $0x8] sm:$0xff]
          %v1444 = vld [vmem:[%s1441 + $0x10] sm:$0xff]
          %v1445 = vld [vmem:[%s1441 + $0x18] sm:$0xff]
          %v1446 = vld [vmem:[%s1441 + $0x20] sm:$0xff]
          %v1447 = vld [vmem:[%s1441 + $0x28] sm:$0xff]
          %v1448 = vld [vmem:[%s1441 + $0x30] sm:$0xff]
          %v1449 = vld [vmem:[%s1441 + $0x38] sm:$0xff]
          %v1450 = vld [vmem:[%s1441 + $0x40] sm:$0xff]
          %v1451 = vld [vmem:[%s1441 + $0x48] sm:$0xff]
          %v1452 = vld [vmem:[%s1441 + $0x50] sm:$0xff]
          %v1453 = vld [vmem:[%s1441 + $0x58] sm:$0xff]
          %v1454 = vld [vmem:[%s1441 + $0x60] sm:$0xff]
          %v1455 = vld [vmem:[%s1441 + $0x68] sm:$0xff]
          %v1456 = vld [vmem:[%s1441 + $0x70] sm:$0xff]
          %v1457 = vld [vmem:[%s1441 + $0x78] sm:$0xff]
          %v1458 = vld [vmem:[%s1441 + $0x80] sm:$0xff]
          %v1459 = vld [vmem:[%s1441 + $0x88] sm:$0xff]
          %v1460 = vld [vmem:[%s1441 + $0x90] sm:$0xff]
          %v1461 = vld [vmem:[%s1441 + $0x98] sm:$0xff]
          %v1462 = vld [vmem:[%s1441 + $0xa0] sm:$0xff]
          %v1463 = vld [vmem:[%s1441 + $0xa8] sm:$0xff]
          %v1464 = vld [vmem:[%s1441 + $0xb0] sm:$0xff]
          %v1465 = vld [vmem:[%s1441 + $0xb8] sm:$0xff]
          %v1466 = vld [vmem:[%s1441 + $0xc0] sm:$0xff]
          %v1467 = vld [vmem:[%s1441 + $0xc8] sm:$0xff]
          %v1468 = vld [vmem:[%s1441 + $0xd0] sm:$0xff]
          %v1469 = vld [vmem:[%s1441 + $0xd8] sm:$0xff]
          %v1470 = vld [vmem:[%s1441 + $0xe0] sm:$0xff]
          %v1471 = vld [vmem:[%s1441 + $0xe8] sm:$0xff]
          %v1472 = vld [vmem:[%s1441 + $0xf0] sm:$0xff]
          %v1473 = vld [vmem:[%s1441 + $0xf8] sm:$0xff]
          %v1474 = vld [vmem:[%s1441 + $0x100] sm:$0xff]
          %v1475 = vld [vmem:[%s1441 + $0x108] sm:$0xff]
          %v1476 = vld [vmem:[%s1441 + $0x110] sm:$0xff]
          %v1477 = vld [vmem:[%s1441 + $0x118] sm:$0xff]
          %v1478 = vld [vmem:[%s1441 + $0x120] sm:$0xff]
          %v1479 = vld [vmem:[%s1441 + $0x128] sm:$0xff]
          %v1480 = vld [vmem:[%s1441 + $0x130] sm:$0xff]
          %v1481 = vld [vmem:[%s1441 + $0x138] sm:$0xff]
          %v1482 = vld [vmem:[%s1441 + $0x140] sm:$0xff]
          %v1483 = vld [vmem:[%s1441 + $0x148] sm:$0xff]
          %v1484 = vld [vmem:[%s1441 + $0x150] sm:$0xff]
          %v1485 = vld [vmem:[%s1441 + $0x158] sm:$0xff]
          %v1486 = vld [vmem:[%s1441 + $0x160] sm:$0xff]
          %v1487 = vld [vmem:[%s1441 + $0x168] sm:$0xff]
          %v1488 = vld [vmem:[%s1441 + $0x170] sm:$0xff]
          %v1489 = vld [vmem:[%s1441 + $0x178] sm:$0xff]
          %v1490 = vld [vmem:[%s1441 + $0x180] sm:$0xff]
          %v1491 = vld [vmem:[%s1441 + $0x188] sm:$0xff]
          %v1492 = vld [vmem:[%s1441 + $0x190] sm:$0xff]
          %v1493 = vld [vmem:[%s1441 + $0x198] sm:$0xff]
          %v1494 = vld [vmem:[%s1441 + $0x1a0] sm:$0xff]
          %v1495 = vld [vmem:[%s1441 + $0x1a8] sm:$0xff]
          %v1496 = vld [vmem:[%s1441 + $0x1b0] sm:$0xff]
          %v1497 = vld [vmem:[%s1441 + $0x1b8] sm:$0xff]
          %v1498 = vld [vmem:[%s1441 + $0x1c0] sm:$0xff]
          %v1499 = vld [vmem:[%s1441 + $0x1c8] sm:$0xff]
          %v1500 = vld [vmem:[%s1441 + $0x1d0] sm:$0xff]
          %v1501 = vld [vmem:[%s1441 + $0x1d8] sm:$0xff]
          %v1502 = vld [vmem:[%s1441 + $0x1e0] sm:$0xff]
          %v1503 = vld [vmem:[%s1441 + $0x1e8] sm:$0xff]
          %v1504 = vld [vmem:[%s1441 + $0x1f0] sm:$0xff]
          %v1505 = vld [vmem:[%s1441 + $0x1f8] sm:$0xff]
          %v1506 = vld [vmem:[#allocation3] sm:$0x1]
          %v1507 = vperm.slane %v1506, 0
          %v1508 = vmul.f32 %v1442, %v1507
          %v1509 = vmul.f32 %v1443, %v1507
          %v1510 = vmul.f32 %v1444, %v1507
          %v1511 = vmul.f32 %v1445, %v1507
          %v1512 = vmul.f32 %v1446, %v1507
          %v1513 = vmul.f32 %v1447, %v1507
          %v1514 = vmul.f32 %v1448, %v1507
          %v1515 = vmul.f32 %v1449, %v1507
          %v1516 = vmul.f32 %v1450, %v1507
          %v1517 = vmul.f32 %v1451, %v1507
          %v1518 = vmul.f32 %v1452, %v1507
          %v1519 = vmul.f32 %v1453, %v1507
          %v1520 = vmul.f32 %v1454, %v1507
          %v1521 = vmul.f32 %v1455, %v1507
          %v1522 = vmul.f32 %v1456, %v1507
          %v1523 = vmul.f32 %v1457, %v1507
          %v1524 = vmul.f32 %v1458, %v1507
          %v1525 = vmul.f32 %v1459, %v1507
          %v1526 = vmul.f32 %v1460, %v1507
          %v1527 = vmul.f32 %v1461, %v1507
          %v1528 = vmul.f32 %v1462, %v1507
          %v1529 = vmul.f32 %v1463, %v1507
          %v1530 = vmul.f32 %v1464, %v1507
          %v1531 = vmul.f32 %v1465, %v1507
          %v1532 = vmul.f32 %v1466, %v1507
          %v1533 = vmul.f32 %v1467, %v1507
          %v1534 = vmul.f32 %v1468, %v1507
          %v1535 = vmul.f32 %v1469, %v1507
          %v1536 = vmul.f32 %v1470, %v1507
          %v1537 = vmul.f32 %v1471, %v1507
          %v1538 = vmul.f32 %v1472, %v1507
          %v1539 = vmul.f32 %v1473, %v1507
          %v1540 = vmul.f32 %v1474, %v1507
          %v1541 = vmul.f32 %v1475, %v1507
          %v1542 = vmul.f32 %v1476, %v1507
          %v1543 = vmul.f32 %v1477, %v1507
          %v1544 = vmul.f32 %v1478, %v1507
          %v1545 = vmul.f32 %v1479, %v1507
          %v1546 = vmul.f32 %v1480, %v1507
          %v1547 = vmul.f32 %v1481, %v1507
          %v1548 = vmul.f32 %v1482, %v1507
          %v1549 = vmul.f32 %v1483, %v1507
          %v1550 = vmul.f32 %v1484, %v1507
          %v1551 = vmul.f32 %v1485, %v1507
          %v1552 = vmul.f32 %v1486, %v1507
          %v1553 = vmul.f32 %v1487, %v1507
          %v1554 = vmul.f32 %v1488, %v1507
          %v1555 = vmul.f32 %v1489, %v1507
          %v1556 = vmul.f32 %v1490, %v1507
          %v1557 = vmul.f32 %v1491, %v1507
          %v1558 = vmul.f32 %v1492, %v1507
          %v1559 = vmul.f32 %v1493, %v1507
          %v1560 = vmul.f32 %v1494, %v1507
          %v1561 = vmul.f32 %v1495, %v1507
          %v1562 = vmul.f32 %v1496, %v1507
          %v1563 = vmul.f32 %v1497, %v1507
          %v1564 = vmul.f32 %v1498, %v1507
          %v1565 = vmul.f32 %v1499, %v1507
          %v1566 = vmul.f32 %v1500, %v1507
          %v1567 = vmul.f32 %v1501, %v1507
          %v1568 = vmul.f32 %v1502, %v1507
          %v1569 = vmul.f32 %v1503, %v1507
          %v1570 = vmul.f32 %v1504, %v1507
          %v1571 = vmul.f32 %v1505, %v1507
          %v1572 = vld [vmem:[#allocation3 + $0x1] sm:$0x1]
          %v1573 = vperm.slane %v1572, 0
          %v1574 = vadd.f32 %v1508, %v1573
          %v1575 = vadd.f32 %v1509, %v1573
          %v1576 = vadd.f32 %v1510, %v1573
          %v1577 = vadd.f32 %v1511, %v1573
          %v1578 = vadd.f32 %v1512, %v1573
          %v1579 = vadd.f32 %v1513, %v1573
          %v1580 = vadd.f32 %v1514, %v1573
          %v1581 = vadd.f32 %v1515, %v1573
          %v1582 = vadd.f32 %v1516, %v1573
          %v1583 = vadd.f32 %v1517, %v1573
          %v1584 = vadd.f32 %v1518, %v1573
          %v1585 = vadd.f32 %v1519, %v1573
          %v1586 = vadd.f32 %v1520, %v1573
          %v1587 = vadd.f32 %v1521, %v1573
          %v1588 = vadd.f32 %v1522, %v1573
          %v1589 = vadd.f32 %v1523, %v1573
          %v1590 = vadd.f32 %v1524, %v1573
          %v1591 = vadd.f32 %v1525, %v1573
          %v1592 = vadd.f32 %v1526, %v1573
          %v1593 = vadd.f32 %v1527, %v1573
          %v1594 = vadd.f32 %v1528, %v1573
          %v1595 = vadd.f32 %v1529, %v1573
          %v1596 = vadd.f32 %v1530, %v1573
          %v1597 = vadd.f32 %v1531, %v1573
          %v1598 = vadd.f32 %v1532, %v1573
          %v1599 = vadd.f32 %v1533, %v1573
          %v1600 = vadd.f32 %v1534, %v1573
          %v1601 = vadd.f32 %v1535, %v1573
          %v1602 = vadd.f32 %v1536, %v1573
          %v1603 = vadd.f32 %v1537, %v1573
          %v1604 = vadd.f32 %v1538, %v1573
          %v1605 = vadd.f32 %v1539, %v1573
          %v1606 = vadd.f32 %v1540, %v1573
          %v1607 = vadd.f32 %v1541, %v1573
          %v1608 = vadd.f32 %v1542, %v1573
          %v1609 = vadd.f32 %v1543, %v1573
          %v1610 = vadd.f32 %v1544, %v1573
          %v1611 = vadd.f32 %v1545, %v1573
          %v1612 = vadd.f32 %v1546, %v1573
          %v1613 = vadd.f32 %v1547, %v1573
          %v1614 = vadd.f32 %v1548, %v1573
          %v1615 = vadd.f32 %v1549, %v1573
          %v1616 = vadd.f32 %v1550, %v1573
          %v1617 = vadd.f32 %v1551, %v1573
          %v1618 = vadd.f32 %v1552, %v1573
          %v1619 = vadd.f32 %v1553, %v1573
          %v1620 = vadd.f32 %v1554, %v1573
          %v1621 = vadd.f32 %v1555, %v1573
          %v1622 = vadd.f32 %v1556, %v1573
          %v1623 = vadd.f32 %v1557, %v1573
          %v1624 = vadd.f32 %v1558, %v1573
          %v1625 = vadd.f32 %v1559, %v1573
          %v1626 = vadd.f32 %v1560, %v1573
          %v1627 = vadd.f32 %v1561, %v1573
          %v1628 = vadd.f32 %v1562, %v1573
          %v1629 = vadd.f32 %v1563, %v1573
          %v1630 = vadd.f32 %v1564, %v1573
          %v1631 = vadd.f32 %v1565, %v1573
          %v1632 = vadd.f32 %v1566, %v1573
          %v1633 = vadd.f32 %v1567, %v1573
          %v1634 = vadd.f32 %v1568, %v1573
          %v1635 = vadd.f32 %v1569, %v1573
          %v1636 = vadd.f32 %v1570, %v1573
          %v1637 = vadd.f32 %v1571, %v1573
          %v1638 = vmax.f32 %v1574, 0.0
          %v1639 = vmax.f32 %v1575, 0.0
          %v1640 = vmax.f32 %v1576, 0.0
          %v1641 = vmax.f32 %v1577, 0.0
          %v1642 = vmax.f32 %v1578, 0.0
          %v1643 = vmax.f32 %v1579, 0.0
          %v1644 = vmax.f32 %v1580, 0.0
          %v1645 = vmax.f32 %v1581, 0.0
          %v1646 = vmax.f32 %v1582, 0.0
          %v1647 = vmax.f32 %v1583, 0.0
          %v1648 = vmax.f32 %v1584, 0.0
          %v1649 = vmax.f32 %v1585, 0.0
          %v1650 = vmax.f32 %v1586, 0.0
          %v1651 = vmax.f32 %v1587, 0.0
          %v1652 = vmax.f32 %v1588, 0.0
          %v1653 = vmax.f32 %v1589, 0.0
          %v1654 = vmax.f32 %v1590, 0.0
          %v1655 = vmax.f32 %v1591, 0.0
          %v1656 = vmax.f32 %v1592, 0.0
          %v1657 = vmax.f32 %v1593, 0.0
          %v1658 = vmax.f32 %v1594, 0.0
          %v1659 = vmax.f32 %v1595, 0.0
          %v1660 = vmax.f32 %v1596, 0.0
          %v1661 = vmax.f32 %v1597, 0.0
          %v1662 = vmax.f32 %v1598, 0.0
          %v1663 = vmax.f32 %v1599, 0.0
          %v1664 = vmax.f32 %v1600, 0.0
          %v1665 = vmax.f32 %v1601, 0.0
          %v1666 = vmax.f32 %v1602, 0.0
          %v1667 = vmax.f32 %v1603, 0.0
          %v1668 = vmax.f32 %v1604, 0.0
          %v1669 = vmax.f32 %v1605, 0.0
          %v1670 = vmax.f32 %v1606, 0.0
          %v1671 = vmax.f32 %v1607, 0.0
          %v1672 = vmax.f32 %v1608, 0.0
          %v1673 = vmax.f32 %v1609, 0.0
          %v1674 = vmax.f32 %v1610, 0.0
          %v1675 = vmax.f32 %v1611, 0.0
          %v1676 = vmax.f32 %v1612, 0.0
          %v1677 = vmax.f32 %v1613, 0.0
          %v1678 = vmax.f32 %v1614, 0.0
          %v1679 = vmax.f32 %v1615, 0.0
          %v1680 = vmax.f32 %v1616, 0.0
          %v1681 = vmax.f32 %v1617, 0.0
          %v1682 = vmax.f32 %v1618, 0.0
          %v1683 = vmax.f32 %v1619, 0.0
          %v1684 = vmax.f32 %v1620, 0.0
          %v1685 = vmax.f32 %v1621, 0.0
          %v1686 = vmax.f32 %v1622, 0.0
          %v1687 = vmax.f32 %v1623, 0.0
          %v1688 = vmax.f32 %v1624, 0.0
          %v1689 = vmax.f32 %v1625, 0.0
          %v1690 = vmax.f32 %v1626, 0.0
          %v1691 = vmax.f32 %v1627, 0.0
          %v1692 = vmax.f32 %v1628, 0.0
          %v1693 = vmax.f32 %v1629, 0.0
          %v1694 = vmax.f32 %v1630, 0.0
          %v1695 = vmax.f32 %v1631, 0.0
          %v1696 = vmax.f32 %v1632, 0.0
          %v1697 = vmax.f32 %v1633, 0.0
          %v1698 = vmax.f32 %v1634, 0.0
          %v1699 = vmax.f32 %v1635, 0.0
          %v1700 = vmax.f32 %v1636, 0.0
          %v1701 = vmax.f32 %v1637, 0.0
          %v1702 = vpack.c.bf16 %v1639, %v1638
          %v1703 = vpack.c.bf16 %v1641, %v1640
          %v1704 = vpack.c.bf16 %v1643, %v1642
          %v1705 = vpack.c.bf16 %v1645, %v1644
          %v1706 = vpack.c.bf16 %v1647, %v1646
          %v1707 = vpack.c.bf16 %v1649, %v1648
          %v1708 = vpack.c.bf16 %v1651, %v1650
          %v1709 = vpack.c.bf16 %v1653, %v1652
          %v1710 = vpack.c.bf16 %v1655, %v1654
          %v1711 = vpack.c.bf16 %v1657, %v1656
          %v1712 = vpack.c.bf16 %v1659, %v1658
          %v1713 = vpack.c.bf16 %v1661, %v1660
          %v1714 = vpack.c.bf16 %v1663, %v1662
          %v1715 = vpack.c.bf16 %v1665, %v1664
          %v1716 = vpack.c.bf16 %v1667, %v1666
          %v1717 = vpack.c.bf16 %v1669, %v1668
          %v1718 = vpack.c.bf16 %v1671, %v1670
          %v1719 = vpack.c.bf16 %v1673, %v1672
          %v1720 = vpack.c.bf16 %v1675, %v1674
          %v1721 = vpack.c.bf16 %v1677, %v1676
          %v1722 = vpack.c.bf16 %v1679, %v1678
          %v1723 = vpack.c.bf16 %v1681, %v1680
          %v1724 = vpack.c.bf16 %v1683, %v1682
          %v1725 = vpack.c.bf16 %v1685, %v1684
          %v1726 = vpack.c.bf16 %v1687, %v1686
          %v1727 = vpack.c.bf16 %v1689, %v1688
          %v1728 = vpack.c.bf16 %v1691, %v1690
          %v1729 = vpack.c.bf16 %v1693, %v1692
          %v1730 = vpack.c.bf16 %v1695, %v1694
          %v1731 = vpack.c.bf16 %v1697, %v1696
          %v1732 = vpack.c.bf16 %v1699, %v1698
          %v1733 = vpack.c.bf16 %v1701, %v1700
          %v1734 = vld [vmem:[%s2] sm:$0xf]
          %v1735 = vld [vmem:[%s2 + $0x4] sm:$0xf]
          %v1736 = vld [vmem:[%s2 + $0x8] sm:$0xf]
          %v1737 = vld [vmem:[%s2 + $0xc] sm:$0xf]
          %v1738 = vld [vmem:[%s2 + $0x10] sm:$0xf]
          %v1739 = vld [vmem:[%s2 + $0x14] sm:$0xf]
          %v1740 = vld [vmem:[%s2 + $0x18] sm:$0xf]
          %v1741 = vld [vmem:[%s2 + $0x1c] sm:$0xf]
          %v1742 = vld [vmem:[%s2 + $0x20] sm:$0xf]
          %v1743 = vld [vmem:[%s2 + $0x24] sm:$0xf]
          %v1744 = vld [vmem:[%s2 + $0x28] sm:$0xf]
          %v1745 = vld [vmem:[%s2 + $0x2c] sm:$0xf]
          %v1746 = vld [vmem:[%s2 + $0x30] sm:$0xf]
          %v1747 = vld [vmem:[%s2 + $0x34] sm:$0xf]
          %v1748 = vld [vmem:[%s2 + $0x38] sm:$0xf]
          %v1749 = vld [vmem:[%s2 + $0x3c] sm:$0xf]
          %v1766 = vunpack.c.l.b16 %v1734
          %v1767 = vunpack.c.l.b16 %v1735
          %v1768 = vunpack.c.l.b16 %v1736
          %v1769 = vunpack.c.l.b16 %v1737
          %v1770 = vunpack.c.l.b16 %v1738
          %v1771 = vunpack.c.l.b16 %v1739
          %v1772 = vunpack.c.l.b16 %v1740
          %v1773 = vunpack.c.l.b16 %v1741
          %v1774 = vunpack.c.l.b16 %v1742
          %v1775 = vunpack.c.l.b16 %v1743
          %v1776 = vunpack.c.l.b16 %v1744
          %v1777 = vunpack.c.l.b16 %v1745
          %v1778 = vunpack.c.l.b16 %v1746
          %v1779 = vunpack.c.l.b16 %v1747
          %v1780 = vunpack.c.l.b16 %v1748
          %v1781 = vunpack.c.l.b16 %v1749
          %v1782 = vpack.c.b16 %v1767, %v1766
          %v1783 = vpack.c.b16 %v1769, %v1768
          %v1784 = vpack.c.b16 %v1771, %v1770
          %v1785 = vpack.c.b16 %v1773, %v1772
          %v1786 = vpack.c.b16 %v1775, %v1774
          %v1787 = vpack.c.b16 %v1777, %v1776
          %v1788 = vpack.c.b16 %v1779, %v1778
          %v1789 = vpack.c.b16 %v1781, %v1780
          %1798 = vmatpush.bf16.msra.mxu0 %v1789
          %1799 = vmatpush.bf16.msra.mxu0 %v1788
          %1800 = vmatpush.bf16.msra.mxu0 %v1787
          %1801 = vmatpush.bf16.msra.mxu0 %v1786
          %1802 = vmatpush.bf16.msra.mxu0 %v1785
          %1803 = vmatpush.bf16.msra.mxu0 %v1784
          %1804 = vmatpush.bf16.msra.mxu0 %v1783
          %1805 = vmatpush.bf16.msra.mxu0 %v1782
          %1806 = vmatmul.bf16.gmra.mxu0 %v1702
          %v1807 = vpop.f32.mrf.mxu0
          %v1808 = vadd.f32 0.0, %v1807
          %v1809 = vpop.f32.mrf.mxu0
          %v1810 = vadd.f32 0.0, %v1809
          %1811 = vmatmul.bf16.gmra.mxu0 %v1703
          %v1812 = vpop.f32.mrf.mxu0
          %v1813 = vadd.f32 0.0, %v1812
          %v1814 = vpop.f32.mrf.mxu0
          %v1815 = vadd.f32 0.0, %v1814
          %1816 = vmatmul.bf16.gmra.mxu0 %v1704
          %v1817 = vpop.f32.mrf.mxu0
          %v1818 = vadd.f32 0.0, %v1817
          %v1819 = vpop.f32.mrf.mxu0
          %v1820 = vadd.f32 0.0, %v1819
          %1821 = vmatmul.bf16.gmra.mxu0 %v1705
          %v1822 = vpop.f32.mrf.mxu0
          %v1823 = vadd.f32 0.0, %v1822
          %v1824 = vpop.f32.mrf.mxu0
          %v1825 = vadd.f32 0.0, %v1824
          %1826 = vmatmul.bf16.gmra.mxu0 %v1706
          %v1827 = vpop.f32.mrf.mxu0
          %v1828 = vadd.f32 0.0, %v1827
          %v1829 = vpop.f32.mrf.mxu0
          %v1830 = vadd.f32 0.0, %v1829
          %1831 = vmatmul.bf16.gmra.mxu0 %v1707
          %v1832 = vpop.f32.mrf.mxu0
          %v1833 = vadd.f32 0.0, %v1832
          %v1834 = vpop.f32.mrf.mxu0
          %v1835 = vadd.f32 0.0, %v1834
          %1836 = vmatmul.bf16.gmra.mxu0 %v1708
          %v1837 = vpop.f32.mrf.mxu0
          %v1838 = vadd.f32 0.0, %v1837
          %v1839 = vpop.f32.mrf.mxu0
          %v1840 = vadd.f32 0.0, %v1839
          %1841 = vmatmul.bf16.gmra.mxu0 %v1709
          %v1842 = vpop.f32.mrf.mxu0
          %v1843 = vadd.f32 0.0, %v1842
          %v1844 = vpop.f32.mrf.mxu0
          %v1845 = vadd.f32 0.0, %v1844
          %1846 = vmatmul.bf16.gmra.mxu0 %v1710
          %v1847 = vpop.f32.mrf.mxu0
          %v1848 = vadd.f32 0.0, %v1847
          %v1849 = vpop.f32.mrf.mxu0
          %v1850 = vadd.f32 0.0, %v1849
          %1851 = vmatmul.bf16.gmra.mxu0 %v1711
          %v1852 = vpop.f32.mrf.mxu0
          %v1853 = vadd.f32 0.0, %v1852
          %v1854 = vpop.f32.mrf.mxu0
          %v1855 = vadd.f32 0.0, %v1854
          %1856 = vmatmul.bf16.gmra.mxu0 %v1712
          %v1857 = vpop.f32.mrf.mxu0
          %v1858 = vadd.f32 0.0, %v1857
          %v1859 = vpop.f32.mrf.mxu0
          %v1860 = vadd.f32 0.0, %v1859
          %1861 = vmatmul.bf16.gmra.mxu0 %v1713
          %v1862 = vpop.f32.mrf.mxu0
          %v1863 = vadd.f32 0.0, %v1862
          %v1864 = vpop.f32.mrf.mxu0
          %v1865 = vadd.f32 0.0, %v1864
          %1866 = vmatmul.bf16.gmra.mxu0 %v1714
          %v1867 = vpop.f32.mrf.mxu0
          %v1868 = vadd.f32 0.0, %v1867
          %v1869 = vpop.f32.mrf.mxu0
          %v1870 = vadd.f32 0.0, %v1869
          %1871 = vmatmul.bf16.gmra.mxu0 %v1715
          %v1872 = vpop.f32.mrf.mxu0
          %v1873 = vadd.f32 0.0, %v1872
          %v1874 = vpop.f32.mrf.mxu0
          %v1875 = vadd.f32 0.0, %v1874
          %1876 = vmatmul.bf16.gmra.mxu0 %v1716
          %v1877 = vpop.f32.mrf.mxu0
          %v1878 = vadd.f32 0.0, %v1877
          %v1879 = vpop.f32.mrf.mxu0
          %v1880 = vadd.f32 0.0, %v1879
          %1881 = vmatmul.bf16.gmra.mxu0 %v1717
          %v1882 = vpop.f32.mrf.mxu0
          %v1883 = vadd.f32 0.0, %v1882
          %v1884 = vpop.f32.mrf.mxu0
          %v1885 = vadd.f32 0.0, %v1884
          %1886 = vmatmul.bf16.gmra.mxu0 %v1718
          %v1887 = vpop.f32.mrf.mxu0
          %v1888 = vadd.f32 0.0, %v1887
          %v1889 = vpop.f32.mrf.mxu0
          %v1890 = vadd.f32 0.0, %v1889
          %1891 = vmatmul.bf16.gmra.mxu0 %v1719
          %v1892 = vpop.f32.mrf.mxu0
          %v1893 = vadd.f32 0.0, %v1892
          %v1894 = vpop.f32.mrf.mxu0
          %v1895 = vadd.f32 0.0, %v1894
          %1896 = vmatmul.bf16.gmra.mxu0 %v1720
          %v1897 = vpop.f32.mrf.mxu0
          %v1898 = vadd.f32 0.0, %v1897
          %v1899 = vpop.f32.mrf.mxu0
          %v1900 = vadd.f32 0.0, %v1899
          %1901 = vmatmul.bf16.gmra.mxu0 %v1721
          %v1902 = vpop.f32.mrf.mxu0
          %v1903 = vadd.f32 0.0, %v1902
          %v1904 = vpop.f32.mrf.mxu0
          %v1905 = vadd.f32 0.0, %v1904
          %1906 = vmatmul.bf16.gmra.mxu0 %v1722
          %v1907 = vpop.f32.mrf.mxu0
          %v1908 = vadd.f32 0.0, %v1907
          %v1909 = vpop.f32.mrf.mxu0
          %v1910 = vadd.f32 0.0, %v1909
          %1911 = vmatmul.bf16.gmra.mxu0 %v1723
          %v1912 = vpop.f32.mrf.mxu0
          %v1913 = vadd.f32 0.0, %v1912
          %v1914 = vpop.f32.mrf.mxu0
          %v1915 = vadd.f32 0.0, %v1914
          %1916 = vmatmul.bf16.gmra.mxu0 %v1724
          %v1917 = vpop.f32.mrf.mxu0
          %v1918 = vadd.f32 0.0, %v1917
          %v1919 = vpop.f32.mrf.mxu0
          %v1920 = vadd.f32 0.0, %v1919
          %1921 = vmatmul.bf16.gmra.mxu0 %v1725
          %v1922 = vpop.f32.mrf.mxu0
          %v1923 = vadd.f32 0.0, %v1922
          %v1924 = vpop.f32.mrf.mxu0
          %v1925 = vadd.f32 0.0, %v1924
          %1926 = vmatmul.bf16.gmra.mxu0 %v1726
          %v1927 = vpop.f32.mrf.mxu0
          %v1928 = vadd.f32 0.0, %v1927
          %v1929 = vpop.f32.mrf.mxu0
          %v1930 = vadd.f32 0.0, %v1929
          %1931 = vmatmul.bf16.gmra.mxu0 %v1727
          %v1932 = vpop.f32.mrf.mxu0
          %v1933 = vadd.f32 0.0, %v1932
          %v1934 = vpop.f32.mrf.mxu0
          %v1935 = vadd.f32 0.0, %v1934
          %1936 = vmatmul.bf16.gmra.mxu0 %v1728
          %v1937 = vpop.f32.mrf.mxu0
          %v1938 = vadd.f32 0.0, %v1937
          %v1939 = vpop.f32.mrf.mxu0
          %v1940 = vadd.f32 0.0, %v1939
          %1941 = vmatmul.bf16.gmra.mxu0 %v1729
          %v1942 = vpop.f32.mrf.mxu0
          %v1943 = vadd.f32 0.0, %v1942
          %v1944 = vpop.f32.mrf.mxu0
          %v1945 = vadd.f32 0.0, %v1944
          %1946 = vmatmul.bf16.gmra.mxu0 %v1730
          %v1947 = vpop.f32.mrf.mxu0
          %v1948 = vadd.f32 0.0, %v1947
          %v1949 = vpop.f32.mrf.mxu0
          %v1950 = vadd.f32 0.0, %v1949
          %1951 = vmatmul.bf16.gmra.mxu0 %v1731
          %v1952 = vpop.f32.mrf.mxu0
          %v1953 = vadd.f32 0.0, %v1952
          %v1954 = vpop.f32.mrf.mxu0
          %v1955 = vadd.f32 0.0, %v1954
          %1956 = vmatmul.bf16.gmra.mxu0 %v1732
          %v1957 = vpop.f32.mrf.mxu0
          %v1958 = vadd.f32 0.0, %v1957
          %v1959 = vpop.f32.mrf.mxu0
          %v1960 = vadd.f32 0.0, %v1959
          %1961 = vmatmul.bf16.gmra.mxu0 %v1733
          %v1962 = vpop.f32.mrf.mxu0
          %v1963 = vadd.f32 0.0, %v1962
          %v1964 = vpop.f32.mrf.mxu0
          %v1965 = vadd.f32 0.0, %v1964
          %1966 = vdwg.mxu0
          %1967 = vst [vmem:[%s1441] sm:$0xff] %v1808
          %1968 = vst [vmem:[%s1441 + $0x8] sm:$0xff] %v1810
          %1969 = vst [vmem:[%s1441 + $0x10] sm:$0xff] %v1813
          %1970 = vst [vmem:[%s1441 + $0x18] sm:$0xff] %v1815
          %1971 = vst [vmem:[%s1441 + $0x20] sm:$0xff] %v1818
          %1972 = vst [vmem:[%s1441 + $0x28] sm:$0xff] %v1820
          %1973 = vst [vmem:[%s1441 + $0x30] sm:$0xff] %v1823
          %1974 = vst [vmem:[%s1441 + $0x38] sm:$0xff] %v1825
          %1975 = vst [vmem:[%s1441 + $0x40] sm:$0xff] %v1828
          %1976 = vst [vmem:[%s1441 + $0x48] sm:$0xff] %v1830
          %1977 = vst [vmem:[%s1441 + $0x50] sm:$0xff] %v1833
          %1978 = vst [vmem:[%s1441 + $0x58] sm:$0xff] %v1835
          %1979 = vst [vmem:[%s1441 + $0x60] sm:$0xff] %v1838
          %1980 = vst [vmem:[%s1441 + $0x68] sm:$0xff] %v1840
          %1981 = vst [vmem:[%s1441 + $0x70] sm:$0xff] %v1843
          %1982 = vst [vmem:[%s1441 + $0x78] sm:$0xff] %v1845
          %1983 = vst [vmem:[%s1441 + $0x80] sm:$0xff] %v1848
          %1984 = vst [vmem:[%s1441 + $0x88] sm:$0xff] %v1850
          %1985 = vst [vmem:[%s1441 + $0x90] sm:$0xff] %v1853
          %1986 = vst [vmem:[%s1441 + $0x98] sm:$0xff] %v1855
          %1987 = vst [vmem:[%s1441 + $0xa0] sm:$0xff] %v1858
          %1988 = vst [vmem:[%s1441 + $0xa8] sm:$0xff] %v1860
          %1989 = vst [vmem:[%s1441 + $0xb0] sm:$0xff] %v1863
          %1990 = vst [vmem:[%s1441 + $0xb8] sm:$0xff] %v1865
          %1991 = vst [vmem:[%s1441 + $0xc0] sm:$0xff] %v1868
          %1992 = vst [vmem:[%s1441 + $0xc8] sm:$0xff] %v1870
          %1993 = vst [vmem:[%s1441 + $0xd0] sm:$0xff] %v1873
          %1994 = vst [vmem:[%s1441 + $0xd8] sm:$0xff] %v1875
          %1995 = vst [vmem:[%s1441 + $0xe0] sm:$0xff] %v1878
          %1996 = vst [vmem:[%s1441 + $0xe8] sm:$0xff] %v1880
          %1997 = vst [vmem:[%s1441 + $0xf0] sm:$0xff] %v1883
          %1998 = vst [vmem:[%s1441 + $0xf8] sm:$0xff] %v1885
          %1999 = vst [vmem:[%s1441 + $0x100] sm:$0xff] %v1888
          %2000 = vst [vmem:[%s1441 + $0x108] sm:$0xff] %v1890
          %2001 = vst [vmem:[%s1441 + $0x110] sm:$0xff] %v1893
          %2002 = vst [vmem:[%s1441 + $0x118] sm:$0xff] %v1895
          %2003 = vst [vmem:[%s1441 + $0x120] sm:$0xff] %v1898
          %2004 = vst [vmem:[%s1441 + $0x128] sm:$0xff] %v1900
          %2005 = vst [vmem:[%s1441 + $0x130] sm:$0xff] %v1903
          %2006 = vst [vmem:[%s1441 + $0x138] sm:$0xff] %v1905
          %2007 = vst [vmem:[%s1441 + $0x140] sm:$0xff] %v1908
          %2008 = vst [vmem:[%s1441 + $0x148] sm:$0xff] %v1910
          %2009 = vst [vmem:[%s1441 + $0x150] sm:$0xff] %v1913
          %2010 = vst [vmem:[%s1441 + $0x158] sm:$0xff] %v1915
          %2011 = vst [vmem:[%s1441 + $0x160] sm:$0xff] %v1918
          %2012 = vst [vmem:[%s1441 + $0x168] sm:$0xff] %v1920
          %2013 = vst [vmem:[%s1441 + $0x170] sm:$0xff] %v1923
          %2014 = vst [vmem:[%s1441 + $0x178] sm:$0xff] %v1925
          %2015 = vst [vmem:[%s1441 + $0x180] sm:$0xff] %v1928
          %2016 = vst [vmem:[%s1441 + $0x188] sm:$0xff] %v1930
          %2017 = vst [vmem:[%s1441 + $0x190] sm:$0xff] %v1933
          %2018 = vst [vmem:[%s1441 + $0x198] sm:$0xff] %v1935
          %2019 = vst [vmem:[%s1441 + $0x1a0] sm:$0xff] %v1938
          %2020 = vst [vmem:[%s1441 + $0x1a8] sm:$0xff] %v1940
          %2021 = vst [vmem:[%s1441 + $0x1b0] sm:$0xff] %v1943
          %2022 = vst [vmem:[%s1441 + $0x1b8] sm:$0xff] %v1945
          %2023 = vst [vmem:[%s1441 + $0x1c0] sm:$0xff] %v1948
          %2024 = vst [vmem:[%s1441 + $0x1c8] sm:$0xff] %v1950
          %2025 = vst [vmem:[%s1441 + $0x1d0] sm:$0xff] %v1953
          %2026 = vst [vmem:[%s1441 + $0x1d8] sm:$0xff] %v1955
          %2027 = vst [vmem:[%s1441 + $0x1e0] sm:$0xff] %v1958
          %2028 = vst [vmem:[%s1441 + $0x1e8] sm:$0xff] %v1960
          %2029 = vst [vmem:[%s1441 + $0x1f0] sm:$0xff] %v1963
          %2030 = vst [vmem:[%s1441 + $0x1f8] sm:$0xff] %v1965
          %v2031 = vlaneseq
          %v2032 = vshrl.u32 %v2031, 7
          %v2033 = vadd.s32 %v2032, 8
          %v2034 = vadd.s32 %v2032, 16
          %v2035 = vadd.s32 %v2032, 24
          %v2036 = vadd.s32 %v2032, 32
          %v2037 = vadd.s32 %v2032, 40
          %v2038 = vadd.s32 %v2032, 48
          %v2039 = vadd.s32 %v2032, 56
          %v2040 = vadd.s32 %v2032, 64
          %v2041 = vadd.s32 %v2032, 72
          %v2042 = vadd.s32 %v2032, 80
          %v2043 = vadd.s32 %v2032, 88
          %v2044 = vadd.s32 %v2032, 96
          %v2045 = vadd.s32 %v2032, 104
          %v2046 = vadd.s32 %v2032, 112
          %v2047 = vadd.s32 %v2032, 120
          %v2048 = vadd.s32 %v2032, 128
          %v2049 = vadd.s32 %v2032, 136
          %v2050 = vadd.s32 %v2032, 144
          %v2051 = vadd.s32 %v2032, 152
          %v2052 = vadd.s32 %v2032, 160
          %v2053 = vadd.s32 %v2032, 168
          %v2054 = vadd.s32 %v2032, 176
          %v2055 = vadd.s32 %v2032, 184
          %v2056 = vadd.s32 %v2032, 192
          %v2057 = vadd.s32 %v2032, 200
          %v2058 = vadd.s32 %v2032, 208
          %v2059 = vadd.s32 %v2032, 216
          %v2060 = vadd.s32 %v2032, 224
          %v2061 = vadd.s32 %v2032, 232
          %v2062 = vadd.s32 %v2032, 240
          %v2063 = vadd.s32 %v2032, 248
          %v2064 = vadd.s32 %v2032, 256
          %v2065 = vadd.s32 %v2032, 264
          %v2066 = vadd.s32 %v2032, 272
          %v2067 = vadd.s32 %v2032, 280
          %v2068 = vadd.s32 %v2032, 288
          %v2069 = vadd.s32 %v2032, 296
          %v2070 = vadd.s32 %v2032, 304
          %v2071 = vadd.s32 %v2032, 312
          %v2072 = vadd.s32 %v2032, 320
          %v2073 = vadd.s32 %v2032, 328
          %v2074 = vadd.s32 %v2032, 336
          %v2075 = vadd.s32 %v2032, 344
          %v2076 = vadd.s32 %v2032, 352
          %v2077 = vadd.s32 %v2032, 360
          %v2078 = vadd.s32 %v2032, 368
          %v2079 = vadd.s32 %v2032, 376
          %v2080 = vadd.s32 %v2032, 384
          %v2081 = vadd.s32 %v2032, 392
          %v2082 = vadd.s32 %v2032, 400
          %v2083 = vadd.s32 %v2032, 408
          %v2084 = vadd.s32 %v2032, 416
          %v2085 = vadd.s32 %v2032, 424
          %v2086 = vadd.s32 %v2032, 432
          %v2087 = vadd.s32 %v2032, 440
          %v2088 = vadd.s32 %v2032, 448
          %v2089 = vadd.s32 %v2032, 456
          %v2090 = vadd.s32 %v2032, 464
          %v2091 = vadd.s32 %v2032, 472
          %v2092 = vadd.s32 %v2032, 480
          %v2093 = vadd.s32 %v2032, 488
          %v2094 = vadd.s32 %v2032, 496
          %v2095 = vadd.s32 %v2032, 504
          %v2096 = vstv %s232
          %v2097 = vadd.s32 %v2096, %v2032
          %v2098 = vadd.s32 %v2096, %v2033
          %v2099 = vadd.s32 %v2096, %v2034
          %v2100 = vadd.s32 %v2096, %v2035
          %v2101 = vadd.s32 %v2096, %v2036
          %v2102 = vadd.s32 %v2096, %v2037
          %v2103 = vadd.s32 %v2096, %v2038
          %v2104 = vadd.s32 %v2096, %v2039
          %v2105 = vadd.s32 %v2096, %v2040
          %v2106 = vadd.s32 %v2096, %v2041
          %v2107 = vadd.s32 %v2096, %v2042
          %v2108 = vadd.s32 %v2096, %v2043
          %v2109 = vadd.s32 %v2096, %v2044
          %v2110 = vadd.s32 %v2096, %v2045
          %v2111 = vadd.s32 %v2096, %v2046
          %v2112 = vadd.s32 %v2096, %v2047
          %v2113 = vadd.s32 %v2096, %v2048
          %v2114 = vadd.s32 %v2096, %v2049
          %v2115 = vadd.s32 %v2096, %v2050
          %v2116 = vadd.s32 %v2096, %v2051
          %v2117 = vadd.s32 %v2096, %v2052
          %v2118 = vadd.s32 %v2096, %v2053
          %v2119 = vadd.s32 %v2096, %v2054
          %v2120 = vadd.s32 %v2096, %v2055
          %v2121 = vadd.s32 %v2096, %v2056
          %v2122 = vadd.s32 %v2096, %v2057
          %v2123 = vadd.s32 %v2096, %v2058
          %v2124 = vadd.s32 %v2096, %v2059
          %v2125 = vadd.s32 %v2096, %v2060
          %v2126 = vadd.s32 %v2096, %v2061
          %v2127 = vadd.s32 %v2096, %v2062
          %v2128 = vadd.s32 %v2096, %v2063
          %v2129 = vadd.s32 %v2096, %v2064
          %v2130 = vadd.s32 %v2096, %v2065
          %v2131 = vadd.s32 %v2096, %v2066
          %v2132 = vadd.s32 %v2096, %v2067
          %v2133 = vadd.s32 %v2096, %v2068
          %v2134 = vadd.s32 %v2096, %v2069
          %v2135 = vadd.s32 %v2096, %v2070
          %v2136 = vadd.s32 %v2096, %v2071
          %v2137 = vadd.s32 %v2096, %v2072
          %v2138 = vadd.s32 %v2096, %v2073
          %v2139 = vadd.s32 %v2096, %v2074
          %v2140 = vadd.s32 %v2096, %v2075
          %v2141 = vadd.s32 %v2096, %v2076
          %v2142 = vadd.s32 %v2096, %v2077
          %v2143 = vadd.s32 %v2096, %v2078
          %v2144 = vadd.s32 %v2096, %v2079
          %v2145 = vadd.s32 %v2096, %v2080
          %v2146 = vadd.s32 %v2096, %v2081
          %v2147 = vadd.s32 %v2096, %v2082
          %v2148 = vadd.s32 %v2096, %v2083
          %v2149 = vadd.s32 %v2096, %v2084
          %v2150 = vadd.s32 %v2096, %v2085
          %v2151 = vadd.s32 %v2096, %v2086
          %v2152 = vadd.s32 %v2096, %v2087
          %v2153 = vadd.s32 %v2096, %v2088
          %v2154 = vadd.s32 %v2096, %v2089
          %v2155 = vadd.s32 %v2096, %v2090
          %v2156 = vadd.s32 %v2096, %v2091
          %v2157 = vadd.s32 %v2096, %v2092
          %v2158 = vadd.s32 %v2096, %v2093
          %v2159 = vadd.s32 %v2096, %v2094
          %v2160 = vadd.s32 %v2096, %v2095
          %vm2161 = vcmp.lt.s32.totalorder %v2097, 1000
          %vm2162 = vcmp.lt.s32.totalorder %v2098, 1000
          %vm2163 = vcmp.lt.s32.totalorder %v2099, 1000
          %vm2164 = vcmp.lt.s32.totalorder %v2100, 1000
          %vm2165 = vcmp.lt.s32.totalorder %v2101, 1000
          %vm2166 = vcmp.lt.s32.totalorder %v2102, 1000
          %vm2167 = vcmp.lt.s32.totalorder %v2103, 1000
          %vm2168 = vcmp.lt.s32.totalorder %v2104, 1000
          %vm2169 = vcmp.lt.s32.totalorder %v2105, 1000
          %vm2170 = vcmp.lt.s32.totalorder %v2106, 1000
          %vm2171 = vcmp.lt.s32.totalorder %v2107, 1000
          %vm2172 = vcmp.lt.s32.totalorder %v2108, 1000
          %vm2173 = vcmp.lt.s32.totalorder %v2109, 1000
          %vm2174 = vcmp.lt.s32.totalorder %v2110, 1000
          %vm2175 = vcmp.lt.s32.totalorder %v2111, 1000
          %vm2176 = vcmp.lt.s32.totalorder %v2112, 1000
          %vm2177 = vcmp.lt.s32.totalorder %v2113, 1000
          %vm2178 = vcmp.lt.s32.totalorder %v2114, 1000
          %vm2179 = vcmp.lt.s32.totalorder %v2115, 1000
          %vm2180 = vcmp.lt.s32.totalorder %v2116, 1000
          %vm2181 = vcmp.lt.s32.totalorder %v2117, 1000
          %vm2182 = vcmp.lt.s32.totalorder %v2118, 1000
          %vm2183 = vcmp.lt.s32.totalorder %v2119, 1000
          %vm2184 = vcmp.lt.s32.totalorder %v2120, 1000
          %vm2185 = vcmp.lt.s32.totalorder %v2121, 1000
          %vm2186 = vcmp.lt.s32.totalorder %v2122, 1000
          %vm2187 = vcmp.lt.s32.totalorder %v2123, 1000
          %vm2188 = vcmp.lt.s32.totalorder %v2124, 1000
          %vm2189 = vcmp.lt.s32.totalorder %v2125, 1000
          %vm2190 = vcmp.lt.s32.totalorder %v2126, 1000
          %vm2191 = vcmp.lt.s32.totalorder %v2127, 1000
          %vm2192 = vcmp.lt.s32.totalorder %v2128, 1000
          %vm2193 = vcmp.lt.s32.totalorder %v2129, 1000
          %vm2194 = vcmp.lt.s32.totalorder %v2130, 1000
          %vm2195 = vcmp.lt.s32.totalorder %v2131, 1000
          %vm2196 = vcmp.lt.s32.totalorder %v2132, 1000
          %vm2197 = vcmp.lt.s32.totalorder %v2133, 1000
          %vm2198 = vcmp.lt.s32.totalorder %v2134, 1000
          %vm2199 = vcmp.lt.s32.totalorder %v2135, 1000
          %vm2200 = vcmp.lt.s32.totalorder %v2136, 1000
          %vm2201 = vcmp.lt.s32.totalorder %v2137, 1000
          %vm2202 = vcmp.lt.s32.totalorder %v2138, 1000
          %vm2203 = vcmp.lt.s32.totalorder %v2139, 1000
          %vm2204 = vcmp.lt.s32.totalorder %v2140, 1000
          %vm2205 = vcmp.lt.s32.totalorder %v2141, 1000
          %vm2206 = vcmp.lt.s32.totalorder %v2142, 1000
          %vm2207 = vcmp.lt.s32.totalorder %v2143, 1000
          %vm2208 = vcmp.lt.s32.totalorder %v2144, 1000
          %vm2209 = vcmp.lt.s32.totalorder %v2145, 1000
          %vm2210 = vcmp.lt.s32.totalorder %v2146, 1000
          %vm2211 = vcmp.lt.s32.totalorder %v2147, 1000
          %vm2212 = vcmp.lt.s32.totalorder %v2148, 1000
          %vm2213 = vcmp.lt.s32.totalorder %v2149, 1000
          %vm2214 = vcmp.lt.s32.totalorder %v2150, 1000
          %vm2215 = vcmp.lt.s32.totalorder %v2151, 1000
          %vm2216 = vcmp.lt.s32.totalorder %v2152, 1000
          %vm2217 = vcmp.lt.s32.totalorder %v2153, 1000
          %vm2218 = vcmp.lt.s32.totalorder %v2154, 1000
          %vm2219 = vcmp.lt.s32.totalorder %v2155, 1000
          %vm2220 = vcmp.lt.s32.totalorder %v2156, 1000
          %vm2221 = vcmp.lt.s32.totalorder %v2157, 1000
          %vm2222 = vcmp.lt.s32.totalorder %v2158, 1000
          %vm2223 = vcmp.lt.s32.totalorder %v2159, 1000
          %vm2224 = vcmp.lt.s32.totalorder %v2160, 1000
          %v2225 = vsel %vm2161, 1, 0
          %v2226 = vsel %vm2162, 1, 0
          %v2227 = vsel %vm2163, 1, 0
          %v2228 = vsel %vm2164, 1, 0
          %v2229 = vsel %vm2165, 1, 0
          %v2230 = vsel %vm2166, 1, 0
          %v2231 = vsel %vm2167, 1, 0
          %v2232 = vsel %vm2168, 1, 0
          %v2233 = vsel %vm2169, 1, 0
          %v2234 = vsel %vm2170, 1, 0
          %v2235 = vsel %vm2171, 1, 0
          %v2236 = vsel %vm2172, 1, 0
          %v2237 = vsel %vm2173, 1, 0
          %v2238 = vsel %vm2174, 1, 0
          %v2239 = vsel %vm2175, 1, 0
          %v2240 = vsel %vm2176, 1, 0
          %v2241 = vsel %vm2177, 1, 0
          %v2242 = vsel %vm2178, 1, 0
          %v2243 = vsel %vm2179, 1, 0
          %v2244 = vsel %vm2180, 1, 0
          %v2245 = vsel %vm2181, 1, 0
          %v2246 = vsel %vm2182, 1, 0
          %v2247 = vsel %vm2183, 1, 0
          %v2248 = vsel %vm2184, 1, 0
          %v2249 = vsel %vm2185, 1, 0
          %v2250 = vsel %vm2186, 1, 0
          %v2251 = vsel %vm2187, 1, 0
          %v2252 = vsel %vm2188, 1, 0
          %v2253 = vsel %vm2189, 1, 0
          %v2254 = vsel %vm2190, 1, 0
          %v2255 = vsel %vm2191, 1, 0
          %v2256 = vsel %vm2192, 1, 0
          %v2257 = vsel %vm2193, 1, 0
          %v2258 = vsel %vm2194, 1, 0
          %v2259 = vsel %vm2195, 1, 0
          %v2260 = vsel %vm2196, 1, 0
          %v2261 = vsel %vm2197, 1, 0
          %v2262 = vsel %vm2198, 1, 0
          %v2263 = vsel %vm2199, 1, 0
          %v2264 = vsel %vm2200, 1, 0
          %v2265 = vsel %vm2201, 1, 0
          %v2266 = vsel %vm2202, 1, 0
          %v2267 = vsel %vm2203, 1, 0
          %v2268 = vsel %vm2204, 1, 0
          %v2269 = vsel %vm2205, 1, 0
          %v2270 = vsel %vm2206, 1, 0
          %v2271 = vsel %vm2207, 1, 0
          %v2272 = vsel %vm2208, 1, 0
          %v2273 = vsel %vm2209, 1, 0
          %v2274 = vsel %vm2210, 1, 0
          %v2275 = vsel %vm2211, 1, 0
          %v2276 = vsel %vm2212, 1, 0
          %v2277 = vsel %vm2213, 1, 0
          %v2278 = vsel %vm2214, 1, 0
          %v2279 = vsel %vm2215, 1, 0
          %v2280 = vsel %vm2216, 1, 0
          %v2281 = vsel %vm2217, 1, 0
          %v2282 = vsel %vm2218, 1, 0
          %v2283 = vsel %vm2219, 1, 0
          %v2284 = vsel %vm2220, 1, 0
          %v2285 = vsel %vm2221, 1, 0
          %v2286 = vsel %vm2222, 1, 0
          %v2287 = vsel %vm2223, 1, 0
          %v2288 = vsel %vm2224, 1, 0
          %vm2289 = vcmp.eq.s32.totalorder %v2225, 1
          %vm2290 = vcmp.eq.s32.totalorder %v2226, 1
          %vm2291 = vcmp.eq.s32.totalorder %v2227, 1
          %vm2292 = vcmp.eq.s32.totalorder %v2228, 1
          %vm2293 = vcmp.eq.s32.totalorder %v2229, 1
          %vm2294 = vcmp.eq.s32.totalorder %v2230, 1
          %vm2295 = vcmp.eq.s32.totalorder %v2231, 1
          %vm2296 = vcmp.eq.s32.totalorder %v2232, 1
          %vm2297 = vcmp.eq.s32.totalorder %v2233, 1
          %vm2298 = vcmp.eq.s32.totalorder %v2234, 1
          %vm2299 = vcmp.eq.s32.totalorder %v2235, 1
          %vm2300 = vcmp.eq.s32.totalorder %v2236, 1
          %vm2301 = vcmp.eq.s32.totalorder %v2237, 1
          %vm2302 = vcmp.eq.s32.totalorder %v2238, 1
          %vm2303 = vcmp.eq.s32.totalorder %v2239, 1
          %vm2304 = vcmp.eq.s32.totalorder %v2240, 1
          %vm2305 = vcmp.eq.s32.totalorder %v2241, 1
          %vm2306 = vcmp.eq.s32.totalorder %v2242, 1
          %vm2307 = vcmp.eq.s32.totalorder %v2243, 1
          %vm2308 = vcmp.eq.s32.totalorder %v2244, 1
          %vm2309 = vcmp.eq.s32.totalorder %v2245, 1
          %vm2310 = vcmp.eq.s32.totalorder %v2246, 1
          %vm2311 = vcmp.eq.s32.totalorder %v2247, 1
          %vm2312 = vcmp.eq.s32.totalorder %v2248, 1
          %vm2313 = vcmp.eq.s32.totalorder %v2249, 1
          %vm2314 = vcmp.eq.s32.totalorder %v2250, 1
          %vm2315 = vcmp.eq.s32.totalorder %v2251, 1
          %vm2316 = vcmp.eq.s32.totalorder %v2252, 1
          %vm2317 = vcmp.eq.s32.totalorder %v2253, 1
          %vm2318 = vcmp.eq.s32.totalorder %v2254, 1
          %vm2319 = vcmp.eq.s32.totalorder %v2255, 1
          %vm2320 = vcmp.eq.s32.totalorder %v2256, 1
          %vm2321 = vcmp.eq.s32.totalorder %v2257, 1
          %vm2322 = vcmp.eq.s32.totalorder %v2258, 1
          %vm2323 = vcmp.eq.s32.totalorder %v2259, 1
          %vm2324 = vcmp.eq.s32.totalorder %v2260, 1
          %vm2325 = vcmp.eq.s32.totalorder %v2261, 1
          %vm2326 = vcmp.eq.s32.totalorder %v2262, 1
          %vm2327 = vcmp.eq.s32.totalorder %v2263, 1
          %vm2328 = vcmp.eq.s32.totalorder %v2264, 1
          %vm2329 = vcmp.eq.s32.totalorder %v2265, 1
          %vm2330 = vcmp.eq.s32.totalorder %v2266, 1
          %vm2331 = vcmp.eq.s32.totalorder %v2267, 1
          %vm2332 = vcmp.eq.s32.totalorder %v2268, 1
          %vm2333 = vcmp.eq.s32.totalorder %v2269, 1
          %vm2334 = vcmp.eq.s32.totalorder %v2270, 1
          %vm2335 = vcmp.eq.s32.totalorder %v2271, 1
          %vm2336 = vcmp.eq.s32.totalorder %v2272, 1
          %vm2337 = vcmp.eq.s32.totalorder %v2273, 1
          %vm2338 = vcmp.eq.s32.totalorder %v2274, 1
          %vm2339 = vcmp.eq.s32.totalorder %v2275, 1
          %vm2340 = vcmp.eq.s32.totalorder %v2276, 1
          %vm2341 = vcmp.eq.s32.totalorder %v2277, 1
          %vm2342 = vcmp.eq.s32.totalorder %v2278, 1
          %vm2343 = vcmp.eq.s32.totalorder %v2279, 1
          %vm2344 = vcmp.eq.s32.totalorder %v2280, 1
          %vm2345 = vcmp.eq.s32.totalorder %v2281, 1
          %vm2346 = vcmp.eq.s32.totalorder %v2282, 1
          %vm2347 = vcmp.eq.s32.totalorder %v2283, 1
          %vm2348 = vcmp.eq.s32.totalorder %v2284, 1
          %vm2349 = vcmp.eq.s32.totalorder %v2285, 1
          %vm2350 = vcmp.eq.s32.totalorder %v2286, 1
          %vm2351 = vcmp.eq.s32.totalorder %v2287, 1
          %vm2352 = vcmp.eq.s32.totalorder %v2288, 1
          %v2353 = vsel %vm2289, %v1808, 0.0
          %v2354 = vsel %vm2290, %v1810, 0.0
          %v2355 = vsel %vm2291, %v1813, 0.0
          %v2356 = vsel %vm2292, %v1815, 0.0
          %v2357 = vsel %vm2293, %v1818, 0.0
          %v2358 = vsel %vm2294, %v1820, 0.0
          %v2359 = vsel %vm2295, %v1823, 0.0
          %v2360 = vsel %vm2296, %v1825, 0.0
          %v2361 = vsel %vm2297, %v1828, 0.0
          %v2362 = vsel %vm2298, %v1830, 0.0
          %v2363 = vsel %vm2299, %v1833, 0.0
          %v2364 = vsel %vm2300, %v1835, 0.0
          %v2365 = vsel %vm2301, %v1838, 0.0
          %v2366 = vsel %vm2302, %v1840, 0.0
          %v2367 = vsel %vm2303, %v1843, 0.0
          %v2368 = vsel %vm2304, %v1845, 0.0
          %v2369 = vsel %vm2305, %v1848, 0.0
          %v2370 = vsel %vm2306, %v1850, 0.0
          %v2371 = vsel %vm2307, %v1853, 0.0
          %v2372 = vsel %vm2308, %v1855, 0.0
          %v2373 = vsel %vm2309, %v1858, 0.0
          %v2374 = vsel %vm2310, %v1860, 0.0
          %v2375 = vsel %vm2311, %v1863, 0.0
          %v2376 = vsel %vm2312, %v1865, 0.0
          %v2377 = vsel %vm2313, %v1868, 0.0
          %v2378 = vsel %vm2314, %v1870, 0.0
          %v2379 = vsel %vm2315, %v1873, 0.0
          %v2380 = vsel %vm2316, %v1875, 0.0
          %v2381 = vsel %vm2317, %v1878, 0.0
          %v2382 = vsel %vm2318, %v1880, 0.0
          %v2383 = vsel %vm2319, %v1883, 0.0
          %v2384 = vsel %vm2320, %v1885, 0.0
          %v2385 = vsel %vm2321, %v1888, 0.0
          %v2386 = vsel %vm2322, %v1890, 0.0
          %v2387 = vsel %vm2323, %v1893, 0.0
          %v2388 = vsel %vm2324, %v1895, 0.0
          %v2389 = vsel %vm2325, %v1898, 0.0
          %v2390 = vsel %vm2326, %v1900, 0.0
          %v2391 = vsel %vm2327, %v1903, 0.0
          %v2392 = vsel %vm2328, %v1905, 0.0
          %v2393 = vsel %vm2329, %v1908, 0.0
          %v2394 = vsel %vm2330, %v1910, 0.0
          %v2395 = vsel %vm2331, %v1913, 0.0
          %v2396 = vsel %vm2332, %v1915, 0.0
          %v2397 = vsel %vm2333, %v1918, 0.0
          %v2398 = vsel %vm2334, %v1920, 0.0
          %v2399 = vsel %vm2335, %v1923, 0.0
          %v2400 = vsel %vm2336, %v1925, 0.0
          %v2401 = vsel %vm2337, %v1928, 0.0
          %v2402 = vsel %vm2338, %v1930, 0.0
          %v2403 = vsel %vm2339, %v1933, 0.0
          %v2404 = vsel %vm2340, %v1935, 0.0
          %v2405 = vsel %vm2341, %v1938, 0.0
          %v2406 = vsel %vm2342, %v1940, 0.0
          %v2407 = vsel %vm2343, %v1943, 0.0
          %v2408 = vsel %vm2344, %v1945, 0.0
          %v2409 = vsel %vm2345, %v1948, 0.0
          %v2410 = vsel %vm2346, %v1950, 0.0
          %v2411 = vsel %vm2347, %v1953, 0.0
          %v2412 = vsel %vm2348, %v1955, 0.0
          %v2413 = vsel %vm2349, %v1958, 0.0
          %v2414 = vsel %vm2350, %v1960, 0.0
          %v2415 = vsel %vm2351, %v1963, 0.0
          %v2416 = vsel %vm2352, %v1965, 0.0
          %v2417 = vld [vmem:[#allocation4] sm:$0x3]
          %v2418 = vadd.f32 %v2353, %v2354
          %v2419 = vadd.f32 %v2418, %v2355
          %v2420 = vadd.f32 %v2419, %v2356
          %v2421 = vadd.f32 %v2420, %v2357
          %v2422 = vadd.f32 %v2421, %v2358
          %v2423 = vadd.f32 %v2422, %v2359
          %v2424 = vadd.f32 %v2423, %v2360
          %v2425 = vadd.f32 %v2424, %v2361
          %v2426 = vadd.f32 %v2425, %v2362
          %v2427 = vadd.f32 %v2426, %v2363
          %v2428 = vadd.f32 %v2427, %v2364
          %v2429 = vadd.f32 %v2428, %v2365
          %v2430 = vadd.f32 %v2429, %v2366
          %v2431 = vadd.f32 %v2430, %v2367
          %v2432 = vadd.f32 %v2431, %v2368
          %v2433 = vadd.f32 %v2432, %v2369
          %v2434 = vadd.f32 %v2433, %v2370
          %v2435 = vadd.f32 %v2434, %v2371
          %v2436 = vadd.f32 %v2435, %v2372
          %v2437 = vadd.f32 %v2436, %v2373
          %v2438 = vadd.f32 %v2437, %v2374
          %v2439 = vadd.f32 %v2438, %v2375
          %v2440 = vadd.f32 %v2439, %v2376
          %v2441 = vadd.f32 %v2440, %v2377
          %v2442 = vadd.f32 %v2441, %v2378
          %v2443 = vadd.f32 %v2442, %v2379
          %v2444 = vadd.f32 %v2443, %v2380
          %v2445 = vadd.f32 %v2444, %v2381
          %v2446 = vadd.f32 %v2445, %v2382
          %v2447 = vadd.f32 %v2446, %v2383
          %v2448 = vadd.f32 %v2447, %v2384
          %v2449 = vadd.f32 %v2448, %v2385
          %v2450 = vadd.f32 %v2449, %v2386
          %v2451 = vadd.f32 %v2450, %v2387
          %v2452 = vadd.f32 %v2451, %v2388
          %v2453 = vadd.f32 %v2452, %v2389
          %v2454 = vadd.f32 %v2453, %v2390
          %v2455 = vadd.f32 %v2454, %v2391
          %v2456 = vadd.f32 %v2455, %v2392
          %v2457 = vadd.f32 %v2456, %v2393
          %v2458 = vadd.f32 %v2457, %v2394
          %v2459 = vadd.f32 %v2458, %v2395
          %v2460 = vadd.f32 %v2459, %v2396
          %v2461 = vadd.f32 %v2460, %v2397
          %v2462 = vadd.f32 %v2461, %v2398
          %v2463 = vadd.f32 %v2462, %v2399
          %v2464 = vadd.f32 %v2463, %v2400
          %v2465 = vadd.f32 %v2464, %v2401
          %v2466 = vadd.f32 %v2465, %v2402
          %v2467 = vadd.f32 %v2466, %v2403
          %v2468 = vadd.f32 %v2467, %v2404
          %v2469 = vadd.f32 %v2468, %v2405
          %v2470 = vadd.f32 %v2469, %v2406
          %v2471 = vadd.f32 %v2470, %v2407
          %v2472 = vadd.f32 %v2471, %v2408
          %v2473 = vadd.f32 %v2472, %v2409
          %v2474 = vadd.f32 %v2473, %v2410
          %v2475 = vadd.f32 %v2474, %v2411
          %v2476 = vadd.f32 %v2475, %v2412
          %v2477 = vadd.f32 %v2476, %v2413
          %v2478 = vadd.f32 %v2477, %v2414
          %v2479 = vadd.f32 %v2478, %v2415
          %v2480 = vadd.f32 %v2479, %v2416
          %v2481 = vrot.slane %v2480, 4
          %v2482 = vadd.f32 %v2480, %v2481
          %v2483 = vrot.slane %v2482, 2
          %v2484 = vadd.f32 %v2482, %v2483
          %v2485 = vrot.slane %v2484, 1
          %v2486 = vadd.f32 %v2484, %v2485
          %v2487 = vmul.f32 %v2353, %v2353
          %v2488 = vmul.f32 %v2354, %v2354
          %v2489 = vmul.f32 %v2355, %v2355
          %v2490 = vmul.f32 %v2356, %v2356
          %v2491 = vmul.f32 %v2357, %v2357
          %v2492 = vmul.f32 %v2358, %v2358
          %v2493 = vmul.f32 %v2359, %v2359
          %v2494 = vmul.f32 %v2360, %v2360
          %v2495 = vmul.f32 %v2361, %v2361
          %v2496 = vmul.f32 %v2362, %v2362
          %v2497 = vmul.f32 %v2363, %v2363
          %v2498 = vmul.f32 %v2364, %v2364
          %v2499 = vmul.f32 %v2365, %v2365
          %v2500 = vmul.f32 %v2366, %v2366
          %v2501 = vmul.f32 %v2367, %v2367
          %v2502 = vmul.f32 %v2368, %v2368
          %v2503 = vmul.f32 %v2369, %v2369
          %v2504 = vmul.f32 %v2370, %v2370
          %v2505 = vmul.f32 %v2371, %v2371
          %v2506 = vmul.f32 %v2372, %v2372
          %v2507 = vmul.f32 %v2373, %v2373
          %v2508 = vmul.f32 %v2374, %v2374
          %v2509 = vmul.f32 %v2375, %v2375
          %v2510 = vmul.f32 %v2376, %v2376
          %v2511 = vmul.f32 %v2377, %v2377
          %v2512 = vmul.f32 %v2378, %v2378
          %v2513 = vmul.f32 %v2379, %v2379
          %v2514 = vmul.f32 %v2380, %v2380
          %v2515 = vmul.f32 %v2381, %v2381
          %v2516 = vmul.f32 %v2382, %v2382
          %v2517 = vmul.f32 %v2383, %v2383
          %v2518 = vmul.f32 %v2384, %v2384
          %v2519 = vmul.f32 %v2385, %v2385
          %v2520 = vmul.f32 %v2386, %v2386
          %v2521 = vmul.f32 %v2387, %v2387
          %v2522 = vmul.f32 %v2388, %v2388
          %v2523 = vmul.f32 %v2389, %v2389
          %v2524 = vmul.f32 %v2390, %v2390
          %v2525 = vmul.f32 %v2391, %v2391
          %v2526 = vmul.f32 %v2392, %v2392
          %v2527 = vmul.f32 %v2393, %v2393
          %v2528 = vmul.f32 %v2394, %v2394
          %v2529 = vmul.f32 %v2395, %v2395
          %v2530 = vmul.f32 %v2396, %v2396
          %v2531 = vmul.f32 %v2397, %v2397
          %v2532 = vmul.f32 %v2398, %v2398
          %v2533 = vmul.f32 %v2399, %v2399
          %v2534 = vmul.f32 %v2400, %v2400
          %v2535 = vmul.f32 %v2401, %v2401
          %v2536 = vmul.f32 %v2402, %v2402
          %v2537 = vmul.f32 %v2403, %v2403
          %v2538 = vmul.f32 %v2404, %v2404
          %v2539 = vmul.f32 %v2405, %v2405
          %v2540 = vmul.f32 %v2406, %v2406
          %v2541 = vmul.f32 %v2407, %v2407
          %v2542 = vmul.f32 %v2408, %v2408
          %v2543 = vmul.f32 %v2409, %v2409
          %v2544 = vmul.f32 %v2410, %v2410
          %v2545 = vmul.f32 %v2411, %v2411
          %v2546 = vmul.f32 %v2412, %v2412
          %v2547 = vmul.f32 %v2413, %v2413
          %v2548 = vmul.f32 %v2414, %v2414
          %v2549 = vmul.f32 %v2415, %v2415
          %v2550 = vmul.f32 %v2416, %v2416
          %v2551 = vadd.f32 %v2487, %v2488
          %v2552 = vadd.f32 %v2551, %v2489
          %v2553 = vadd.f32 %v2552, %v2490
          %v2554 = vadd.f32 %v2553, %v2491
          %v2555 = vadd.f32 %v2554, %v2492
          %v2556 = vadd.f32 %v2555, %v2493
          %v2557 = vadd.f32 %v2556, %v2494
          %v2558 = vadd.f32 %v2557, %v2495
          %v2559 = vadd.f32 %v2558, %v2496
          %v2560 = vadd.f32 %v2559, %v2497
          %v2561 = vadd.f32 %v2560, %v2498
          %v2562 = vadd.f32 %v2561, %v2499
          %v2563 = vadd.f32 %v2562, %v2500
          %v2564 = vadd.f32 %v2563, %v2501
          %v2565 = vadd.f32 %v2564, %v2502
          %v2566 = vadd.f32 %v2565, %v2503
          %v2567 = vadd.f32 %v2566, %v2504
          %v2568 = vadd.f32 %v2567, %v2505
          %v2569 = vadd.f32 %v2568, %v2506
          %v2570 = vadd.f32 %v2569, %v2507
          %v2571 = vadd.f32 %v2570, %v2508
          %v2572 = vadd.f32 %v2571, %v2509
          %v2573 = vadd.f32 %v2572, %v2510
          %v2574 = vadd.f32 %v2573, %v2511
          %v2575 = vadd.f32 %v2574, %v2512
          %v2576 = vadd.f32 %v2575, %v2513
          %v2577 = vadd.f32 %v2576, %v2514
          %v2578 = vadd.f32 %v2577, %v2515
          %v2579 = vadd.f32 %v2578, %v2516
          %v2580 = vadd.f32 %v2579, %v2517
          %v2581 = vadd.f32 %v2580, %v2518
          %v2582 = vadd.f32 %v2581, %v2519
          %v2583 = vadd.f32 %v2582, %v2520
          %v2584 = vadd.f32 %v2583, %v2521
          %v2585 = vadd.f32 %v2584, %v2522
          %v2586 = vadd.f32 %v2585, %v2523
          %v2587 = vadd.f32 %v2586, %v2524
          %v2588 = vadd.f32 %v2587, %v2525
          %v2589 = vadd.f32 %v2588, %v2526
          %v2590 = vadd.f32 %v2589, %v2527
          %v2591 = vadd.f32 %v2590, %v2528
          %v2592 = vadd.f32 %v2591, %v2529
          %v2593 = vadd.f32 %v2592, %v2530
          %v2594 = vadd.f32 %v2593, %v2531
          %v2595 = vadd.f32 %v2594, %v2532
          %v2596 = vadd.f32 %v2595, %v2533
          %v2597 = vadd.f32 %v2596, %v2534
          %v2598 = vadd.f32 %v2597, %v2535
          %v2599 = vadd.f32 %v2598, %v2536
          %v2600 = vadd.f32 %v2599, %v2537
          %v2601 = vadd.f32 %v2600, %v2538
          %v2602 = vadd.f32 %v2601, %v2539
          %v2603 = vadd.f32 %v2602, %v2540
          %v2604 = vadd.f32 %v2603, %v2541
          %v2605 = vadd.f32 %v2604, %v2542
          %v2606 = vadd.f32 %v2605, %v2543
          %v2607 = vadd.f32 %v2606, %v2544
          %v2608 = vadd.f32 %v2607, %v2545
          %v2609 = vadd.f32 %v2608, %v2546
          %v2610 = vadd.f32 %v2609, %v2547
          %v2611 = vadd.f32 %v2610, %v2548
          %v2612 = vadd.f32 %v2611, %v2549
          %v2613 = vadd.f32 %v2612, %v2550
          %v2614 = vrot.slane %v2613, 4
          %v2615 = vadd.f32 %v2613, %v2614
          %v2616 = vrot.slane %v2615, 2
          %v2617 = vadd.f32 %v2615, %v2616
          %v2618 = vrot.slane %v2617, 1
          %v2619 = vadd.f32 %v2617, %v2618
          %vm2620 = vcmask 1040384
          %v2621 = vsel %vm2620, %v2486, %v2619
          %v2622 = vadd.f32 %v2417, %v2621
          %2623 = vst [vmem:[#allocation4] sm:$0x3] %v2622
          %p2624 = scmp.eq.s32.totalorder %s23, 1
          // Predicated region
          $region53: #{tpu_custom_call.1} parent=51 // pred_check
            %p2625 = pneg %p2624
          $region54: #{tpu_custom_call.1} parent=51 // pred_check_branch
            %2627 = sbr.rel (%p2625) target = $region56
          $region55: #{tpu_custom_call.1} parent=51 // pred_region
            %v2628 = vld [vmem:[#allocation4] sm:$0x1]
            %v2629 = vmul.f32 %v2628, 0.001
            %v2630 = vld [vmem:[#allocation4 + $0x1] sm:$0x1]
            %v2631 = vmul.f32 %v2630, 0.001
            %v2632 = vmul.f32 %v2629, %v2629
            %v2633 = vsub.f32 %v2631, %v2632
            %v2634 = vmax.f32 %v2633, 0.0
            %v2635 = vld [vmem:[%s3 + $0x2] sm:$0x1]
            %v2636 = vld [vmem:[%s3 + $0x3] sm:$0x1]
            %v2637 = vadd.f32 %v2634, 1e-05
            %v2638 = vrsqrt.pop %v2637
            %v2639 = vmul.f32 %v2638, %v2637
            %v2640 = vmul.f32 %v2639, %v2638
            %v2641 = vmul.f32 0.5, %v2640
            %v2642 = vsub.f32 1.5, %v2641
            %v2643 = vmul.f32 %v2638, %v2642
            %vm2644 = vweird.f32 %v2637
            %vm2645 = vweird.f32 %v2638
            %vm2646 = vmor %vm2644, %vm2645
            %v2647 = vsel %vm2646, %v2638, %v2643
            %v2648 = vmul.f32 %v2635, %v2647
            %2649 = vst [vmem:[#allocation3] sm:$0x1] %v2648
            %v2650 = vmul.f32 %v2629, %v2648
            %v2651 = vsub.f32 %v2636, %v2650
            %2652 = vst [vmem:[#allocation3 + $0x1] sm:$0x1] %v2651
          $region56: #{tpu_custom_call.1} parent=51 // pred_fallthru
            _
        $region52: #{tpu_custom_call.1} parent=35 // pred_fallthru
          _
        %p2653 = scmp.eq.s32.totalorder %s22, 2
        // Predicated region
        $region57: #{tpu_custom_call.1} parent=35 // pred_check
          %p2654 = pneg %p2653
        $region58: #{tpu_custom_call.1} parent=35 // pred_check_branch
          %2656 = sbr.rel (%p2654) target = $region60
        $region59: #{tpu_custom_call.1} parent=35 // pred_region
          %s2657 = scalar_lea.vmem [#allocation2], %s232
          %v2658 = vld [vmem:[%s2657] sm:$0xff]
          %v2659 = vld [vmem:[%s2657 + $0x8] sm:$0xff]
          %v2660 = vld [vmem:[%s2657 + $0x10] sm:$0xff]
          %v2661 = vld [vmem:[%s2657 + $0x18] sm:$0xff]
          %v2662 = vld [vmem:[%s2657 + $0x20] sm:$0xff]
          %v2663 = vld [vmem:[%s2657 + $0x28] sm:$0xff]
          %v2664 = vld [vmem:[%s2657 + $0x30] sm:$0xff]
          %v2665 = vld [vmem:[%s2657 + $0x38] sm:$0xff]
          %v2666 = vld [vmem:[%s2657 + $0x40] sm:$0xff]
          %v2667 = vld [vmem:[%s2657 + $0x48] sm:$0xff]
          %v2668 = vld [vmem:[%s2657 + $0x50] sm:$0xff]
          %v2669 = vld [vmem:[%s2657 + $0x58] sm:$0xff]
          %v2670 = vld [vmem:[%s2657 + $0x60] sm:$0xff]
          %v2671 = vld [vmem:[%s2657 + $0x68] sm:$0xff]
          %v2672 = vld [vmem:[%s2657 + $0x70] sm:$0xff]
          %v2673 = vld [vmem:[%s2657 + $0x78] sm:$0xff]
          %v2674 = vld [vmem:[%s2657 + $0x80] sm:$0xff]
          %v2675 = vld [vmem:[%s2657 + $0x88] sm:$0xff]
          %v2676 = vld [vmem:[%s2657 + $0x90] sm:$0xff]
          %v2677 = vld [vmem:[%s2657 + $0x98] sm:$0xff]
          %v2678 = vld [vmem:[%s2657 + $0xa0] sm:$0xff]
          %v2679 = vld [vmem:[%s2657 + $0xa8] sm:$0xff]
          %v2680 = vld [vmem:[%s2657 + $0xb0] sm:$0xff]
          %v2681 = vld [vmem:[%s2657 + $0xb8] sm:$0xff]
          %v2682 = vld [vmem:[%s2657 + $0xc0] sm:$0xff]
          %v2683 = vld [vmem:[%s2657 + $0xc8] sm:$0xff]
          %v2684 = vld [vmem:[%s2657 + $0xd0] sm:$0xff]
          %v2685 = vld [vmem:[%s2657 + $0xd8] sm:$0xff]
          %v2686 = vld [vmem:[%s2657 + $0xe0] sm:$0xff]
          %v2687 = vld [vmem:[%s2657 + $0xe8] sm:$0xff]
          %v2688 = vld [vmem:[%s2657 + $0xf0] sm:$0xff]
          %v2689 = vld [vmem:[%s2657 + $0xf8] sm:$0xff]
          %v2690 = vld [vmem:[%s2657 + $0x100] sm:$0xff]
          %v2691 = vld [vmem:[%s2657 + $0x108] sm:$0xff]
          %v2692 = vld [vmem:[%s2657 + $0x110] sm:$0xff]
          %v2693 = vld [vmem:[%s2657 + $0x118] sm:$0xff]
          %v2694 = vld [vmem:[%s2657 + $0x120] sm:$0xff]
          %v2695 = vld [vmem:[%s2657 + $0x128] sm:$0xff]
          %v2696 = vld [vmem:[%s2657 + $0x130] sm:$0xff]
          %v2697 = vld [vmem:[%s2657 + $0x138] sm:$0xff]
          %v2698 = vld [vmem:[%s2657 + $0x140] sm:$0xff]
          %v2699 = vld [vmem:[%s2657 + $0x148] sm:$0xff]
          %v2700 = vld [vmem:[%s2657 + $0x150] sm:$0xff]
          %v2701 = vld [vmem:[%s2657 + $0x158] sm:$0xff]
          %v2702 = vld [vmem:[%s2657 + $0x160] sm:$0xff]
          %v2703 = vld [vmem:[%s2657 + $0x168] sm:$0xff]
          %v2704 = vld [vmem:[%s2657 + $0x170] sm:$0xff]
          %v2705 = vld [vmem:[%s2657 + $0x178] sm:$0xff]
          %v2706 = vld [vmem:[%s2657 + $0x180] sm:$0xff]
          %v2707 = vld [vmem:[%s2657 + $0x188] sm:$0xff]
          %v2708 = vld [vmem:[%s2657 + $0x190] sm:$0xff]
          %v2709 = vld [vmem:[%s2657 + $0x198] sm:$0xff]
          %v2710 = vld [vmem:[%s2657 + $0x1a0] sm:$0xff]
          %v2711 = vld [vmem:[%s2657 + $0x1a8] sm:$0xff]
          %v2712 = vld [vmem:[%s2657 + $0x1b0] sm:$0xff]
          %v2713 = vld [vmem:[%s2657 + $0x1b8] sm:$0xff]
          %v2714 = vld [vmem:[%s2657 + $0x1c0] sm:$0xff]
          %v2715 = vld [vmem:[%s2657 + $0x1c8] sm:$0xff]
          %v2716 = vld [vmem:[%s2657 + $0x1d0] sm:$0xff]
          %v2717 = vld [vmem:[%s2657 + $0x1d8] sm:$0xff]
          %v2718 = vld [vmem:[%s2657 + $0x1e0] sm:$0xff]
          %v2719 = vld [vmem:[%s2657 + $0x1e8] sm:$0xff]
          %v2720 = vld [vmem:[%s2657 + $0x1f0] sm:$0xff]
          %v2721 = vld [vmem:[%s2657 + $0x1f8] sm:$0xff]
          %v2722 = vld [vmem:[#allocation3] sm:$0x1]
          %v2723 = vperm.slane %v2722, 0
          %v2724 = vmul.f32 %v2658, %v2723
          %v2725 = vmul.f32 %v2659, %v2723
          %v2726 = vmul.f32 %v2660, %v2723
          %v2727 = vmul.f32 %v2661, %v2723
          %v2728 = vmul.f32 %v2662, %v2723
          %v2729 = vmul.f32 %v2663, %v2723
          %v2730 = vmul.f32 %v2664, %v2723
          %v2731 = vmul.f32 %v2665, %v2723
          %v2732 = vmul.f32 %v2666, %v2723
          %v2733 = vmul.f32 %v2667, %v2723
          %v2734 = vmul.f32 %v2668, %v2723
          %v2735 = vmul.f32 %v2669, %v2723
          %v2736 = vmul.f32 %v2670, %v2723
          %v2737 = vmul.f32 %v2671, %v2723
          %v2738 = vmul.f32 %v2672, %v2723
          %v2739 = vmul.f32 %v2673, %v2723
          %v2740 = vmul.f32 %v2674, %v2723
          %v2741 = vmul.f32 %v2675, %v2723
          %v2742 = vmul.f32 %v2676, %v2723
          %v2743 = vmul.f32 %v2677, %v2723
          %v2744 = vmul.f32 %v2678, %v2723
          %v2745 = vmul.f32 %v2679, %v2723
          %v2746 = vmul.f32 %v2680, %v2723
          %v2747 = vmul.f32 %v2681, %v2723
          %v2748 = vmul.f32 %v2682, %v2723
          %v2749 = vmul.f32 %v2683, %v2723
          %v2750 = vmul.f32 %v2684, %v2723
          %v2751 = vmul.f32 %v2685, %v2723
          %v2752 = vmul.f32 %v2686, %v2723
          %v2753 = vmul.f32 %v2687, %v2723
          %v2754 = vmul.f32 %v2688, %v2723
          %v2755 = vmul.f32 %v2689, %v2723
          %v2756 = vmul.f32 %v2690, %v2723
          %v2757 = vmul.f32 %v2691, %v2723
          %v2758 = vmul.f32 %v2692, %v2723
          %v2759 = vmul.f32 %v2693, %v2723
          %v2760 = vmul.f32 %v2694, %v2723
          %v2761 = vmul.f32 %v2695, %v2723
          %v2762 = vmul.f32 %v2696, %v2723
          %v2763 = vmul.f32 %v2697, %v2723
          %v2764 = vmul.f32 %v2698, %v2723
          %v2765 = vmul.f32 %v2699, %v2723
          %v2766 = vmul.f32 %v2700, %v2723
          %v2767 = vmul.f32 %v2701, %v2723
          %v2768 = vmul.f32 %v2702, %v2723
          %v2769 = vmul.f32 %v2703, %v2723
          %v2770 = vmul.f32 %v2704, %v2723
          %v2771 = vmul.f32 %v2705, %v2723
          %v2772 = vmul.f32 %v2706, %v2723
          %v2773 = vmul.f32 %v2707, %v2723
          %v2774 = vmul.f32 %v2708, %v2723
          %v2775 = vmul.f32 %v2709, %v2723
          %v2776 = vmul.f32 %v2710, %v2723
          %v2777 = vmul.f32 %v2711, %v2723
          %v2778 = vmul.f32 %v2712, %v2723
          %v2779 = vmul.f32 %v2713, %v2723
          %v2780 = vmul.f32 %v2714, %v2723
          %v2781 = vmul.f32 %v2715, %v2723
          %v2782 = vmul.f32 %v2716, %v2723
          %v2783 = vmul.f32 %v2717, %v2723
          %v2784 = vmul.f32 %v2718, %v2723
          %v2785 = vmul.f32 %v2719, %v2723
          %v2786 = vmul.f32 %v2720, %v2723
          %v2787 = vmul.f32 %v2721, %v2723
          %v2788 = vld [vmem:[#allocation3 + $0x1] sm:$0x1]
          %v2789 = vperm.slane %v2788, 0
          %v2790 = vadd.f32 %v2724, %v2789
          %v2791 = vadd.f32 %v2725, %v2789
          %v2792 = vadd.f32 %v2726, %v2789
          %v2793 = vadd.f32 %v2727, %v2789
          %v2794 = vadd.f32 %v2728, %v2789
          %v2795 = vadd.f32 %v2729, %v2789
          %v2796 = vadd.f32 %v2730, %v2789
          %v2797 = vadd.f32 %v2731, %v2789
          %v2798 = vadd.f32 %v2732, %v2789
          %v2799 = vadd.f32 %v2733, %v2789
          %v2800 = vadd.f32 %v2734, %v2789
          %v2801 = vadd.f32 %v2735, %v2789
          %v2802 = vadd.f32 %v2736, %v2789
          %v2803 = vadd.f32 %v2737, %v2789
          %v2804 = vadd.f32 %v2738, %v2789
          %v2805 = vadd.f32 %v2739, %v2789
          %v2806 = vadd.f32 %v2740, %v2789
          %v2807 = vadd.f32 %v2741, %v2789
          %v2808 = vadd.f32 %v2742, %v2789
          %v2809 = vadd.f32 %v2743, %v2789
          %v2810 = vadd.f32 %v2744, %v2789
          %v2811 = vadd.f32 %v2745, %v2789
          %v2812 = vadd.f32 %v2746, %v2789
          %v2813 = vadd.f32 %v2747, %v2789
          %v2814 = vadd.f32 %v2748, %v2789
          %v2815 = vadd.f32 %v2749, %v2789
          %v2816 = vadd.f32 %v2750, %v2789
          %v2817 = vadd.f32 %v2751, %v2789
          %v2818 = vadd.f32 %v2752, %v2789
          %v2819 = vadd.f32 %v2753, %v2789
          %v2820 = vadd.f32 %v2754, %v2789
          %v2821 = vadd.f32 %v2755, %v2789
          %v2822 = vadd.f32 %v2756, %v2789
          %v2823 = vadd.f32 %v2757, %v2789
          %v2824 = vadd.f32 %v2758, %v2789
          %v2825 = vadd.f32 %v2759, %v2789
          %v2826 = vadd.f32 %v2760, %v2789
          %v2827 = vadd.f32 %v2761, %v2789
          %v2828 = vadd.f32 %v2762, %v2789
          %v2829 = vadd.f32 %v2763, %v2789
          %v2830 = vadd.f32 %v2764, %v2789
          %v2831 = vadd.f32 %v2765, %v2789
          %v2832 = vadd.f32 %v2766, %v2789
          %v2833 = vadd.f32 %v2767, %v2789
          %v2834 = vadd.f32 %v2768, %v2789
          %v2835 = vadd.f32 %v2769, %v2789
          %v2836 = vadd.f32 %v2770, %v2789
          %v2837 = vadd.f32 %v2771, %v2789
          %v2838 = vadd.f32 %v2772, %v2789
          %v2839 = vadd.f32 %v2773, %v2789
          %v2840 = vadd.f32 %v2774, %v2789
          %v2841 = vadd.f32 %v2775, %v2789
          %v2842 = vadd.f32 %v2776, %v2789
          %v2843 = vadd.f32 %v2777, %v2789
          %v2844 = vadd.f32 %v2778, %v2789
          %v2845 = vadd.f32 %v2779, %v2789
          %v2846 = vadd.f32 %v2780, %v2789
          %v2847 = vadd.f32 %v2781, %v2789
          %v2848 = vadd.f32 %v2782, %v2789
          %v2849 = vadd.f32 %v2783, %v2789
          %v2850 = vadd.f32 %v2784, %v2789
          %v2851 = vadd.f32 %v2785, %v2789
          %v2852 = vadd.f32 %v2786, %v2789
          %v2853 = vadd.f32 %v2787, %v2789
          %v2854 = vmax.f32 %v2790, 0.0
          %v2855 = vmax.f32 %v2791, 0.0
          %v2856 = vmax.f32 %v2792, 0.0
          %v2857 = vmax.f32 %v2793, 0.0
          %v2858 = vmax.f32 %v2794, 0.0
          %v2859 = vmax.f32 %v2795, 0.0
          %v2860 = vmax.f32 %v2796, 0.0
          %v2861 = vmax.f32 %v2797, 0.0
          %v2862 = vmax.f32 %v2798, 0.0
          %v2863 = vmax.f32 %v2799, 0.0
          %v2864 = vmax.f32 %v2800, 0.0
          %v2865 = vmax.f32 %v2801, 0.0
          %v2866 = vmax.f32 %v2802, 0.0
          %v2867 = vmax.f32 %v2803, 0.0
          %v2868 = vmax.f32 %v2804, 0.0
          %v2869 = vmax.f32 %v2805, 0.0
          %v2870 = vmax.f32 %v2806, 0.0
          %v2871 = vmax.f32 %v2807, 0.0
          %v2872 = vmax.f32 %v2808, 0.0
          %v2873 = vmax.f32 %v2809, 0.0
          %v2874 = vmax.f32 %v2810, 0.0
          %v2875 = vmax.f32 %v2811, 0.0
          %v2876 = vmax.f32 %v2812, 0.0
          %v2877 = vmax.f32 %v2813, 0.0
          %v2878 = vmax.f32 %v2814, 0.0
          %v2879 = vmax.f32 %v2815, 0.0
          %v2880 = vmax.f32 %v2816, 0.0
          %v2881 = vmax.f32 %v2817, 0.0
          %v2882 = vmax.f32 %v2818, 0.0
          %v2883 = vmax.f32 %v2819, 0.0
          %v2884 = vmax.f32 %v2820, 0.0
          %v2885 = vmax.f32 %v2821, 0.0
          %v2886 = vmax.f32 %v2822, 0.0
          %v2887 = vmax.f32 %v2823, 0.0
          %v2888 = vmax.f32 %v2824, 0.0
          %v2889 = vmax.f32 %v2825, 0.0
          %v2890 = vmax.f32 %v2826, 0.0
          %v2891 = vmax.f32 %v2827, 0.0
          %v2892 = vmax.f32 %v2828, 0.0
          %v2893 = vmax.f32 %v2829, 0.0
          %v2894 = vmax.f32 %v2830, 0.0
          %v2895 = vmax.f32 %v2831, 0.0
          %v2896 = vmax.f32 %v2832, 0.0
          %v2897 = vmax.f32 %v2833, 0.0
          %v2898 = vmax.f32 %v2834, 0.0
          %v2899 = vmax.f32 %v2835, 0.0
          %v2900 = vmax.f32 %v2836, 0.0
          %v2901 = vmax.f32 %v2837, 0.0
          %v2902 = vmax.f32 %v2838, 0.0
          %v2903 = vmax.f32 %v2839, 0.0
          %v2904 = vmax.f32 %v2840, 0.0
          %v2905 = vmax.f32 %v2841, 0.0
          %v2906 = vmax.f32 %v2842, 0.0
          %v2907 = vmax.f32 %v2843, 0.0
          %v2908 = vmax.f32 %v2844, 0.0
          %v2909 = vmax.f32 %v2845, 0.0
          %v2910 = vmax.f32 %v2846, 0.0
          %v2911 = vmax.f32 %v2847, 0.0
          %v2912 = vmax.f32 %v2848, 0.0
          %v2913 = vmax.f32 %v2849, 0.0
          %v2914 = vmax.f32 %v2850, 0.0
          %v2915 = vmax.f32 %v2851, 0.0
          %v2916 = vmax.f32 %v2852, 0.0
          %v2917 = vmax.f32 %v2853, 0.0
          %v2918 = vpack.c.bf16 %v2855, %v2854
          %v2919 = vpack.c.bf16 %v2857, %v2856
          %v2920 = vpack.c.bf16 %v2859, %v2858
          %v2921 = vpack.c.bf16 %v2861, %v2860
          %v2922 = vpack.c.bf16 %v2863, %v2862
          %v2923 = vpack.c.bf16 %v2865, %v2864
          %v2924 = vpack.c.bf16 %v2867, %v2866
          %v2925 = vpack.c.bf16 %v2869, %v2868
          %v2926 = vpack.c.bf16 %v2871, %v2870
          %v2927 = vpack.c.bf16 %v2873, %v2872
          %v2928 = vpack.c.bf16 %v2875, %v2874
          %v2929 = vpack.c.bf16 %v2877, %v2876
          %v2930 = vpack.c.bf16 %v2879, %v2878
          %v2931 = vpack.c.bf16 %v2881, %v2880
          %v2932 = vpack.c.bf16 %v2883, %v2882
          %v2933 = vpack.c.bf16 %v2885, %v2884
          %v2934 = vpack.c.bf16 %v2887, %v2886
          %v2935 = vpack.c.bf16 %v2889, %v2888
          %v2936 = vpack.c.bf16 %v2891, %v2890
          %v2937 = vpack.c.bf16 %v2893, %v2892
          %v2938 = vpack.c.bf16 %v2895, %v2894
          %v2939 = vpack.c.bf16 %v2897, %v2896
          %v2940 = vpack.c.bf16 %v2899, %v2898
          %v2941 = vpack.c.bf16 %v2901, %v2900
          %v2942 = vpack.c.bf16 %v2903, %v2902
          %v2943 = vpack.c.bf16 %v2905, %v2904
          %v2944 = vpack.c.bf16 %v2907, %v2906
          %v2945 = vpack.c.bf16 %v2909, %v2908
          %v2946 = vpack.c.bf16 %v2911, %v2910
          %v2947 = vpack.c.bf16 %v2913, %v2912
          %v2948 = vpack.c.bf16 %v2915, %v2914
          %v2949 = vpack.c.bf16 %v2917, %v2916
          %v2950 = vld [vmem:[%s2 + $0x40] sm:$0xf]
          %v2951 = vld [vmem:[%s2 + $0x44] sm:$0xf]
          %v2952 = vld [vmem:[%s2 + $0x48] sm:$0xf]
          %v2953 = vld [vmem:[%s2 + $0x4c] sm:$0xf]
          %v2954 = vld [vmem:[%s2 + $0x50] sm:$0xf]
          %v2955 = vld [vmem:[%s2 + $0x54] sm:$0xf]
          %v2956 = vld [vmem:[%s2 + $0x58] sm:$0xf]
          %v2957 = vld [vmem:[%s2 + $0x5c] sm:$0xf]
          %v2958 = vld [vmem:[%s2 + $0x60] sm:$0xf]
          %v2959 = vld [vmem:[%s2 + $0x64] sm:$0xf]
          %v2960 = vld [vmem:[%s2 + $0x68] sm:$0xf]
          %v2961 = vld [vmem:[%s2 + $0x6c] sm:$0xf]
          %v2962 = vld [vmem:[%s2 + $0x70] sm:$0xf]
          %v2963 = vld [vmem:[%s2 + $0x74] sm:$0xf]
          %v2964 = vld [vmem:[%s2 + $0x78] sm:$0xf]
          %v2965 = vld [vmem:[%s2 + $0x7c] sm:$0xf]
          %v2982 = vunpack.c.l.b16 %v2950
          %v2983 = vunpack.c.l.b16 %v2951
          %v2984 = vunpack.c.l.b16 %v2952
          %v2985 = vunpack.c.l.b16 %v2953
          %v2986 = vunpack.c.l.b16 %v2954
          %v2987 = vunpack.c.l.b16 %v2955
          %v2988 = vunpack.c.l.b16 %v2956
          %v2989 = vunpack.c.l.b16 %v2957
          %v2990 = vunpack.c.l.b16 %v2958
          %v2991 = vunpack.c.l.b16 %v2959
          %v2992 = vunpack.c.l.b16 %v2960
          %v2993 = vunpack.c.l.b16 %v2961
          %v2994 = vunpack.c.l.b16 %v2962
          %v2995 = vunpack.c.l.b16 %v2963
          %v2996 = vunpack.c.l.b16 %v2964
          %v2997 = vunpack.c.l.b16 %v2965
          %v2998 = vpack.c.b16 %v2983, %v2982
          %v2999 = vpack.c.b16 %v2985, %v2984
          %v3000 = vpack.c.b16 %v2987, %v2986
          %v3001 = vpack.c.b16 %v2989, %v2988
          %v3002 = vpack.c.b16 %v2991, %v2990
          %v3003 = vpack.c.b16 %v2993, %v2992
          %v3004 = vpack.c.b16 %v2995, %v2994
          %v3005 = vpack.c.b16 %v2997, %v2996
          %3014 = vmatpush.bf16.msra.mxu0 %v3005
          %3015 = vmatpush.bf16.msra.mxu0 %v3004
          %3016 = vmatpush.bf16.msra.mxu0 %v3003
          %3017 = vmatpush.bf16.msra.mxu0 %v3002
          %3018 = vmatpush.bf16.msra.mxu0 %v3001
          %3019 = vmatpush.bf16.msra.mxu0 %v3000
          %3020 = vmatpush.bf16.msra.mxu0 %v2999
          %3021 = vmatpush.bf16.msra.mxu0 %v2998
          %3022 = vmatmul.bf16.gmra.mxu0 %v2918
          %v3023 = vpop.f32.mrf.mxu0
          %v3024 = vadd.f32 0.0, %v3023
          %v3025 = vpop.f32.mrf.mxu0
          %v3026 = vadd.f32 0.0, %v3025
          %3027 = vmatmul.bf16.gmra.mxu0 %v2919
          %v3028 = vpop.f32.mrf.mxu0
          %v3029 = vadd.f32 0.0, %v3028
          %v3030 = vpop.f32.mrf.mxu0
          %v3031 = vadd.f32 0.0, %v3030
          %3032 = vmatmul.bf16.gmra.mxu0 %v2920
          %v3033 = vpop.f32.mrf.mxu0
          %v3034 = vadd.f32 0.0, %v3033
          %v3035 = vpop.f32.mrf.mxu0
          %v3036 = vadd.f32 0.0, %v3035
          %3037 = vmatmul.bf16.gmra.mxu0 %v2921
          %v3038 = vpop.f32.mrf.mxu0
          %v3039 = vadd.f32 0.0, %v3038
          %v3040 = vpop.f32.mrf.mxu0
          %v3041 = vadd.f32 0.0, %v3040
          %3042 = vmatmul.bf16.gmra.mxu0 %v2922
          %v3043 = vpop.f32.mrf.mxu0
          %v3044 = vadd.f32 0.0, %v3043
          %v3045 = vpop.f32.mrf.mxu0
          %v3046 = vadd.f32 0.0, %v3045
          %3047 = vmatmul.bf16.gmra.mxu0 %v2923
          %v3048 = vpop.f32.mrf.mxu0
          %v3049 = vadd.f32 0.0, %v3048
          %v3050 = vpop.f32.mrf.mxu0
          %v3051 = vadd.f32 0.0, %v3050
          %3052 = vmatmul.bf16.gmra.mxu0 %v2924
          %v3053 = vpop.f32.mrf.mxu0
          %v3054 = vadd.f32 0.0, %v3053
          %v3055 = vpop.f32.mrf.mxu0
          %v3056 = vadd.f32 0.0, %v3055
          %3057 = vmatmul.bf16.gmra.mxu0 %v2925
          %v3058 = vpop.f32.mrf.mxu0
          %v3059 = vadd.f32 0.0, %v3058
          %v3060 = vpop.f32.mrf.mxu0
          %v3061 = vadd.f32 0.0, %v3060
          %3062 = vmatmul.bf16.gmra.mxu0 %v2926
          %v3063 = vpop.f32.mrf.mxu0
          %v3064 = vadd.f32 0.0, %v3063
          %v3065 = vpop.f32.mrf.mxu0
          %v3066 = vadd.f32 0.0, %v3065
          %3067 = vmatmul.bf16.gmra.mxu0 %v2927
          %v3068 = vpop.f32.mrf.mxu0
          %v3069 = vadd.f32 0.0, %v3068
          %v3070 = vpop.f32.mrf.mxu0
          %v3071 = vadd.f32 0.0, %v3070
          %3072 = vmatmul.bf16.gmra.mxu0 %v2928
          %v3073 = vpop.f32.mrf.mxu0
          %v3074 = vadd.f32 0.0, %v3073
          %v3075 = vpop.f32.mrf.mxu0
          %v3076 = vadd.f32 0.0, %v3075
          %3077 = vmatmul.bf16.gmra.mxu0 %v2929
          %v3078 = vpop.f32.mrf.mxu0
          %v3079 = vadd.f32 0.0, %v3078
          %v3080 = vpop.f32.mrf.mxu0
          %v3081 = vadd.f32 0.0, %v3080
          %3082 = vmatmul.bf16.gmra.mxu0 %v2930
          %v3083 = vpop.f32.mrf.mxu0
          %v3084 = vadd.f32 0.0, %v3083
          %v3085 = vpop.f32.mrf.mxu0
          %v3086 = vadd.f32 0.0, %v3085
          %3087 = vmatmul.bf16.gmra.mxu0 %v2931
          %v3088 = vpop.f32.mrf.mxu0
          %v3089 = vadd.f32 0.0, %v3088
          %v3090 = vpop.f32.mrf.mxu0
          %v3091 = vadd.f32 0.0, %v3090
          %3092 = vmatmul.bf16.gmra.mxu0 %v2932
          %v3093 = vpop.f32.mrf.mxu0
          %v3094 = vadd.f32 0.0, %v3093
          %v3095 = vpop.f32.mrf.mxu0
          %v3096 = vadd.f32 0.0, %v3095
          %3097 = vmatmul.bf16.gmra.mxu0 %v2933
          %v3098 = vpop.f32.mrf.mxu0
          %v3099 = vadd.f32 0.0, %v3098
          %v3100 = vpop.f32.mrf.mxu0
          %v3101 = vadd.f32 0.0, %v3100
          %3102 = vmatmul.bf16.gmra.mxu0 %v2934
          %v3103 = vpop.f32.mrf.mxu0
          %v3104 = vadd.f32 0.0, %v3103
          %v3105 = vpop.f32.mrf.mxu0
          %v3106 = vadd.f32 0.0, %v3105
          %3107 = vmatmul.bf16.gmra.mxu0 %v2935
          %v3108 = vpop.f32.mrf.mxu0
          %v3109 = vadd.f32 0.0, %v3108
          %v3110 = vpop.f32.mrf.mxu0
          %v3111 = vadd.f32 0.0, %v3110
          %3112 = vmatmul.bf16.gmra.mxu0 %v2936
          %v3113 = vpop.f32.mrf.mxu0
          %v3114 = vadd.f32 0.0, %v3113
          %v3115 = vpop.f32.mrf.mxu0
          %v3116 = vadd.f32 0.0, %v3115
          %3117 = vmatmul.bf16.gmra.mxu0 %v2937
          %v3118 = vpop.f32.mrf.mxu0
          %v3119 = vadd.f32 0.0, %v3118
          %v3120 = vpop.f32.mrf.mxu0
          %v3121 = vadd.f32 0.0, %v3120
          %3122 = vmatmul.bf16.gmra.mxu0 %v2938
          %v3123 = vpop.f32.mrf.mxu0
          %v3124 = vadd.f32 0.0, %v3123
          %v3125 = vpop.f32.mrf.mxu0
          %v3126 = vadd.f32 0.0, %v3125
          %3127 = vmatmul.bf16.gmra.mxu0 %v2939
          %v3128 = vpop.f32.mrf.mxu0
          %v3129 = vadd.f32 0.0, %v3128
          %v3130 = vpop.f32.mrf.mxu0
          %v3131 = vadd.f32 0.0, %v3130
          %3132 = vmatmul.bf16.gmra.mxu0 %v2940
          %v3133 = vpop.f32.mrf.mxu0
          %v3134 = vadd.f32 0.0, %v3133
          %v3135 = vpop.f32.mrf.mxu0
          %v3136 = vadd.f32 0.0, %v3135
          %3137 = vmatmul.bf16.gmra.mxu0 %v2941
          %v3138 = vpop.f32.mrf.mxu0
          %v3139 = vadd.f32 0.0, %v3138
          %v3140 = vpop.f32.mrf.mxu0
          %v3141 = vadd.f32 0.0, %v3140
          %3142 = vmatmul.bf16.gmra.mxu0 %v2942
          %v3143 = vpop.f32.mrf.mxu0
          %v3144 = vadd.f32 0.0, %v3143
          %v3145 = vpop.f32.mrf.mxu0
          %v3146 = vadd.f32 0.0, %v3145
          %3147 = vmatmul.bf16.gmra.mxu0 %v2943
          %v3148 = vpop.f32.mrf.mxu0
          %v3149 = vadd.f32 0.0, %v3148
          %v3150 = vpop.f32.mrf.mxu0
          %v3151 = vadd.f32 0.0, %v3150
          %3152 = vmatmul.bf16.gmra.mxu0 %v2944
          %v3153 = vpop.f32.mrf.mxu0
          %v3154 = vadd.f32 0.0, %v3153
          %v3155 = vpop.f32.mrf.mxu0
          %v3156 = vadd.f32 0.0, %v3155
          %3157 = vmatmul.bf16.gmra.mxu0 %v2945
          %v3158 = vpop.f32.mrf.mxu0
          %v3159 = vadd.f32 0.0, %v3158
          %v3160 = vpop.f32.mrf.mxu0
          %v3161 = vadd.f32 0.0, %v3160
          %3162 = vmatmul.bf16.gmra.mxu0 %v2946
          %v3163 = vpop.f32.mrf.mxu0
          %v3164 = vadd.f32 0.0, %v3163
          %v3165 = vpop.f32.mrf.mxu0
          %v3166 = vadd.f32 0.0, %v3165
          %3167 = vmatmul.bf16.gmra.mxu0 %v2947
          %v3168 = vpop.f32.mrf.mxu0
          %v3169 = vadd.f32 0.0, %v3168
          %v3170 = vpop.f32.mrf.mxu0
          %v3171 = vadd.f32 0.0, %v3170
          %3172 = vmatmul.bf16.gmra.mxu0 %v2948
          %v3173 = vpop.f32.mrf.mxu0
          %v3174 = vadd.f32 0.0, %v3173
          %v3175 = vpop.f32.mrf.mxu0
          %v3176 = vadd.f32 0.0, %v3175
          %3177 = vmatmul.bf16.gmra.mxu0 %v2949
          %v3178 = vpop.f32.mrf.mxu0
          %v3179 = vadd.f32 0.0, %v3178
          %v3180 = vpop.f32.mrf.mxu0
          %v3181 = vadd.f32 0.0, %v3180
          %3182 = vdwg.mxu0
          %3183 = vst [vmem:[%s2657] sm:$0xff] %v3024
          %3184 = vst [vmem:[%s2657 + $0x8] sm:$0xff] %v3026
          %3185 = vst [vmem:[%s2657 + $0x10] sm:$0xff] %v3029
          %3186 = vst [vmem:[%s2657 + $0x18] sm:$0xff] %v3031
          %3187 = vst [vmem:[%s2657 + $0x20] sm:$0xff] %v3034
          %3188 = vst [vmem:[%s2657 + $0x28] sm:$0xff] %v3036
          %3189 = vst [vmem:[%s2657 + $0x30] sm:$0xff] %v3039
          %3190 = vst [vmem:[%s2657 + $0x38] sm:$0xff] %v3041
          %3191 = vst [vmem:[%s2657 + $0x40] sm:$0xff] %v3044
          %3192 = vst [vmem:[%s2657 + $0x48] sm:$0xff] %v3046
          %3193 = vst [vmem:[%s2657 + $0x50] sm:$0xff] %v3049
          %3194 = vst [vmem:[%s2657 + $0x58] sm:$0xff] %v3051
          %3195 = vst [vmem:[%s2657 + $0x60] sm:$0xff] %v3054
          %3196 = vst [vmem:[%s2657 + $0x68] sm:$0xff] %v3056
          %3197 = vst [vmem:[%s2657 + $0x70] sm:$0xff] %v3059
          %3198 = vst [vmem:[%s2657 + $0x78] sm:$0xff] %v3061
          %3199 = vst [vmem:[%s2657 + $0x80] sm:$0xff] %v3064
          %3200 = vst [vmem:[%s2657 + $0x88] sm:$0xff] %v3066
          %3201 = vst [vmem:[%s2657 + $0x90] sm:$0xff] %v3069
          %3202 = vst [vmem:[%s2657 + $0x98] sm:$0xff] %v3071
          %3203 = vst [vmem:[%s2657 + $0xa0] sm:$0xff] %v3074
          %3204 = vst [vmem:[%s2657 + $0xa8] sm:$0xff] %v3076
          %3205 = vst [vmem:[%s2657 + $0xb0] sm:$0xff] %v3079
          %3206 = vst [vmem:[%s2657 + $0xb8] sm:$0xff] %v3081
          %3207 = vst [vmem:[%s2657 + $0xc0] sm:$0xff] %v3084
          %3208 = vst [vmem:[%s2657 + $0xc8] sm:$0xff] %v3086
          %3209 = vst [vmem:[%s2657 + $0xd0] sm:$0xff] %v3089
          %3210 = vst [vmem:[%s2657 + $0xd8] sm:$0xff] %v3091
          %3211 = vst [vmem:[%s2657 + $0xe0] sm:$0xff] %v3094
          %3212 = vst [vmem:[%s2657 + $0xe8] sm:$0xff] %v3096
          %3213 = vst [vmem:[%s2657 + $0xf0] sm:$0xff] %v3099
          %3214 = vst [vmem:[%s2657 + $0xf8] sm:$0xff] %v3101
          %3215 = vst [vmem:[%s2657 + $0x100] sm:$0xff] %v3104
          %3216 = vst [vmem:[%s2657 + $0x108] sm:$0xff] %v3106
          %3217 = vst [vmem:[%s2657 + $0x110] sm:$0xff] %v3109
          %3218 = vst [vmem:[%s2657 + $0x118] sm:$0xff] %v3111
          %3219 = vst [vmem:[%s2657 + $0x120] sm:$0xff] %v3114
          %3220 = vst [vmem:[%s2657 + $0x128] sm:$0xff] %v3116
          %3221 = vst [vmem:[%s2657 + $0x130] sm:$0xff] %v3119
          %3222 = vst [vmem:[%s2657 + $0x138] sm:$0xff] %v3121
          %3223 = vst [vmem:[%s2657 + $0x140] sm:$0xff] %v3124
          %3224 = vst [vmem:[%s2657 + $0x148] sm:$0xff] %v3126
          %3225 = vst [vmem:[%s2657 + $0x150] sm:$0xff] %v3129
          %3226 = vst [vmem:[%s2657 + $0x158] sm:$0xff] %v3131
          %3227 = vst [vmem:[%s2657 + $0x160] sm:$0xff] %v3134
          %3228 = vst [vmem:[%s2657 + $0x168] sm:$0xff] %v3136
          %3229 = vst [vmem:[%s2657 + $0x170] sm:$0xff] %v3139
          %3230 = vst [vmem:[%s2657 + $0x178] sm:$0xff] %v3141
          %3231 = vst [vmem:[%s2657 + $0x180] sm:$0xff] %v3144
          %3232 = vst [vmem:[%s2657 + $0x188] sm:$0xff] %v3146
          %3233 = vst [vmem:[%s2657 + $0x190] sm:$0xff] %v3149
          %3234 = vst [vmem:[%s2657 + $0x198] sm:$0xff] %v3151
          %3235 = vst [vmem:[%s2657 + $0x1a0] sm:$0xff] %v3154
          %3236 = vst [vmem:[%s2657 + $0x1a8] sm:$0xff] %v3156
          %3237 = vst [vmem:[%s2657 + $0x1b0] sm:$0xff] %v3159
          %3238 = vst [vmem:[%s2657 + $0x1b8] sm:$0xff] %v3161
          %3239 = vst [vmem:[%s2657 + $0x1c0] sm:$0xff] %v3164
          %3240 = vst [vmem:[%s2657 + $0x1c8] sm:$0xff] %v3166
          %3241 = vst [vmem:[%s2657 + $0x1d0] sm:$0xff] %v3169
          %3242 = vst [vmem:[%s2657 + $0x1d8] sm:$0xff] %v3171
          %3243 = vst [vmem:[%s2657 + $0x1e0] sm:$0xff] %v3174
          %3244 = vst [vmem:[%s2657 + $0x1e8] sm:$0xff] %v3176
          %3245 = vst [vmem:[%s2657 + $0x1f0] sm:$0xff] %v3179
          %3246 = vst [vmem:[%s2657 + $0x1f8] sm:$0xff] %v3181
          %v3247 = vlaneseq
          %v3248 = vshrl.u32 %v3247, 7
          %v3249 = vadd.s32 %v3248, 8
          %v3250 = vadd.s32 %v3248, 16
          %v3251 = vadd.s32 %v3248, 24
          %v3252 = vadd.s32 %v3248, 32
          %v3253 = vadd.s32 %v3248, 40
          %v3254 = vadd.s32 %v3248, 48
          %v3255 = vadd.s32 %v3248, 56
          %v3256 = vadd.s32 %v3248, 64
          %v3257 = vadd.s32 %v3248, 72
          %v3258 = vadd.s32 %v3248, 80
          %v3259 = vadd.s32 %v3248, 88
          %v3260 = vadd.s32 %v3248, 96
          %v3261 = vadd.s32 %v3248, 104
          %v3262 = vadd.s32 %v3248, 112
          %v3263 = vadd.s32 %v3248, 120
          %v3264 = vadd.s32 %v3248, 128
          %v3265 = vadd.s32 %v3248, 136
          %v3266 = vadd.s32 %v3248, 144
          %v3267 = vadd.s32 %v3248, 152
          %v3268 = vadd.s32 %v3248, 160
          %v3269 = vadd.s32 %v3248, 168
          %v3270 = vadd.s32 %v3248, 176
          %v3271 = vadd.s32 %v3248, 184
          %v3272 = vadd.s32 %v3248, 192
          %v3273 = vadd.s32 %v3248, 200
          %v3274 = vadd.s32 %v3248, 208
          %v3275 = vadd.s32 %v3248, 216
          %v3276 = vadd.s32 %v3248, 224
          %v3277 = vadd.s32 %v3248, 232
          %v3278 = vadd.s32 %v3248, 240
          %v3279 = vadd.s32 %v3248, 248
          %v3280 = vadd.s32 %v3248, 256
          %v3281 = vadd.s32 %v3248, 264
          %v3282 = vadd.s32 %v3248, 272
          %v3283 = vadd.s32 %v3248, 280
          %v3284 = vadd.s32 %v3248, 288
          %v3285 = vadd.s32 %v3248, 296
          %v3286 = vadd.s32 %v3248, 304
          %v3287 = vadd.s32 %v3248, 312
          %v3288 = vadd.s32 %v3248, 320
          %v3289 = vadd.s32 %v3248, 328
          %v3290 = vadd.s32 %v3248, 336
          %v3291 = vadd.s32 %v3248, 344
          %v3292 = vadd.s32 %v3248, 352
          %v3293 = vadd.s32 %v3248, 360
          %v3294 = vadd.s32 %v3248, 368
          %v3295 = vadd.s32 %v3248, 376
          %v3296 = vadd.s32 %v3248, 384
          %v3297 = vadd.s32 %v3248, 392
          %v3298 = vadd.s32 %v3248, 400
          %v3299 = vadd.s32 %v3248, 408
          %v3300 = vadd.s32 %v3248, 416
          %v3301 = vadd.s32 %v3248, 424
          %v3302 = vadd.s32 %v3248, 432
          %v3303 = vadd.s32 %v3248, 440
          %v3304 = vadd.s32 %v3248, 448
          %v3305 = vadd.s32 %v3248, 456
          %v3306 = vadd.s32 %v3248, 464
          %v3307 = vadd.s32 %v3248, 472
          %v3308 = vadd.s32 %v3248, 480
          %v3309 = vadd.s32 %v3248, 488
          %v3310 = vadd.s32 %v3248, 496
          %v3311 = vadd.s32 %v3248, 504
          %v3312 = vstv %s232
          %v3313 = vadd.s32 %v3312, %v3248
          %v3314 = vadd.s32 %v3312, %v3249
          %v3315 = vadd.s32 %v3312, %v3250
          %v3316 = vadd.s32 %v3312, %v3251
          %v3317 = vadd.s32 %v3312, %v3252
          %v3318 = vadd.s32 %v3312, %v3253
          %v3319 = vadd.s32 %v3312, %v3254
          %v3320 = vadd.s32 %v3312, %v3255
          %v3321 = vadd.s32 %v3312, %v3256
          %v3322 = vadd.s32 %v3312, %v3257
          %v3323 = vadd.s32 %v3312, %v3258
          %v3324 = vadd.s32 %v3312, %v3259
          %v3325 = vadd.s32 %v3312, %v3260
          %v3326 = vadd.s32 %v3312, %v3261
          %v3327 = vadd.s32 %v3312, %v3262
          %v3328 = vadd.s32 %v3312, %v3263
          %v3329 = vadd.s32 %v3312, %v3264
          %v3330 = vadd.s32 %v3312, %v3265
          %v3331 = vadd.s32 %v3312, %v3266
          %v3332 = vadd.s32 %v3312, %v3267
          %v3333 = vadd.s32 %v3312, %v3268
          %v3334 = vadd.s32 %v3312, %v3269
          %v3335 = vadd.s32 %v3312, %v3270
          %v3336 = vadd.s32 %v3312, %v3271
          %v3337 = vadd.s32 %v3312, %v3272
          %v3338 = vadd.s32 %v3312, %v3273
          %v3339 = vadd.s32 %v3312, %v3274
          %v3340 = vadd.s32 %v3312, %v3275
          %v3341 = vadd.s32 %v3312, %v3276
          %v3342 = vadd.s32 %v3312, %v3277
          %v3343 = vadd.s32 %v3312, %v3278
          %v3344 = vadd.s32 %v3312, %v3279
          %v3345 = vadd.s32 %v3312, %v3280
          %v3346 = vadd.s32 %v3312, %v3281
          %v3347 = vadd.s32 %v3312, %v3282
          %v3348 = vadd.s32 %v3312, %v3283
          %v3349 = vadd.s32 %v3312, %v3284
          %v3350 = vadd.s32 %v3312, %v3285
          %v3351 = vadd.s32 %v3312, %v3286
          %v3352 = vadd.s32 %v3312, %v3287
          %v3353 = vadd.s32 %v3312, %v3288
          %v3354 = vadd.s32 %v3312, %v3289
          %v3355 = vadd.s32 %v3312, %v3290
          %v3356 = vadd.s32 %v3312, %v3291
          %v3357 = vadd.s32 %v3312, %v3292
          %v3358 = vadd.s32 %v3312, %v3293
          %v3359 = vadd.s32 %v3312, %v3294
          %v3360 = vadd.s32 %v3312, %v3295
          %v3361 = vadd.s32 %v3312, %v3296
          %v3362 = vadd.s32 %v3312, %v3297
          %v3363 = vadd.s32 %v3312, %v3298
          %v3364 = vadd.s32 %v3312, %v3299
          %v3365 = vadd.s32 %v3312, %v3300
          %v3366 = vadd.s32 %v3312, %v3301
          %v3367 = vadd.s32 %v3312, %v3302
          %v3368 = vadd.s32 %v3312, %v3303
          %v3369 = vadd.s32 %v3312, %v3304
          %v3370 = vadd.s32 %v3312, %v3305
          %v3371 = vadd.s32 %v3312, %v3306
          %v3372 = vadd.s32 %v3312, %v3307
          %v3373 = vadd.s32 %v3312, %v3308
          %v3374 = vadd.s32 %v3312, %v3309
          %v3375 = vadd.s32 %v3312, %v3310
          %v3376 = vadd.s32 %v3312, %v3311
          %vm3377 = vcmp.lt.s32.totalorder %v3313, 1000
          %vm3378 = vcmp.lt.s32.totalorder %v3314, 1000
          %vm3379 = vcmp.lt.s32.totalorder %v3315, 1000
          %vm3380 = vcmp.lt.s32.totalorder %v3316, 1000
          %vm3381 = vcmp.lt.s32.totalorder %v3317, 1000
          %vm3382 = vcmp.lt.s32.totalorder %v3318, 1000
          %vm3383 = vcmp.lt.s32.totalorder %v3319, 1000
          %vm3384 = vcmp.lt.s32.totalorder %v3320, 1000
          %vm3385 = vcmp.lt.s32.totalorder %v3321, 1000
          %vm3386 = vcmp.lt.s32.totalorder %v3322, 1000
          %vm3387 = vcmp.lt.s32.totalorder %v3323, 1000
          %vm3388 = vcmp.lt.s32.totalorder %v3324, 1000
          %vm3389 = vcmp.lt.s32.totalorder %v3325, 1000
          %vm3390 = vcmp.lt.s32.totalorder %v3326, 1000
          %vm3391 = vcmp.lt.s32.totalorder %v3327, 1000
          %vm3392 = vcmp.lt.s32.totalorder %v3328, 1000
          %vm3393 = vcmp.lt.s32.totalorder %v3329, 1000
          %vm3394 = vcmp.lt.s32.totalorder %v3330, 1000
          %vm3395 = vcmp.lt.s32.totalorder %v3331, 1000
          %vm3396 = vcmp.lt.s32.totalorder %v3332, 1000
          %vm3397 = vcmp.lt.s32.totalorder %v3333, 1000
          %vm3398 = vcmp.lt.s32.totalorder %v3334, 1000
          %vm3399 = vcmp.lt.s32.totalorder %v3335, 1000
          %vm3400 = vcmp.lt.s32.totalorder %v3336, 1000
          %vm3401 = vcmp.lt.s32.totalorder %v3337, 1000
          %vm3402 = vcmp.lt.s32.totalorder %v3338, 1000
          %vm3403 = vcmp.lt.s32.totalorder %v3339, 1000
          %vm3404 = vcmp.lt.s32.totalorder %v3340, 1000
          %vm3405 = vcmp.lt.s32.totalorder %v3341, 1000
          %vm3406 = vcmp.lt.s32.totalorder %v3342, 1000
          %vm3407 = vcmp.lt.s32.totalorder %v3343, 1000
          %vm3408 = vcmp.lt.s32.totalorder %v3344, 1000
          %vm3409 = vcmp.lt.s32.totalorder %v3345, 1000
          %vm3410 = vcmp.lt.s32.totalorder %v3346, 1000
          %vm3411 = vcmp.lt.s32.totalorder %v3347, 1000
          %vm3412 = vcmp.lt.s32.totalorder %v3348, 1000
          %vm3413 = vcmp.lt.s32.totalorder %v3349, 1000
          %vm3414 = vcmp.lt.s32.totalorder %v3350, 1000
          %vm3415 = vcmp.lt.s32.totalorder %v3351, 1000
          %vm3416 = vcmp.lt.s32.totalorder %v3352, 1000
          %vm3417 = vcmp.lt.s32.totalorder %v3353, 1000
          %vm3418 = vcmp.lt.s32.totalorder %v3354, 1000
          %vm3419 = vcmp.lt.s32.totalorder %v3355, 1000
          %vm3420 = vcmp.lt.s32.totalorder %v3356, 1000
          %vm3421 = vcmp.lt.s32.totalorder %v3357, 1000
          %vm3422 = vcmp.lt.s32.totalorder %v3358, 1000
          %vm3423 = vcmp.lt.s32.totalorder %v3359, 1000
          %vm3424 = vcmp.lt.s32.totalorder %v3360, 1000
          %vm3425 = vcmp.lt.s32.totalorder %v3361, 1000
          %vm3426 = vcmp.lt.s32.totalorder %v3362, 1000
          %vm3427 = vcmp.lt.s32.totalorder %v3363, 1000
          %vm3428 = vcmp.lt.s32.totalorder %v3364, 1000
          %vm3429 = vcmp.lt.s32.totalorder %v3365, 1000
          %vm3430 = vcmp.lt.s32.totalorder %v3366, 1000
          %vm3431 = vcmp.lt.s32.totalorder %v3367, 1000
          %vm3432 = vcmp.lt.s32.totalorder %v3368, 1000
          %vm3433 = vcmp.lt.s32.totalorder %v3369, 1000
          %vm3434 = vcmp.lt.s32.totalorder %v3370, 1000
          %vm3435 = vcmp.lt.s32.totalorder %v3371, 1000
          %vm3436 = vcmp.lt.s32.totalorder %v3372, 1000
          %vm3437 = vcmp.lt.s32.totalorder %v3373, 1000
          %vm3438 = vcmp.lt.s32.totalorder %v3374, 1000
          %vm3439 = vcmp.lt.s32.totalorder %v3375, 1000
          %vm3440 = vcmp.lt.s32.totalorder %v3376, 1000
          %v3441 = vsel %vm3377, 1, 0
          %v3442 = vsel %vm3378, 1, 0
          %v3443 = vsel %vm3379, 1, 0
          %v3444 = vsel %vm3380, 1, 0
          %v3445 = vsel %vm3381, 1, 0
          %v3446 = vsel %vm3382, 1, 0
          %v3447 = vsel %vm3383, 1, 0
          %v3448 = vsel %vm3384, 1, 0
          %v3449 = vsel %vm3385, 1, 0
          %v3450 = vsel %vm3386, 1, 0
          %v3451 = vsel %vm3387, 1, 0
          %v3452 = vsel %vm3388, 1, 0
          %v3453 = vsel %vm3389, 1, 0
          %v3454 = vsel %vm3390, 1, 0
          %v3455 = vsel %vm3391, 1, 0
          %v3456 = vsel %vm3392, 1, 0
          %v3457 = vsel %vm3393, 1, 0
          %v3458 = vsel %vm3394, 1, 0
          %v3459 = vsel %vm3395, 1, 0
          %v3460 = vsel %vm3396, 1, 0
          %v3461 = vsel %vm3397, 1, 0
          %v3462 = vsel %vm3398, 1, 0
          %v3463 = vsel %vm3399, 1, 0
          %v3464 = vsel %vm3400, 1, 0
          %v3465 = vsel %vm3401, 1, 0
          %v3466 = vsel %vm3402, 1, 0
          %v3467 = vsel %vm3403, 1, 0
          %v3468 = vsel %vm3404, 1, 0
          %v3469 = vsel %vm3405, 1, 0
          %v3470 = vsel %vm3406, 1, 0
          %v3471 = vsel %vm3407, 1, 0
          %v3472 = vsel %vm3408, 1, 0
          %v3473 = vsel %vm3409, 1, 0
          %v3474 = vsel %vm3410, 1, 0
          %v3475 = vsel %vm3411, 1, 0
          %v3476 = vsel %vm3412, 1, 0
          %v3477 = vsel %vm3413, 1, 0
          %v3478 = vsel %vm3414, 1, 0
          %v3479 = vsel %vm3415, 1, 0
          %v3480 = vsel %vm3416, 1, 0
          %v3481 = vsel %vm3417, 1, 0
          %v3482 = vsel %vm3418, 1, 0
          %v3483 = vsel %vm3419, 1, 0
          %v3484 = vsel %vm3420, 1, 0
          %v3485 = vsel %vm3421, 1, 0
          %v3486 = vsel %vm3422, 1, 0
          %v3487 = vsel %vm3423, 1, 0
          %v3488 = vsel %vm3424, 1, 0
          %v3489 = vsel %vm3425, 1, 0
          %v3490 = vsel %vm3426, 1, 0
          %v3491 = vsel %vm3427, 1, 0
          %v3492 = vsel %vm3428, 1, 0
          %v3493 = vsel %vm3429, 1, 0
          %v3494 = vsel %vm3430, 1, 0
          %v3495 = vsel %vm3431, 1, 0
          %v3496 = vsel %vm3432, 1, 0
          %v3497 = vsel %vm3433, 1, 0
          %v3498 = vsel %vm3434, 1, 0
          %v3499 = vsel %vm3435, 1, 0
          %v3500 = vsel %vm3436, 1, 0
          %v3501 = vsel %vm3437, 1, 0
          %v3502 = vsel %vm3438, 1, 0
          %v3503 = vsel %vm3439, 1, 0
          %v3504 = vsel %vm3440, 1, 0
          %vm3505 = vcmp.eq.s32.totalorder %v3441, 1
          %vm3506 = vcmp.eq.s32.totalorder %v3442, 1
          %vm3507 = vcmp.eq.s32.totalorder %v3443, 1
          %vm3508 = vcmp.eq.s32.totalorder %v3444, 1
          %vm3509 = vcmp.eq.s32.totalorder %v3445, 1
          %vm3510 = vcmp.eq.s32.totalorder %v3446, 1
          %vm3511 = vcmp.eq.s32.totalorder %v3447, 1
          %vm3512 = vcmp.eq.s32.totalorder %v3448, 1
          %vm3513 = vcmp.eq.s32.totalorder %v3449, 1
          %vm3514 = vcmp.eq.s32.totalorder %v3450, 1
          %vm3515 = vcmp.eq.s32.totalorder %v3451, 1
          %vm3516 = vcmp.eq.s32.totalorder %v3452, 1
          %vm3517 = vcmp.eq.s32.totalorder %v3453, 1
          %vm3518 = vcmp.eq.s32.totalorder %v3454, 1
          %vm3519 = vcmp.eq.s32.totalorder %v3455, 1
          %vm3520 = vcmp.eq.s32.totalorder %v3456, 1
          %vm3521 = vcmp.eq.s32.totalorder %v3457, 1
          %vm3522 = vcmp.eq.s32.totalorder %v3458, 1
          %vm3523 = vcmp.eq.s32.totalorder %v3459, 1
          %vm3524 = vcmp.eq.s32.totalorder %v3460, 1
          %vm3525 = vcmp.eq.s32.totalorder %v3461, 1
          %vm3526 = vcmp.eq.s32.totalorder %v3462, 1
          %vm3527 = vcmp.eq.s32.totalorder %v3463, 1
          %vm3528 = vcmp.eq.s32.totalorder %v3464, 1
          %vm3529 = vcmp.eq.s32.totalorder %v3465, 1
          %vm3530 = vcmp.eq.s32.totalorder %v3466, 1
          %vm3531 = vcmp.eq.s32.totalorder %v3467, 1
          %vm3532 = vcmp.eq.s32.totalorder %v3468, 1
          %vm3533 = vcmp.eq.s32.totalorder %v3469, 1
          %vm3534 = vcmp.eq.s32.totalorder %v3470, 1
          %vm3535 = vcmp.eq.s32.totalorder %v3471, 1
          %vm3536 = vcmp.eq.s32.totalorder %v3472, 1
          %vm3537 = vcmp.eq.s32.totalorder %v3473, 1
          %vm3538 = vcmp.eq.s32.totalorder %v3474, 1
          %vm3539 = vcmp.eq.s32.totalorder %v3475, 1
          %vm3540 = vcmp.eq.s32.totalorder %v3476, 1
          %vm3541 = vcmp.eq.s32.totalorder %v3477, 1
          %vm3542 = vcmp.eq.s32.totalorder %v3478, 1
          %vm3543 = vcmp.eq.s32.totalorder %v3479, 1
          %vm3544 = vcmp.eq.s32.totalorder %v3480, 1
          %vm3545 = vcmp.eq.s32.totalorder %v3481, 1
          %vm3546 = vcmp.eq.s32.totalorder %v3482, 1
          %vm3547 = vcmp.eq.s32.totalorder %v3483, 1
          %vm3548 = vcmp.eq.s32.totalorder %v3484, 1
          %vm3549 = vcmp.eq.s32.totalorder %v3485, 1
          %vm3550 = vcmp.eq.s32.totalorder %v3486, 1
          %vm3551 = vcmp.eq.s32.totalorder %v3487, 1
          %vm3552 = vcmp.eq.s32.totalorder %v3488, 1
          %vm3553 = vcmp.eq.s32.totalorder %v3489, 1
          %vm3554 = vcmp.eq.s32.totalorder %v3490, 1
          %vm3555 = vcmp.eq.s32.totalorder %v3491, 1
          %vm3556 = vcmp.eq.s32.totalorder %v3492, 1
          %vm3557 = vcmp.eq.s32.totalorder %v3493, 1
          %vm3558 = vcmp.eq.s32.totalorder %v3494, 1
          %vm3559 = vcmp.eq.s32.totalorder %v3495, 1
          %vm3560 = vcmp.eq.s32.totalorder %v3496, 1
          %vm3561 = vcmp.eq.s32.totalorder %v3497, 1
          %vm3562 = vcmp.eq.s32.totalorder %v3498, 1
          %vm3563 = vcmp.eq.s32.totalorder %v3499, 1
          %vm3564 = vcmp.eq.s32.totalorder %v3500, 1
          %vm3565 = vcmp.eq.s32.totalorder %v3501, 1
          %vm3566 = vcmp.eq.s32.totalorder %v3502, 1
          %vm3567 = vcmp.eq.s32.totalorder %v3503, 1
          %vm3568 = vcmp.eq.s32.totalorder %v3504, 1
          %v3569 = vsel %vm3505, %v3024, 0.0
          %v3570 = vsel %vm3506, %v3026, 0.0
          %v3571 = vsel %vm3507, %v3029, 0.0
          %v3572 = vsel %vm3508, %v3031, 0.0
          %v3573 = vsel %vm3509, %v3034, 0.0
          %v3574 = vsel %vm3510, %v3036, 0.0
          %v3575 = vsel %vm3511, %v3039, 0.0
          %v3576 = vsel %vm3512, %v3041, 0.0
          %v3577 = vsel %vm3513, %v3044, 0.0
          %v3578 = vsel %vm3514, %v3046, 0.0
          %v3579 = vsel %vm3515, %v3049, 0.0
          %v3580 = vsel %vm3516, %v3051, 0.0
          %v3581 = vsel %vm3517, %v3054, 0.0
          %v3582 = vsel %vm3518, %v3056, 0.0
          %v3583 = vsel %vm3519, %v3059, 0.0
          %v3584 = vsel %vm3520, %v3061, 0.0
          %v3585 = vsel %vm3521, %v3064, 0.0
          %v3586 = vsel %vm3522, %v3066, 0.0
          %v3587 = vsel %vm3523, %v3069, 0.0
          %v3588 = vsel %vm3524, %v3071, 0.0
          %v3589 = vsel %vm3525, %v3074, 0.0
          %v3590 = vsel %vm3526, %v3076, 0.0
          %v3591 = vsel %vm3527, %v3079, 0.0
          %v3592 = vsel %vm3528, %v3081, 0.0
          %v3593 = vsel %vm3529, %v3084, 0.0
          %v3594 = vsel %vm3530, %v3086, 0.0
          %v3595 = vsel %vm3531, %v3089, 0.0
          %v3596 = vsel %vm3532, %v3091, 0.0
          %v3597 = vsel %vm3533, %v3094, 0.0
          %v3598 = vsel %vm3534, %v3096, 0.0
          %v3599 = vsel %vm3535, %v3099, 0.0
          %v3600 = vsel %vm3536, %v3101, 0.0
          %v3601 = vsel %vm3537, %v3104, 0.0
          %v3602 = vsel %vm3538, %v3106, 0.0
          %v3603 = vsel %vm3539, %v3109, 0.0
          %v3604 = vsel %vm3540, %v3111, 0.0
          %v3605 = vsel %vm3541, %v3114, 0.0
          %v3606 = vsel %vm3542, %v3116, 0.0
          %v3607 = vsel %vm3543, %v3119, 0.0
          %v3608 = vsel %vm3544, %v3121, 0.0
          %v3609 = vsel %vm3545, %v3124, 0.0
          %v3610 = vsel %vm3546, %v3126, 0.0
          %v3611 = vsel %vm3547, %v3129, 0.0
          %v3612 = vsel %vm3548, %v3131, 0.0
          %v3613 = vsel %vm3549, %v3134, 0.0
          %v3614 = vsel %vm3550, %v3136, 0.0
          %v3615 = vsel %vm3551, %v3139, 0.0
          %v3616 = vsel %vm3552, %v3141, 0.0
          %v3617 = vsel %vm3553, %v3144, 0.0
          %v3618 = vsel %vm3554, %v3146, 0.0
          %v3619 = vsel %vm3555, %v3149, 0.0
          %v3620 = vsel %vm3556, %v3151, 0.0
          %v3621 = vsel %vm3557, %v3154, 0.0
          %v3622 = vsel %vm3558, %v3156, 0.0
          %v3623 = vsel %vm3559, %v3159, 0.0
          %v3624 = vsel %vm3560, %v3161, 0.0
          %v3625 = vsel %vm3561, %v3164, 0.0
          %v3626 = vsel %vm3562, %v3166, 0.0
          %v3627 = vsel %vm3563, %v3169, 0.0
          %v3628 = vsel %vm3564, %v3171, 0.0
          %v3629 = vsel %vm3565, %v3174, 0.0
          %v3630 = vsel %vm3566, %v3176, 0.0
          %v3631 = vsel %vm3567, %v3179, 0.0
          %v3632 = vsel %vm3568, %v3181, 0.0
          %v3633 = vld [vmem:[#allocation4] sm:$0x3]
          %v3634 = vadd.f32 %v3569, %v3570
          %v3635 = vadd.f32 %v3634, %v3571
          %v3636 = vadd.f32 %v3635, %v3572
          %v3637 = vadd.f32 %v3636, %v3573
          %v3638 = vadd.f32 %v3637, %v3574
          %v3639 = vadd.f32 %v3638, %v3575
          %v3640 = vadd.f32 %v3639, %v3576
          %v3641 = vadd.f32 %v3640, %v3577
          %v3642 = vadd.f32 %v3641, %v3578
          %v3643 = vadd.f32 %v3642, %v3579
          %v3644 = vadd.f32 %v3643, %v3580
          %v3645 = vadd.f32 %v3644, %v3581
          %v3646 = vadd.f32 %v3645, %v3582
          %v3647 = vadd.f32 %v3646, %v3583
          %v3648 = vadd.f32 %v3647, %v3584
          %v3649 = vadd.f32 %v3648, %v3585
          %v3650 = vadd.f32 %v3649, %v3586
          %v3651 = vadd.f32 %v3650, %v3587
          %v3652 = vadd.f32 %v3651, %v3588
          %v3653 = vadd.f32 %v3652, %v3589
          %v3654 = vadd.f32 %v3653, %v3590
          %v3655 = vadd.f32 %v3654, %v3591
          %v3656 = vadd.f32 %v3655, %v3592
          %v3657 = vadd.f32 %v3656, %v3593
          %v3658 = vadd.f32 %v3657, %v3594
          %v3659 = vadd.f32 %v3658, %v3595
          %v3660 = vadd.f32 %v3659, %v3596
          %v3661 = vadd.f32 %v3660, %v3597
          %v3662 = vadd.f32 %v3661, %v3598
          %v3663 = vadd.f32 %v3662, %v3599
          %v3664 = vadd.f32 %v3663, %v3600
          %v3665 = vadd.f32 %v3664, %v3601
          %v3666 = vadd.f32 %v3665, %v3602
          %v3667 = vadd.f32 %v3666, %v3603
          %v3668 = vadd.f32 %v3667, %v3604
          %v3669 = vadd.f32 %v3668, %v3605
          %v3670 = vadd.f32 %v3669, %v3606
          %v3671 = vadd.f32 %v3670, %v3607
          %v3672 = vadd.f32 %v3671, %v3608
          %v3673 = vadd.f32 %v3672, %v3609
          %v3674 = vadd.f32 %v3673, %v3610
          %v3675 = vadd.f32 %v3674, %v3611
          %v3676 = vadd.f32 %v3675, %v3612
          %v3677 = vadd.f32 %v3676, %v3613
          %v3678 = vadd.f32 %v3677, %v3614
          %v3679 = vadd.f32 %v3678, %v3615
          %v3680 = vadd.f32 %v3679, %v3616
          %v3681 = vadd.f32 %v3680, %v3617
          %v3682 = vadd.f32 %v3681, %v3618
          %v3683 = vadd.f32 %v3682, %v3619
          %v3684 = vadd.f32 %v3683, %v3620
          %v3685 = vadd.f32 %v3684, %v3621
          %v3686 = vadd.f32 %v3685, %v3622
          %v3687 = vadd.f32 %v3686, %v3623
          %v3688 = vadd.f32 %v3687, %v3624
          %v3689 = vadd.f32 %v3688, %v3625
          %v3690 = vadd.f32 %v3689, %v3626
          %v3691 = vadd.f32 %v3690, %v3627
          %v3692 = vadd.f32 %v3691, %v3628
          %v3693 = vadd.f32 %v3692, %v3629
          %v3694 = vadd.f32 %v3693, %v3630
          %v3695 = vadd.f32 %v3694, %v3631
          %v3696 = vadd.f32 %v3695, %v3632
          %v3697 = vrot.slane %v3696, 4
          %v3698 = vadd.f32 %v3696, %v3697
          %v3699 = vrot.slane %v3698, 2
          %v3700 = vadd.f32 %v3698, %v3699
          %v3701 = vrot.slane %v3700, 1
          %v3702 = vadd.f32 %v3700, %v3701
          %v3703 = vmul.f32 %v3569, %v3569
          %v3704 = vmul.f32 %v3570, %v3570
          %v3705 = vmul.f32 %v3571, %v3571
          %v3706 = vmul.f32 %v3572, %v3572
          %v3707 = vmul.f32 %v3573, %v3573
          %v3708 = vmul.f32 %v3574, %v3574
          %v3709 = vmul.f32 %v3575, %v3575
          %v3710 = vmul.f32 %v3576, %v3576
          %v3711 = vmul.f32 %v3577, %v3577
          %v3712 = vmul.f32 %v3578, %v3578
          %v3713 = vmul.f32 %v3579, %v3579
          %v3714 = vmul.f32 %v3580, %v3580
          %v3715 = vmul.f32 %v3581, %v3581
          %v3716 = vmul.f32 %v3582, %v3582
          %v3717 = vmul.f32 %v3583, %v3583
          %v3718 = vmul.f32 %v3584, %v3584
          %v3719 = vmul.f32 %v3585, %v3585
          %v3720 = vmul.f32 %v3586, %v3586
          %v3721 = vmul.f32 %v3587, %v3587
          %v3722 = vmul.f32 %v3588, %v3588
          %v3723 = vmul.f32 %v3589, %v3589
          %v3724 = vmul.f32 %v3590, %v3590
          %v3725 = vmul.f32 %v3591, %v3591
          %v3726 = vmul.f32 %v3592, %v3592
          %v3727 = vmul.f32 %v3593, %v3593
          %v3728 = vmul.f32 %v3594, %v3594
          %v3729 = vmul.f32 %v3595, %v3595
          %v3730 = vmul.f32 %v3596, %v3596
          %v3731 = vmul.f32 %v3597, %v3597
          %v3732 = vmul.f32 %v3598, %v3598
          %v3733 = vmul.f32 %v3599, %v3599
          %v3734 = vmul.f32 %v3600, %v3600
          %v3735 = vmul.f32 %v3601, %v3601
          %v3736 = vmul.f32 %v3602, %v3602
          %v3737 = vmul.f32 %v3603, %v3603
          %v3738 = vmul.f32 %v3604, %v3604
          %v3739 = vmul.f32 %v3605, %v3605
          %v3740 = vmul.f32 %v3606, %v3606
          %v3741 = vmul.f32 %v3607, %v3607
          %v3742 = vmul.f32 %v3608, %v3608
          %v3743 = vmul.f32 %v3609, %v3609
          %v3744 = vmul.f32 %v3610, %v3610
          %v3745 = vmul.f32 %v3611, %v3611
          %v3746 = vmul.f32 %v3612, %v3612
          %v3747 = vmul.f32 %v3613, %v3613
          %v3748 = vmul.f32 %v3614, %v3614
          %v3749 = vmul.f32 %v3615, %v3615
          %v3750 = vmul.f32 %v3616, %v3616
          %v3751 = vmul.f32 %v3617, %v3617
          %v3752 = vmul.f32 %v3618, %v3618
          %v3753 = vmul.f32 %v3619, %v3619
          %v3754 = vmul.f32 %v3620, %v3620
          %v3755 = vmul.f32 %v3621, %v3621
          %v3756 = vmul.f32 %v3622, %v3622
          %v3757 = vmul.f32 %v3623, %v3623
          %v3758 = vmul.f32 %v3624, %v3624
          %v3759 = vmul.f32 %v3625, %v3625
          %v3760 = vmul.f32 %v3626, %v3626
          %v3761 = vmul.f32 %v3627, %v3627
          %v3762 = vmul.f32 %v3628, %v3628
          %v3763 = vmul.f32 %v3629, %v3629
          %v3764 = vmul.f32 %v3630, %v3630
          %v3765 = vmul.f32 %v3631, %v3631
          %v3766 = vmul.f32 %v3632, %v3632
          %v3767 = vadd.f32 %v3703, %v3704
          %v3768 = vadd.f32 %v3767, %v3705
          %v3769 = vadd.f32 %v3768, %v3706
          %v3770 = vadd.f32 %v3769, %v3707
          %v3771 = vadd.f32 %v3770, %v3708
          %v3772 = vadd.f32 %v3771, %v3709
          %v3773 = vadd.f32 %v3772, %v3710
          %v3774 = vadd.f32 %v3773, %v3711
          %v3775 = vadd.f32 %v3774, %v3712
          %v3776 = vadd.f32 %v3775, %v3713
          %v3777 = vadd.f32 %v3776, %v3714
          %v3778 = vadd.f32 %v3777, %v3715
          %v3779 = vadd.f32 %v3778, %v3716
          %v3780 = vadd.f32 %v3779, %v3717
          %v3781 = vadd.f32 %v3780, %v3718
          %v3782 = vadd.f32 %v3781, %v3719
          %v3783 = vadd.f32 %v3782, %v3720
          %v3784 = vadd.f32 %v3783, %v3721
          %v3785 = vadd.f32 %v3784, %v3722
          %v3786 = vadd.f32 %v3785, %v3723
          %v3787 = vadd.f32 %v3786, %v3724
          %v3788 = vadd.f32 %v3787, %v3725
          %v3789 = vadd.f32 %v3788, %v3726
          %v3790 = vadd.f32 %v3789, %v3727
          %v3791 = vadd.f32 %v3790, %v3728
          %v3792 = vadd.f32 %v3791, %v3729
          %v3793 = vadd.f32 %v3792, %v3730
          %v3794 = vadd.f32 %v3793, %v3731
          %v3795 = vadd.f32 %v3794, %v3732
          %v3796 = vadd.f32 %v3795, %v3733
          %v3797 = vadd.f32 %v3796, %v3734
          %v3798 = vadd.f32 %v3797, %v3735
          %v3799 = vadd.f32 %v3798, %v3736
          %v3800 = vadd.f32 %v3799, %v3737
          %v3801 = vadd.f32 %v3800, %v3738
          %v3802 = vadd.f32 %v3801, %v3739
          %v3803 = vadd.f32 %v3802, %v3740
          %v3804 = vadd.f32 %v3803, %v3741
          %v3805 = vadd.f32 %v3804, %v3742
          %v3806 = vadd.f32 %v3805, %v3743
          %v3807 = vadd.f32 %v3806, %v3744
          %v3808 = vadd.f32 %v3807, %v3745
          %v3809 = vadd.f32 %v3808, %v3746
          %v3810 = vadd.f32 %v3809, %v3747
          %v3811 = vadd.f32 %v3810, %v3748
          %v3812 = vadd.f32 %v3811, %v3749
          %v3813 = vadd.f32 %v3812, %v3750
          %v3814 = vadd.f32 %v3813, %v3751
          %v3815 = vadd.f32 %v3814, %v3752
          %v3816 = vadd.f32 %v3815, %v3753
          %v3817 = vadd.f32 %v3816, %v3754
          %v3818 = vadd.f32 %v3817, %v3755
          %v3819 = vadd.f32 %v3818, %v3756
          %v3820 = vadd.f32 %v3819, %v3757
          %v3821 = vadd.f32 %v3820, %v3758
          %v3822 = vadd.f32 %v3821, %v3759
          %v3823 = vadd.f32 %v3822, %v3760
          %v3824 = vadd.f32 %v3823, %v3761
          %v3825 = vadd.f32 %v3824, %v3762
          %v3826 = vadd.f32 %v3825, %v3763
          %v3827 = vadd.f32 %v3826, %v3764
          %v3828 = vadd.f32 %v3827, %v3765
          %v3829 = vadd.f32 %v3828, %v3766
          %v3830 = vrot.slane %v3829, 4
          %v3831 = vadd.f32 %v3829, %v3830
          %v3832 = vrot.slane %v3831, 2
          %v3833 = vadd.f32 %v3831, %v3832
          %v3834 = vrot.slane %v3833, 1
          %v3835 = vadd.f32 %v3833, %v3834
          %vm3836 = vcmask 1040384
          %v3837 = vsel %vm3836, %v3702, %v3835
          %v3838 = vadd.f32 %v3633, %v3837
          %3839 = vst [vmem:[#allocation4] sm:$0x3] %v3838
          %p3840 = scmp.eq.s32.totalorder %s23, 1
          // Predicated region
          $region61: #{tpu_custom_call.1} parent=59 // pred_check
            %p3841 = pneg %p3840
          $region62: #{tpu_custom_call.1} parent=59 // pred_check_branch
            %3843 = sbr.rel (%p3841) target = $region64
          $region63: #{tpu_custom_call.1} parent=59 // pred_region
            %v3844 = vld [vmem:[#allocation4] sm:$0x1]
            %v3845 = vmul.f32 %v3844, 0.001
            %v3846 = vld [vmem:[#allocation4 + $0x1] sm:$0x1]
            %v3847 = vmul.f32 %v3846, 0.001
            %v3848 = vmul.f32 %v3845, %v3845
            %v3849 = vsub.f32 %v3847, %v3848
            %v3850 = vmax.f32 %v3849, 0.0
            %v3851 = vld [vmem:[%s3 + $0x4] sm:$0x1]
            %v3852 = vld [vmem:[%s3 + $0x5] sm:$0x1]
            %v3853 = vadd.f32 %v3850, 1e-05
            %v3854 = vrsqrt.pop %v3853
            %v3855 = vmul.f32 %v3854, %v3853
            %v3856 = vmul.f32 %v3855, %v3854
            %v3857 = vmul.f32 0.5, %v3856
            %v3858 = vsub.f32 1.5, %v3857
            %v3859 = vmul.f32 %v3854, %v3858
            %vm3860 = vweird.f32 %v3853
            %vm3861 = vweird.f32 %v3854
            %vm3862 = vmor %vm3860, %vm3861
            %v3863 = vsel %vm3862, %v3854, %v3859
            %v3864 = vmul.f32 %v3851, %v3863
            %3865 = vst [vmem:[#allocation3] sm:$0x1] %v3864
            %v3866 = vmul.f32 %v3845, %v3864
            %v3867 = vsub.f32 %v3852, %v3866
            %3868 = vst [vmem:[#allocation3 + $0x1] sm:$0x1] %v3867
          $region64: #{tpu_custom_call.1} parent=59 // pred_fallthru
            _
        $region60: #{tpu_custom_call.1} parent=35 // pred_fallthru
          _
        %p3869 = scmp.eq.s32.totalorder %s22, 3
        // Predicated region
        $region65: #{tpu_custom_call.1} parent=35 // pred_check
          %p3870 = pneg %p3869
        $region66: #{tpu_custom_call.1} parent=35 // pred_check_branch
          %3872 = sbr.rel (%p3870) target = $region68
        $region67: #{tpu_custom_call.1} parent=35 // pred_region
          %s3873 = scalar_lea.vmem [#allocation2], %s232
          %v3874 = vld [vmem:[%s3873] sm:$0xff]
          %v3875 = vld [vmem:[%s3873 + $0x8] sm:$0xff]
          %v3876 = vld [vmem:[%s3873 + $0x10] sm:$0xff]
          %v3877 = vld [vmem:[%s3873 + $0x18] sm:$0xff]
          %v3878 = vld [vmem:[%s3873 + $0x20] sm:$0xff]
          %v3879 = vld [vmem:[%s3873 + $0x28] sm:$0xff]
          %v3880 = vld [vmem:[%s3873 + $0x30] sm:$0xff]
          %v3881 = vld [vmem:[%s3873 + $0x38] sm:$0xff]
          %v3882 = vld [vmem:[%s3873 + $0x40] sm:$0xff]
          %v3883 = vld [vmem:[%s3873 + $0x48] sm:$0xff]
          %v3884 = vld [vmem:[%s3873 + $0x50] sm:$0xff]
          %v3885 = vld [vmem:[%s3873 + $0x58] sm:$0xff]
          %v3886 = vld [vmem:[%s3873 + $0x60] sm:$0xff]
          %v3887 = vld [vmem:[%s3873 + $0x68] sm:$0xff]
          %v3888 = vld [vmem:[%s3873 + $0x70] sm:$0xff]
          %v3889 = vld [vmem:[%s3873 + $0x78] sm:$0xff]
          %v3890 = vld [vmem:[%s3873 + $0x80] sm:$0xff]
          %v3891 = vld [vmem:[%s3873 + $0x88] sm:$0xff]
          %v3892 = vld [vmem:[%s3873 + $0x90] sm:$0xff]
          %v3893 = vld [vmem:[%s3873 + $0x98] sm:$0xff]
          %v3894 = vld [vmem:[%s3873 + $0xa0] sm:$0xff]
          %v3895 = vld [vmem:[%s3873 + $0xa8] sm:$0xff]
          %v3896 = vld [vmem:[%s3873 + $0xb0] sm:$0xff]
          %v3897 = vld [vmem:[%s3873 + $0xb8] sm:$0xff]
          %v3898 = vld [vmem:[%s3873 + $0xc0] sm:$0xff]
          %v3899 = vld [vmem:[%s3873 + $0xc8] sm:$0xff]
          %v3900 = vld [vmem:[%s3873 + $0xd0] sm:$0xff]
          %v3901 = vld [vmem:[%s3873 + $0xd8] sm:$0xff]
          %v3902 = vld [vmem:[%s3873 + $0xe0] sm:$0xff]
          %v3903 = vld [vmem:[%s3873 + $0xe8] sm:$0xff]
          %v3904 = vld [vmem:[%s3873 + $0xf0] sm:$0xff]
          %v3905 = vld [vmem:[%s3873 + $0xf8] sm:$0xff]
          %v3906 = vld [vmem:[%s3873 + $0x100] sm:$0xff]
          %v3907 = vld [vmem:[%s3873 + $0x108] sm:$0xff]
          %v3908 = vld [vmem:[%s3873 + $0x110] sm:$0xff]
          %v3909 = vld [vmem:[%s3873 + $0x118] sm:$0xff]
          %v3910 = vld [vmem:[%s3873 + $0x120] sm:$0xff]
          %v3911 = vld [vmem:[%s3873 + $0x128] sm:$0xff]
          %v3912 = vld [vmem:[%s3873 + $0x130] sm:$0xff]
          %v3913 = vld [vmem:[%s3873 + $0x138] sm:$0xff]
          %v3914 = vld [vmem:[%s3873 + $0x140] sm:$0xff]
          %v3915 = vld [vmem:[%s3873 + $0x148] sm:$0xff]
          %v3916 = vld [vmem:[%s3873 + $0x150] sm:$0xff]
          %v3917 = vld [vmem:[%s3873 + $0x158] sm:$0xff]
          %v3918 = vld [vmem:[%s3873 + $0x160] sm:$0xff]
          %v3919 = vld [vmem:[%s3873 + $0x168] sm:$0xff]
          %v3920 = vld [vmem:[%s3873 + $0x170] sm:$0xff]
          %v3921 = vld [vmem:[%s3873 + $0x178] sm:$0xff]
          %v3922 = vld [vmem:[%s3873 + $0x180] sm:$0xff]
          %v3923 = vld [vmem:[%s3873 + $0x188] sm:$0xff]
          %v3924 = vld [vmem:[%s3873 + $0x190] sm:$0xff]
          %v3925 = vld [vmem:[%s3873 + $0x198] sm:$0xff]
          %v3926 = vld [vmem:[%s3873 + $0x1a0] sm:$0xff]
          %v3927 = vld [vmem:[%s3873 + $0x1a8] sm:$0xff]
          %v3928 = vld [vmem:[%s3873 + $0x1b0] sm:$0xff]
          %v3929 = vld [vmem:[%s3873 + $0x1b8] sm:$0xff]
          %v3930 = vld [vmem:[%s3873 + $0x1c0] sm:$0xff]
          %v3931 = vld [vmem:[%s3873 + $0x1c8] sm:$0xff]
          %v3932 = vld [vmem:[%s3873 + $0x1d0] sm:$0xff]
          %v3933 = vld [vmem:[%s3873 + $0x1d8] sm:$0xff]
          %v3934 = vld [vmem:[%s3873 + $0x1e0] sm:$0xff]
          %v3935 = vld [vmem:[%s3873 + $0x1e8] sm:$0xff]
          %v3936 = vld [vmem:[%s3873 + $0x1f0] sm:$0xff]
          %v3937 = vld [vmem:[%s3873 + $0x1f8] sm:$0xff]
          %v3938 = vld [vmem:[#allocation3] sm:$0x1]
          %v3939 = vperm.slane %v3938, 0
          %v3940 = vmul.f32 %v3874, %v3939
          %v3941 = vmul.f32 %v3875, %v3939
          %v3942 = vmul.f32 %v3876, %v3939
          %v3943 = vmul.f32 %v3877, %v3939
          %v3944 = vmul.f32 %v3878, %v3939
          %v3945 = vmul.f32 %v3879, %v3939
          %v3946 = vmul.f32 %v3880, %v3939
          %v3947 = vmul.f32 %v3881, %v3939
          %v3948 = vmul.f32 %v3882, %v3939
          %v3949 = vmul.f32 %v3883, %v3939
          %v3950 = vmul.f32 %v3884, %v3939
          %v3951 = vmul.f32 %v3885, %v3939
          %v3952 = vmul.f32 %v3886, %v3939
          %v3953 = vmul.f32 %v3887, %v3939
          %v3954 = vmul.f32 %v3888, %v3939
          %v3955 = vmul.f32 %v3889, %v3939
          %v3956 = vmul.f32 %v3890, %v3939
          %v3957 = vmul.f32 %v3891, %v3939
          %v3958 = vmul.f32 %v3892, %v3939
          %v3959 = vmul.f32 %v3893, %v3939
          %v3960 = vmul.f32 %v3894, %v3939
          %v3961 = vmul.f32 %v3895, %v3939
          %v3962 = vmul.f32 %v3896, %v3939
          %v3963 = vmul.f32 %v3897, %v3939
          %v3964 = vmul.f32 %v3898, %v3939
          %v3965 = vmul.f32 %v3899, %v3939
          %v3966 = vmul.f32 %v3900, %v3939
          %v3967 = vmul.f32 %v3901, %v3939
          %v3968 = vmul.f32 %v3902, %v3939
          %v3969 = vmul.f32 %v3903, %v3939
          %v3970 = vmul.f32 %v3904, %v3939
          %v3971 = vmul.f32 %v3905, %v3939
          %v3972 = vmul.f32 %v3906, %v3939
          %v3973 = vmul.f32 %v3907, %v3939
          %v3974 = vmul.f32 %v3908, %v3939
          %v3975 = vmul.f32 %v3909, %v3939
          %v3976 = vmul.f32 %v3910, %v3939
          %v3977 = vmul.f32 %v3911, %v3939
          %v3978 = vmul.f32 %v3912, %v3939
          %v3979 = vmul.f32 %v3913, %v3939
          %v3980 = vmul.f32 %v3914, %v3939
          %v3981 = vmul.f32 %v3915, %v3939
          %v3982 = vmul.f32 %v3916, %v3939
          %v3983 = vmul.f32 %v3917, %v3939
          %v3984 = vmul.f32 %v3918, %v3939
          %v3985 = vmul.f32 %v3919, %v3939
          %v3986 = vmul.f32 %v3920, %v3939
          %v3987 = vmul.f32 %v3921, %v3939
          %v3988 = vmul.f32 %v3922, %v3939
          %v3989 = vmul.f32 %v3923, %v3939
          %v3990 = vmul.f32 %v3924, %v3939
          %v3991 = vmul.f32 %v3925, %v3939
          %v3992 = vmul.f32 %v3926, %v3939
          %v3993 = vmul.f32 %v3927, %v3939
          %v3994 = vmul.f32 %v3928, %v3939
          %v3995 = vmul.f32 %v3929, %v3939
          %v3996 = vmul.f32 %v3930, %v3939
          %v3997 = vmul.f32 %v3931, %v3939
          %v3998 = vmul.f32 %v3932, %v3939
          %v3999 = vmul.f32 %v3933, %v3939
          %v4000 = vmul.f32 %v3934, %v3939
          %v4001 = vmul.f32 %v3935, %v3939
          %v4002 = vmul.f32 %v3936, %v3939
          %v4003 = vmul.f32 %v3937, %v3939
          %v4004 = vld [vmem:[#allocation3 + $0x1] sm:$0x1]
          %v4005 = vperm.slane %v4004, 0
          %v4006 = vadd.f32 %v3940, %v4005
          %v4007 = vadd.f32 %v3941, %v4005
          %v4008 = vadd.f32 %v3942, %v4005
          %v4009 = vadd.f32 %v3943, %v4005
          %v4010 = vadd.f32 %v3944, %v4005
          %v4011 = vadd.f32 %v3945, %v4005
          %v4012 = vadd.f32 %v3946, %v4005
          %v4013 = vadd.f32 %v3947, %v4005
          %v4014 = vadd.f32 %v3948, %v4005
          %v4015 = vadd.f32 %v3949, %v4005
          %v4016 = vadd.f32 %v3950, %v4005
          %v4017 = vadd.f32 %v3951, %v4005
          %v4018 = vadd.f32 %v3952, %v4005
          %v4019 = vadd.f32 %v3953, %v4005
          %v4020 = vadd.f32 %v3954, %v4005
          %v4021 = vadd.f32 %v3955, %v4005
          %v4022 = vadd.f32 %v3956, %v4005
          %v4023 = vadd.f32 %v3957, %v4005
          %v4024 = vadd.f32 %v3958, %v4005
          %v4025 = vadd.f32 %v3959, %v4005
          %v4026 = vadd.f32 %v3960, %v4005
          %v4027 = vadd.f32 %v3961, %v4005
          %v4028 = vadd.f32 %v3962, %v4005
          %v4029 = vadd.f32 %v3963, %v4005
          %v4030 = vadd.f32 %v3964, %v4005
          %v4031 = vadd.f32 %v3965, %v4005
          %v4032 = vadd.f32 %v3966, %v4005
          %v4033 = vadd.f32 %v3967, %v4005
          %v4034 = vadd.f32 %v3968, %v4005
          %v4035 = vadd.f32 %v3969, %v4005
          %v4036 = vadd.f32 %v3970, %v4005
          %v4037 = vadd.f32 %v3971, %v4005
          %v4038 = vadd.f32 %v3972, %v4005
          %v4039 = vadd.f32 %v3973, %v4005
          %v4040 = vadd.f32 %v3974, %v4005
          %v4041 = vadd.f32 %v3975, %v4005
          %v4042 = vadd.f32 %v3976, %v4005
          %v4043 = vadd.f32 %v3977, %v4005
          %v4044 = vadd.f32 %v3978, %v4005
          %v4045 = vadd.f32 %v3979, %v4005
          %v4046 = vadd.f32 %v3980, %v4005
          %v4047 = vadd.f32 %v3981, %v4005
          %v4048 = vadd.f32 %v3982, %v4005
          %v4049 = vadd.f32 %v3983, %v4005
          %v4050 = vadd.f32 %v3984, %v4005
          %v4051 = vadd.f32 %v3985, %v4005
          %v4052 = vadd.f32 %v3986, %v4005
          %v4053 = vadd.f32 %v3987, %v4005
          %v4054 = vadd.f32 %v3988, %v4005
          %v4055 = vadd.f32 %v3989, %v4005
          %v4056 = vadd.f32 %v3990, %v4005
          %v4057 = vadd.f32 %v3991, %v4005
          %v4058 = vadd.f32 %v3992, %v4005
          %v4059 = vadd.f32 %v3993, %v4005
          %v4060 = vadd.f32 %v3994, %v4005
          %v4061 = vadd.f32 %v3995, %v4005
          %v4062 = vadd.f32 %v3996, %v4005
          %v4063 = vadd.f32 %v3997, %v4005
          %v4064 = vadd.f32 %v3998, %v4005
          %v4065 = vadd.f32 %v3999, %v4005
          %v4066 = vadd.f32 %v4000, %v4005
          %v4067 = vadd.f32 %v4001, %v4005
          %v4068 = vadd.f32 %v4002, %v4005
          %v4069 = vadd.f32 %v4003, %v4005
          %4070 = vst [vmem:[%s217] sm:$0xff] %v4006
          %4071 = vst [vmem:[%s217 + $0x8] sm:$0xff] %v4007
          %4072 = vst [vmem:[%s217 + $0x10] sm:$0xff] %v4008
          %4073 = vst [vmem:[%s217 + $0x18] sm:$0xff] %v4009
          %4074 = vst [vmem:[%s217 + $0x20] sm:$0xff] %v4010
          %4075 = vst [vmem:[%s217 + $0x28] sm:$0xff] %v4011
          %4076 = vst [vmem:[%s217 + $0x30] sm:$0xff] %v4012
          %4077 = vst [vmem:[%s217 + $0x38] sm:$0xff] %v4013
          %4078 = vst [vmem:[%s217 + $0x40] sm:$0xff] %v4014
          %4079 = vst [vmem:[%s217 + $0x48] sm:$0xff] %v4015
          %4080 = vst [vmem:[%s217 + $0x50] sm:$0xff] %v4016
          %4081 = vst [vmem:[%s217 + $0x58] sm:$0xff] %v4017
          %4082 = vst [vmem:[%s217 + $0x60] sm:$0xff] %v4018
          %4083 = vst [vmem:[%s217 + $0x68] sm:$0xff] %v4019
          %4084 = vst [vmem:[%s217 + $0x70] sm:$0xff] %v4020
          %4085 = vst [vmem:[%s217 + $0x78] sm:$0xff] %v4021
          %4086 = vst [vmem:[%s217 + $0x80] sm:$0xff] %v4022
          %4087 = vst [vmem:[%s217 + $0x88] sm:$0xff] %v4023
          %4088 = vst [vmem:[%s217 + $0x90] sm:$0xff] %v4024
          %4089 = vst [vmem:[%s217 + $0x98] sm:$0xff] %v4025
          %4090 = vst [vmem:[%s217 + $0xa0] sm:$0xff] %v4026
          %4091 = vst [vmem:[%s217 + $0xa8] sm:$0xff] %v4027
          %4092 = vst [vmem:[%s217 + $0xb0] sm:$0xff] %v4028
          %4093 = vst [vmem:[%s217 + $0xb8] sm:$0xff] %v4029
          %4094 = vst [vmem:[%s217 + $0xc0] sm:$0xff] %v4030
          %4095 = vst [vmem:[%s217 + $0xc8] sm:$0xff] %v4031
          %4096 = vst [vmem:[%s217 + $0xd0] sm:$0xff] %v4032
          %4097 = vst [vmem:[%s217 + $0xd8] sm:$0xff] %v4033
          %4098 = vst [vmem:[%s217 + $0xe0] sm:$0xff] %v4034
          %4099 = vst [vmem:[%s217 + $0xe8] sm:$0xff] %v4035
          %4100 = vst [vmem:[%s217 + $0xf0] sm:$0xff] %v4036
          %4101 = vst [vmem:[%s217 + $0xf8] sm:$0xff] %v4037
          %4102 = vst [vmem:[%s217 + $0x100] sm:$0xff] %v4038
          %4103 = vst [vmem:[%s217 + $0x108] sm:$0xff] %v4039
          %4104 = vst [vmem:[%s217 + $0x110] sm:$0xff] %v4040
          %4105 = vst [vmem:[%s217 + $0x118] sm:$0xff] %v4041
          %4106 = vst [vmem:[%s217 + $0x120] sm:$0xff] %v4042
          %4107 = vst [vmem:[%s217 + $0x128] sm:$0xff] %v4043
          %4108 = vst [vmem:[%s217 + $0x130] sm:$0xff] %v4044
          %4109 = vst [vmem:[%s217 + $0x138] sm:$0xff] %v4045
          %4110 = vst [vmem:[%s217 + $0x140] sm:$0xff] %v4046
          %4111 = vst [vmem:[%s217 + $0x148] sm:$0xff] %v4047
          %4112 = vst [vmem:[%s217 + $0x150] sm:$0xff] %v4048
          %4113 = vst [vmem:[%s217 + $0x158] sm:$0xff] %v4049
          %4114 = vst [vmem:[%s217 + $0x160] sm:$0xff] %v4050
          %4115 = vst [vmem:[%s217 + $0x168] sm:$0xff] %v4051
          %4116 = vst [vmem:[%s217 + $0x170] sm:$0xff] %v4052
          %4117 = vst [vmem:[%s217 + $0x178] sm:$0xff] %v4053
          %4118 = vst [vmem:[%s217 + $0x180] sm:$0xff] %v4054
          %4119 = vst [vmem:[%s217 + $0x188] sm:$0xff] %v4055
          %4120 = vst [vmem:[%s217 + $0x190] sm:$0xff] %v4056
          %4121 = vst [vmem:[%s217 + $0x198] sm:$0xff] %v4057
          %4122 = vst [vmem:[%s217 + $0x1a0] sm:$0xff] %v4058
          %4123 = vst [vmem:[%s217 + $0x1a8] sm:$0xff] %v4059
          %4124 = vst [vmem:[%s217 + $0x1b0] sm:$0xff] %v4060
          %4125 = vst [vmem:[%s217 + $0x1b8] sm:$0xff] %v4061
          %4126 = vst [vmem:[%s217 + $0x1c0] sm:$0xff] %v4062
          %4127 = vst [vmem:[%s217 + $0x1c8] sm:$0xff] %v4063
          %4128 = vst [vmem:[%s217 + $0x1d0] sm:$0xff] %v4064
          %4129 = vst [vmem:[%s217 + $0x1d8] sm:$0xff] %v4065
          %4130 = vst [vmem:[%s217 + $0x1e0] sm:$0xff] %v4066
          %4131 = vst [vmem:[%s217 + $0x1e8] sm:$0xff] %v4067
          %4132 = vst [vmem:[%s217 + $0x1f0] sm:$0xff] %v4068
          %4133 = vst [vmem:[%s217 + $0x1f8] sm:$0xff] %v4069
        $region68: #{tpu_custom_call.1} parent=35 // pred_fallthru
          _
        %s4134 = sand.u32 %s135, 1
        %s4135 = scalar_lea.sflag [#allocation6], %s4134
        %s4136 = sand.u32 %s135, 1
        %s4137 = smul.addr %s4136, 512
        %s4138 = scalar_lea.vmem [#allocation5], %s4137
        // Predicated region
        $region69: #{tpu_custom_call.1} parent=35 // pred_check
          %p4139 = pneg %p145
        $region70: #{tpu_custom_call.1} parent=35 // pred_check_branch
          %4141 = sbr.rel (%p4139) target = $region72
        $region71: #{tpu_custom_call.1} parent=35 // pred_region
          %p4142 = scmp.eq.s32.totalorder %s22, 3
          %s4143 = scalar_select %p4142, %s23, 0
          %s4144 = smul.u32 64, %s4143
          %4146 = vsyncadd %s4135, 0
          %s4147 = smul.addr %s4144, 8
          %s4148 = scalar_lea.hbm %s4, %s4147
          %s4149 = sshll.u32 %s4138, 4
          %s4150 = int_to_ptr.vmem [resolvable:$true] %s4149
          %s4151 = sshll.u32 %s4148, 4
          %s4152 = int_to_ptr.hbm [resolvable:$true] %s4151
          %4157 = dma.vmem_to_hbm [thread:$0]  %s4150, 8192, %s4152, %s4135, 128, 128, 8
        $region72: #{tpu_custom_call.1} parent=35 // pred_fallthru
          _
      $region36: #{tpu_custom_call.1} parent=5 // pred_fallthru
        _
      %p4158 = scmp.le.s32.totalorder 2, %s13
      // Predicated region
      $region73: #{tpu_custom_call.1} parent=5 // pred_check
        %p4159 = pneg %p4158
      $region74: #{tpu_custom_call.1} parent=5 // pred_check_branch
        %4161 = sbr.rel (%p4159) target = $region76
      $region75: #{tpu_custom_call.1} parent=5 // pred_region
        %s4162 = ssub.s32 %s13, 2
        // Predicated region
        $region77: #{tpu_custom_call.1} parent=75 // pred_check
          %p4163 = pneg %p151
        $region78: #{tpu_custom_call.1} parent=75 // pred_check_branch
          %4165 = sbr.rel (%p4163) target = $region80
        $region79: #{tpu_custom_call.1} parent=75 // pred_region
          %s4166 = sand.u32 %s136, 1
          %s4167 = scalar_lea.sflag [#allocation6], %s4166
          %s4168 = sand.u32 %s136, 1
          %s4169 = smul.addr %s4168, 512
          %s4170 = scalar_lea.vmem [#allocation5], %s4169
          %4172 = dma.done %s4167, 8192
        $region80: #{tpu_custom_call.1} parent=75 // pred_fallthru
          _
      $region76: #{tpu_custom_call.1} parent=5 // pred_fallthru
        _
    $region6: #{tpu_custom_call.1} parent=1 // loop_footer
      %s17 = sadd.s32 1, %s13
    $region7: #{tpu_custom_call.1} parent=1 // loop_footer_branch
      %12 = sbr.rel target = $region3
    $region8: #{tpu_custom_call.1} parent=1 // loop_exit
      _
    %4173 = vsyncpa [#allocation6], 1
    %s4174 = scalar_lea.sflag [#allocation6], 1
    %4175 = vsyncpa %s4174, 1

</llo_original>
